<compile_context>
chip_gen: v7x
topology: tpu7x:2x2x1
jax: 0.10.0
libtpu: 0.0.40
codegen_flags: <defaults>
</compile_context>

<pallas_src>
import jax
import jax.numpy as jnp
from jax.experimental import pallas as pl
from jax.experimental.pallas import tpu as pltpu

IMAGE_SIZE = (3, 64, 64)
IMAGE_LINEAR_SIZE = IMAGE_SIZE[0] * IMAGE_SIZE[1] * IMAGE_SIZE[2]  # 12288
NUM_CLASSES = 6      # len(LABEL_NAMES)
N_PAD = 128          # lane-dense padded output width


def _linear_kernel(x_ref, w_ref, b_ref, o_ref):
    """One grid step: one B tile, full K reduction on the MXU, lane-dense store."""
    o_ref[...] = (
        jnp.dot(x_ref[...], w_ref[...], preferred_element_type=jnp.float32)
        + b_ref[...]
    ).astype(o_ref.dtype)


def linear_classifier_forward(x, weight, bias, *, tb=256):
    """
    x:      (B, 3, 64, 64) float32   (NCHW, like the PyTorch module)
    weight: (IMAGE_LINEAR_SIZE, NUM_CLASSES) float32  == torch weight (out,in).T
    bias:   (NUM_CLASSES,) float32
    returns (B, NUM_CLASSES) float32
    """
    B = x.shape[0]
    K = IMAGE_LINEAR_SIZE

    # Glue: flatten NCHW -> (B, 12288), same order as torch .view(-1, 12288).
    x2d = x.reshape(B, K)

    # Pad the narrow (6-wide) output dimension to a full 128-lane width so the
    # kernel's stores/accumulates are lane-dense.  Padded columns are zero.
    w_pad = jnp.zeros((K, N_PAD), dtype=weight.dtype).at[:, :NUM_CLASSES].set(weight)
    b_pad = jnp.zeros((1, N_PAD), dtype=bias.dtype).at[0, :NUM_CLASSES].set(bias)

    # Tile over B with full K per block.  Small B => single block (tb_eff = B).
    if B <= tb:
        tb_eff = B
        Bp = B
    else:
        tb_eff = tb
        Bp = pl.cdiv(B, tb_eff) * tb_eff
        if Bp != B:
            x2d = jnp.pad(x2d, ((0, Bp - B), (0, 0)))
    n_b = Bp // tb_eff

    out = pl.pallas_call(
        _linear_kernel,
        out_shape=jax.ShapeDtypeStruct((Bp, N_PAD), x.dtype),
        grid_spec=pltpu.PrefetchScalarGridSpec(
            num_scalar_prefetch=0,
            grid=(n_b,),
            in_specs=[
                pl.BlockSpec((tb_eff, K), lambda i: (i, 0)),   # x tile (streamed)
                pl.BlockSpec((K, N_PAD), lambda i: (0, 0)),    # weight (resident)
                pl.BlockSpec((1, N_PAD), lambda i: (0, 0)),    # bias (resident)
            ],
            out_specs=pl.BlockSpec((tb_eff, N_PAD), lambda i: (i, 0)),
        ),
        compiler_params=pltpu.CompilerParams(
            dimension_semantics=("parallel",),   # B tiles are independent
            vmem_limit_bytes=64 << 20,           # room for 2x12 MiB x tiles + 6.3 MiB W
        ),
    )(x2d, w_pad, b_pad)

    # Drop batch padding and padded output columns.
    return out[:B, :NUM_CLASSES]


def init_params(key):
    """Deterministic init mimicking nn.Linear default: U(-1/sqrt(in), 1/sqrt(in))."""
    kw, kb = jax.random.split(key)
    bound = 1.0 / (IMAGE_LINEAR_SIZE ** 0.5)
    weight = jax.random.uniform(
        kw, (IMAGE_LINEAR_SIZE, NUM_CLASSES), jnp.float32, -bound, bound
    )
    bias = jax.random.uniform(kb, (NUM_CLASSES,), jnp.float32, -bound, bound)
    return weight, bias


if __name__ == "__main__":
    key = jax.random.PRNGKey(0)
    kx, kp = jax.random.split(key)

    B = 2
    x = jax.random.normal(kx, (B, *IMAGE_SIZE), dtype=jnp.float32)
    weight, bias = init_params(kp)

    y = linear_classifier_forward(x, weight, bias)
    y = jax.block_until_ready(y)

    # Reference check against plain JAX (same math as torch Linear).
    y_ref = x.reshape(B, IMAGE_LINEAR_SIZE) @ weight + bias
    assert y.shape == (B, NUM_CLASSES), y.shape
    assert jnp.allclose(y, y_ref, atol=1e-4, rtol=1e-4), "mismatch vs reference"

    print("KERNEL_OK")
</pallas_src>

<mosaic_0001>
module attributes {stable_mosaic.version = 11 : i64} {
  func.func @_linear_kernel(%arg0: i32, %arg1: memref<2x12288xf32, #tpu.memory_space<vmem>>, %arg2: memref<12288x128xf32, #tpu.memory_space<vmem>>, %arg3: memref<1x128xf32, #tpu.memory_space<vmem>>, %arg4: memref<2x128xf32, #tpu.memory_space<vmem>>) attributes {dimension_semantics = [#tpu.dimension_semantics<parallel>], iteration_bounds = array<i64: 1>, scalar_prefetch = 0 : i64, scratch_operands = 0 : i64, tpu.core_type = #tpu.core_type<tc>, window_params = [{transform_indices = @transform_0, window_bounds = array<i64: 2, 12288>}, {pipeline_mode = #tpu.pipeline_mode<synchronous>, transform_indices = @transform_1, window_bounds = array<i64: 12288, 128>}, {pipeline_mode = #tpu.pipeline_mode<synchronous>, transform_indices = @transform_2, window_bounds = array<i64: 1, 128>}, {transform_indices = @transform_3, window_bounds = array<i64: 2, 128>}]} {
    %c0 = arith.constant 0 : index
    %c0_0 = arith.constant 0 : index
    %0 = vector.load %arg1[%c0, %c0_0] : memref<2x12288xf32, #tpu.memory_space<vmem>>, vector<2x12288xf32>
    %c0_1 = arith.constant 0 : index
    %c0_2 = arith.constant 0 : index
    %1 = vector.load %arg2[%c0_1, %c0_2] : memref<12288x128xf32, #tpu.memory_space<vmem>>, vector<12288x128xf32>
    %cst = arith.constant dense<0.000000e+00> : vector<2x128xf32>
    %2 = tpu.matmul %0, %1, %cst {dimension_numbers = #tpu.dot_dimension_numbers<[1], [0], [0], [1], [0, 0, 1, 1], [], []>} : vector<2x12288xf32>, vector<12288x128xf32>, vector<2x128xf32> -> vector<2x128xf32>
    %c0_3 = arith.constant 0 : index
    %c0_4 = arith.constant 0 : index
    %3 = vector.load %arg3[%c0_3, %c0_4] : memref<1x128xf32, #tpu.memory_space<vmem>>, vector<1x128xf32>
    %4 = vector.broadcast %3 : vector<1x128xf32> to vector<2x128xf32>
    %5 = arith.addf %2, %4 : vector<2x128xf32>
    %c0_5 = arith.constant 0 : index
    %c0_6 = arith.constant 0 : index
    %6 = vector.load %arg4[%c0_5, %c0_6] : memref<2x128xf32, #tpu.memory_space<vmem>>, vector<2x128xf32>
    tpu.vector_store %arg4[%c0_5, %c0_6], %5 {strides = array<i32>} : memref<2x128xf32, #tpu.memory_space<vmem>>, vector<2x128xf32>,
    return
  }
  func.func @transform_0(%arg0: i32) -> (i32, i32) {
    %c0_i32 = arith.constant 0 : i32
    %c0_i32_0 = arith.constant 0 : i32
    return %arg0, %c0_i32 : i32, i32
  }
  func.func @transform_1(%arg0: i32) -> (i32, i32) {
    %c0_i32 = arith.constant 0 : i32
    %c0_i32_0 = arith.constant 0 : i32
    %c0_i32_1 = arith.constant 0 : i32
    return %c0_i32, %c0_i32_0 : i32, i32
  }
  func.func @transform_2(%arg0: i32) -> (i32, i32) {
    %c0_i32 = arith.constant 0 : i32
    %c0_i32_0 = arith.constant 0 : i32
    %c0_i32_1 = arith.constant 0 : i32
    return %c0_i32, %c0_i32_0 : i32, i32
  }
  func.func @transform_3(%arg0: i32) -> (i32, i32) {
    %c0_i32 = arith.constant 0 : i32
    %c0_i32_0 = arith.constant 0 : i32
    return %arg0, %c0_i32 : i32, i32
  }
}

</mosaic_0001>

<llo_original>
// kernel: tpu_custom_call.1
$region0: #{tpu_custom_call.1}
  #allocation0 [shape = 'u32[]', space=smem, size = 0x4, offset = 0x4, fixed_abs, tag = 'smem constant byte address 0x4 - core index']
  #allocation1 [shape = 'u32[144,128]{1,0:T(1,128)}', space=vmem, size = 0x12000, scoped, tag = 'internal scratch']
  %s0 = inlined_call_operand.hbm [shape: f32[2,12288], index: 0, kind: input, shape index: {}]
  %s1 = inlined_call_operand.hbm [shape: f32[12288,128], index: 1, kind: input, shape index: {}]
  %s2 = inlined_call_operand.hbm [shape: f32[1,128], index: 2, kind: input, shape index: {}]
  %s3 = inlined_call_operand.hbm [shape: f32[2,128], index: 3, kind: output, shape index: {}]
  %s4 = sld [smem:[#allocation0]]
  $region34: #{tpu_custom_call.1} parent=0
    _
  %s6 = ssub.s32 1, %s4
  %s7 = scalar_select 0, %s6, %s4
  $region1: #{tpu_custom_call.1} parent=0
    #allocation2 [shape = 'u8[98304]{0}', space=vmem, size = 0x18000, scoped, tag = 'input window, operand 0, single buffered']
    #allocation3 [shape = 's32[1]{0}', space=sflag, size = 0x4, scoped, tag = 'scoped memory for tpu_custom_call.1']
    #allocation4 [shape = 's32[1]{0}', space=sflag, size = 0x4, scoped, tag = 'scoped memory for tpu_custom_call.1']
    #allocation5 [shape = 'u8[6291456]{0}', space=vmem, size = 0x600000, scoped, tag = 'input window, operand 1, single buffered']
    #allocation6 [shape = 's32[1]{0}', space=sflag, size = 0x4, scoped, tag = 'scoped memory for tpu_custom_call.1']
    #allocation7 [shape = 'u8[512]{0}', space=vmem, size = 0x400, scoped, tag = 'input window, operand 2, single buffered']
    #allocation8 [shape = 'u8[1024]{0}', space=vmem, size = 0x400, scoped, tag = 'output window, operand 0, single buffered']
    %8 = vsyncpa [#allocation3], 0
    %9 = vsyncpa [#allocation6], 0
    %10 = vsyncpa [#allocation4], 0
    // Predicated region
    $region2: #{tpu_custom_call.1} parent=1 // pred_check
      _
    $region3: #{tpu_custom_call.1} parent=1 // pred_check_branch
      %12 = sbr.rel (0) target = $region5
    $region4: #{tpu_custom_call.1} parent=1 // pred_region
      %s14 = ssub.s32 3072, 3072
      %15 = vsyncadd [#allocation3], %s14
      %s17 = sshll.u32 [#allocation2], 4
      %s18 = int_to_ptr.vmem [resolvable:$true] %s17
      %20 = dma.hbm_to_vmem [thread:$0]  %s0, 3072, %s18, [#allocation3]
    $region5: #{tpu_custom_call.1} parent=1 // pred_fallthru
      _
    // Predicated region
    $region6: #{tpu_custom_call.1} parent=1 // pred_check
      _
    $region7: #{tpu_custom_call.1} parent=1 // pred_check_branch
      %22 = sbr.rel (0) target = $region9
    $region8: #{tpu_custom_call.1} parent=1 // pred_region
      %s24 = ssub.s32 196608, 196608
      %25 = vsyncadd [#allocation6], %s24
      %s26 = sshll.u32 [#allocation5], 4
      %s27 = int_to_ptr.vmem [resolvable:$true] %s26
      %32 = dma.hbm_to_vmem [thread:$0]  %s1, 196608, %s27, [#allocation6], 128, 128, 8
    $region9: #{tpu_custom_call.1} parent=1 // pred_fallthru
      _
    // Predicated region
    $region10: #{tpu_custom_call.1} parent=1 // pred_check
      _
    $region11: #{tpu_custom_call.1} parent=1 // pred_check_branch
      %34 = sbr.rel (0) target = $region13
    $region12: #{tpu_custom_call.1} parent=1 // pred_region
      %s36 = ssub.s32 16, 16
      %37 = vsyncadd [#allocation6], %s36
      %s39 = sshll.u32 [#allocation7], 4
      %s40 = int_to_ptr.vmem [resolvable:$true] %s39
      %42 = dma.hbm_to_vmem [thread:$0]  %s2, 16, %s40, [#allocation6]
    $region13: #{tpu_custom_call.1} parent=1 // pred_fallthru
      _
    // Predicated region
    $region14: #{tpu_custom_call.1} parent=1 // pred_check
      _
    $region15: #{tpu_custom_call.1} parent=1 // pred_check_branch
      %44 = sbr.rel (0) target = $region17
    $region16: #{tpu_custom_call.1} parent=1 // pred_region
      %45 = dma.done [#allocation3], 3072
    $region17: #{tpu_custom_call.1} parent=1 // pred_fallthru
      _
    // Predicated region
    $region18: #{tpu_custom_call.1} parent=1 // pred_check
      _
    $region19: #{tpu_custom_call.1} parent=1 // pred_check_branch
      %47 = sbr.rel (0) target = $region21
    $region20: #{tpu_custom_call.1} parent=1 // pred_region
      %48 = dma.done [#allocation6], 196608
    $region21: #{tpu_custom_call.1} parent=1 // pred_fallthru
      _
    // Predicated region
    $region22: #{tpu_custom_call.1} parent=1 // pred_check
      _
    $region23: #{tpu_custom_call.1} parent=1 // pred_check_branch
      %50 = sbr.rel (0) target = $region25
    $region24: #{tpu_custom_call.1} parent=1 // pred_region
      %51 = dma.done [#allocation6], 16
    $region25: #{tpu_custom_call.1} parent=1 // pred_fallthru
      _
    %v52 = vld [vmem:[#allocation2] sm:$0xff]
    %v53 = vld [vmem:[#allocation2 + $0x8] sm:$0xff]
    %v54 = vld [vmem:[#allocation2 + $0x10] sm:$0xff]
    %v55 = vld [vmem:[#allocation2 + $0x18] sm:$0xff]
    %v56 = vld [vmem:[#allocation2 + $0x20] sm:$0xff]
    %v57 = vld [vmem:[#allocation2 + $0x28] sm:$0xff]
    %v58 = vld [vmem:[#allocation2 + $0x30] sm:$0xff]
    %v59 = vld [vmem:[#allocation2 + $0x38] sm:$0xff]
    %v60 = vld [vmem:[#allocation2 + $0x40] sm:$0xff]
    %v61 = vld [vmem:[#allocation2 + $0x48] sm:$0xff]
    %v62 = vld [vmem:[#allocation2 + $0x50] sm:$0xff]
    %v63 = vld [vmem:[#allocation2 + $0x58] sm:$0xff]
    %v64 = vld [vmem:[#allocation2 + $0x60] sm:$0xff]
    %v65 = vld [vmem:[#allocation2 + $0x68] sm:$0xff]
    %v66 = vld [vmem:[#allocation2 + $0x70] sm:$0xff]
    %v67 = vld [vmem:[#allocation2 + $0x78] sm:$0xff]
    %v68 = vld [vmem:[#allocation2 + $0x80] sm:$0xff]
    %v69 = vld [vmem:[#allocation2 + $0x88] sm:$0xff]
    %v70 = vld [vmem:[#allocation2 + $0x90] sm:$0xff]
    %v71 = vld [vmem:[#allocation2 + $0x98] sm:$0xff]
    %v72 = vld [vmem:[#allocation2 + $0xa0] sm:$0xff]
    %v73 = vld [vmem:[#allocation2 + $0xa8] sm:$0xff]
    %v74 = vld [vmem:[#allocation2 + $0xb0] sm:$0xff]
    %v75 = vld [vmem:[#allocation2 + $0xb8] sm:$0xff]
    %v76 = vld [vmem:[#allocation5] sm:$0xff]
    %v77 = vld [vmem:[#allocation5 + $0x8] sm:$0xff]
    %v78 = vld [vmem:[#allocation5 + $0x10] sm:$0xff]
    %v79 = vld [vmem:[#allocation5 + $0x18] sm:$0xff]
    %v80 = vld [vmem:[#allocation5 + $0x20] sm:$0xff]
    %v81 = vld [vmem:[#allocation5 + $0x28] sm:$0xff]
    %v82 = vld [vmem:[#allocation5 + $0x30] sm:$0xff]
    %v83 = vld [vmem:[#allocation5 + $0x38] sm:$0xff]
    %v84 = vld [vmem:[#allocation5 + $0x40] sm:$0xff]
    %v85 = vld [vmem:[#allocation5 + $0x48] sm:$0xff]
    %v86 = vld [vmem:[#allocation5 + $0x50] sm:$0xff]
    %v87 = vld [vmem:[#allocation5 + $0x58] sm:$0xff]
    %v88 = vld [vmem:[#allocation5 + $0x60] sm:$0xff]
    %v89 = vld [vmem:[#allocation5 + $0x68] sm:$0xff]
    %v90 = vld [vmem:[#allocation5 + $0x70] sm:$0xff]
    %v91 = vld [vmem:[#allocation5 + $0x78] sm:$0xff]
    %v92 = vld [vmem:[#allocation5 + $0x80] sm:$0xff]
    %v93 = vld [vmem:[#allocation5 + $0x88] sm:$0xff]
    %v94 = vld [vmem:[#allocation5 + $0x90] sm:$0xff]
    %v95 = vld [vmem:[#allocation5 + $0x98] sm:$0xff]
    %v96 = vld [vmem:[#allocation5 + $0xa0] sm:$0xff]
    %v97 = vld [vmem:[#allocation5 + $0xa8] sm:$0xff]
    %v98 = vld [vmem:[#allocation5 + $0xb0] sm:$0xff]
    %v99 = vld [vmem:[#allocation5 + $0xb8] sm:$0xff]
    %v100 = vld [vmem:[#allocation5 + $0xc0] sm:$0xff]
    %v101 = vld [vmem:[#allocation5 + $0xc8] sm:$0xff]
    %v102 = vld [vmem:[#allocation5 + $0xd0] sm:$0xff]
    %v103 = vld [vmem:[#allocation5 + $0xd8] sm:$0xff]
    %v104 = vld [vmem:[#allocation5 + $0xe0] sm:$0xff]
    %v105 = vld [vmem:[#allocation5 + $0xe8] sm:$0xff]
    %v106 = vld [vmem:[#allocation5 + $0xf0] sm:$0xff]
    %v107 = vld [vmem:[#allocation5 + $0xf8] sm:$0xff]
    %v108 = vld [vmem:[#allocation5 + $0x100] sm:$0xff]
    %v109 = vld [vmem:[#allocation5 + $0x108] sm:$0xff]
    %v110 = vld [vmem:[#allocation5 + $0x110] sm:$0xff]
    %v111 = vld [vmem:[#allocation5 + $0x118] sm:$0xff]
    %v112 = vld [vmem:[#allocation5 + $0x120] sm:$0xff]
    %v113 = vld [vmem:[#allocation5 + $0x128] sm:$0xff]
    %v114 = vld [vmem:[#allocation5 + $0x130] sm:$0xff]
    %v115 = vld [vmem:[#allocation5 + $0x138] sm:$0xff]
    %v116 = vld [vmem:[#allocation5 + $0x140] sm:$0xff]
    %v117 = vld [vmem:[#allocation5 + $0x148] sm:$0xff]
    %v118 = vld [vmem:[#allocation5 + $0x150] sm:$0xff]
    %v119 = vld [vmem:[#allocation5 + $0x158] sm:$0xff]
    %v120 = vld [vmem:[#allocation5 + $0x160] sm:$0xff]
    %v121 = vld [vmem:[#allocation5 + $0x168] sm:$0xff]
    %v122 = vld [vmem:[#allocation5 + $0x170] sm:$0xff]
    %v123 = vld [vmem:[#allocation5 + $0x178] sm:$0xff]
    %v124 = vld [vmem:[#allocation5 + $0x180] sm:$0xff]
    %v125 = vld [vmem:[#allocation5 + $0x188] sm:$0xff]
    %v126 = vld [vmem:[#allocation5 + $0x190] sm:$0xff]
    %v127 = vld [vmem:[#allocation5 + $0x198] sm:$0xff]
    %v128 = vld [vmem:[#allocation5 + $0x1a0] sm:$0xff]
    %v129 = vld [vmem:[#allocation5 + $0x1a8] sm:$0xff]
    %v130 = vld [vmem:[#allocation5 + $0x1b0] sm:$0xff]
    %v131 = vld [vmem:[#allocation5 + $0x1b8] sm:$0xff]
    %v132 = vld [vmem:[#allocation5 + $0x1c0] sm:$0xff]
    %v133 = vld [vmem:[#allocation5 + $0x1c8] sm:$0xff]
    %v134 = vld [vmem:[#allocation5 + $0x1d0] sm:$0xff]
    %v135 = vld [vmem:[#allocation5 + $0x1d8] sm:$0xff]
    %v136 = vld [vmem:[#allocation5 + $0x1e0] sm:$0xff]
    %v137 = vld [vmem:[#allocation5 + $0x1e8] sm:$0xff]
    %v138 = vld [vmem:[#allocation5 + $0x1f0] sm:$0xff]
    %v139 = vld [vmem:[#allocation5 + $0x1f8] sm:$0xff]
    %v140 = vld [vmem:[#allocation5 + $0x200] sm:$0xff]
    %v141 = vld [vmem:[#allocation5 + $0x208] sm:$0xff]
    %v142 = vld [vmem:[#allocation5 + $0x210] sm:$0xff]
    %v143 = vld [vmem:[#allocation5 + $0x218] sm:$0xff]
    %v144 = vld [vmem:[#allocation5 + $0x220] sm:$0xff]
    %v145 = vld [vmem:[#allocation5 + $0x228] sm:$0xff]
    %v146 = vld [vmem:[#allocation5 + $0x230] sm:$0xff]
    %v147 = vld [vmem:[#allocation5 + $0x238] sm:$0xff]
    %v148 = vld [vmem:[#allocation5 + $0x240] sm:$0xff]
    %v149 = vld [vmem:[#allocation5 + $0x248] sm:$0xff]
    %v150 = vld [vmem:[#allocation5 + $0x250] sm:$0xff]
    %v151 = vld [vmem:[#allocation5 + $0x258] sm:$0xff]
    %v152 = vld [vmem:[#allocation5 + $0x260] sm:$0xff]
    %v153 = vld [vmem:[#allocation5 + $0x268] sm:$0xff]
    %v154 = vld [vmem:[#allocation5 + $0x270] sm:$0xff]
    %v155 = vld [vmem:[#allocation5 + $0x278] sm:$0xff]
    %v156 = vld [vmem:[#allocation5 + $0x280] sm:$0xff]
    %v157 = vld [vmem:[#allocation5 + $0x288] sm:$0xff]
    %v158 = vld [vmem:[#allocation5 + $0x290] sm:$0xff]
    %v159 = vld [vmem:[#allocation5 + $0x298] sm:$0xff]
    %v160 = vld [vmem:[#allocation5 + $0x2a0] sm:$0xff]
    %v161 = vld [vmem:[#allocation5 + $0x2a8] sm:$0xff]
    %v162 = vld [vmem:[#allocation5 + $0x2b0] sm:$0xff]
    %v163 = vld [vmem:[#allocation5 + $0x2b8] sm:$0xff]
    %v164 = vld [vmem:[#allocation5 + $0x2c0] sm:$0xff]
    %v165 = vld [vmem:[#allocation5 + $0x2c8] sm:$0xff]
    %v166 = vld [vmem:[#allocation5 + $0x2d0] sm:$0xff]
    %v167 = vld [vmem:[#allocation5 + $0x2d8] sm:$0xff]
    %v168 = vld [vmem:[#allocation5 + $0x2e0] sm:$0xff]
    %v169 = vld [vmem:[#allocation5 + $0x2e8] sm:$0xff]
    %v170 = vld [vmem:[#allocation5 + $0x2f0] sm:$0xff]
    %v171 = vld [vmem:[#allocation5 + $0x2f8] sm:$0xff]
    %v172 = vld [vmem:[#allocation5 + $0x300] sm:$0xff]
    %v173 = vld [vmem:[#allocation5 + $0x308] sm:$0xff]
    %v174 = vld [vmem:[#allocation5 + $0x310] sm:$0xff]
    %v175 = vld [vmem:[#allocation5 + $0x318] sm:$0xff]
    %v176 = vld [vmem:[#allocation5 + $0x320] sm:$0xff]
    %v177 = vld [vmem:[#allocation5 + $0x328] sm:$0xff]
    %v178 = vld [vmem:[#allocation5 + $0x330] sm:$0xff]
    %v179 = vld [vmem:[#allocation5 + $0x338] sm:$0xff]
    %v180 = vld [vmem:[#allocation5 + $0x340] sm:$0xff]
    %v181 = vld [vmem:[#allocation5 + $0x348] sm:$0xff]
    %v182 = vld [vmem:[#allocation5 + $0x350] sm:$0xff]
    %v183 = vld [vmem:[#allocation5 + $0x358] sm:$0xff]
    %v184 = vld [vmem:[#allocation5 + $0x360] sm:$0xff]
    %v185 = vld [vmem:[#allocation5 + $0x368] sm:$0xff]
    %v186 = vld [vmem:[#allocation5 + $0x370] sm:$0xff]
    %v187 = vld [vmem:[#allocation5 + $0x378] sm:$0xff]
    %v188 = vld [vmem:[#allocation5 + $0x380] sm:$0xff]
    %v189 = vld [vmem:[#allocation5 + $0x388] sm:$0xff]
    %v190 = vld [vmem:[#allocation5 + $0x390] sm:$0xff]
    %v191 = vld [vmem:[#allocation5 + $0x398] sm:$0xff]
    %v192 = vld [vmem:[#allocation5 + $0x3a0] sm:$0xff]
    %v193 = vld [vmem:[#allocation5 + $0x3a8] sm:$0xff]
    %v194 = vld [vmem:[#allocation5 + $0x3b0] sm:$0xff]
    %v195 = vld [vmem:[#allocation5 + $0x3b8] sm:$0xff]
    %v196 = vld [vmem:[#allocation5 + $0x3c0] sm:$0xff]
    %v197 = vld [vmem:[#allocation5 + $0x3c8] sm:$0xff]
    %v198 = vld [vmem:[#allocation5 + $0x3d0] sm:$0xff]
    %v199 = vld [vmem:[#allocation5 + $0x3d8] sm:$0xff]
    %v200 = vld [vmem:[#allocation5 + $0x3e0] sm:$0xff]
    %v201 = vld [vmem:[#allocation5 + $0x3e8] sm:$0xff]
    %v202 = vld [vmem:[#allocation5 + $0x3f0] sm:$0xff]
    %v203 = vld [vmem:[#allocation5 + $0x3f8] sm:$0xff]
    %v204 = vld [vmem:[#allocation5 + $0x400] sm:$0xff]
    %v205 = vld [vmem:[#allocation5 + $0x408] sm:$0xff]
    %v206 = vld [vmem:[#allocation5 + $0x410] sm:$0xff]
    %v207 = vld [vmem:[#allocation5 + $0x418] sm:$0xff]
    %v208 = vld [vmem:[#allocation5 + $0x420] sm:$0xff]
    %v209 = vld [vmem:[#allocation5 + $0x428] sm:$0xff]
    %v210 = vld [vmem:[#allocation5 + $0x430] sm:$0xff]
    %v211 = vld [vmem:[#allocation5 + $0x438] sm:$0xff]
    %v212 = vld [vmem:[#allocation5 + $0x440] sm:$0xff]
    %v213 = vld [vmem:[#allocation5 + $0x448] sm:$0xff]
    %v214 = vld [vmem:[#allocation5 + $0x450] sm:$0xff]
    %v215 = vld [vmem:[#allocation5 + $0x458] sm:$0xff]
    %v216 = vld [vmem:[#allocation5 + $0x460] sm:$0xff]
    %v217 = vld [vmem:[#allocation5 + $0x468] sm:$0xff]
    %v218 = vld [vmem:[#allocation5 + $0x470] sm:$0xff]
    %v219 = vld [vmem:[#allocation5 + $0x478] sm:$0xff]
    %v220 = vld [vmem:[#allocation5 + $0x480] sm:$0xff]
    %v221 = vld [vmem:[#allocation5 + $0x488] sm:$0xff]
    %v222 = vld [vmem:[#allocation5 + $0x490] sm:$0xff]
    %v223 = vld [vmem:[#allocation5 + $0x498] sm:$0xff]
    %v224 = vld [vmem:[#allocation5 + $0x4a0] sm:$0xff]
    %v225 = vld [vmem:[#allocation5 + $0x4a8] sm:$0xff]
    %v226 = vld [vmem:[#allocation5 + $0x4b0] sm:$0xff]
    %v227 = vld [vmem:[#allocation5 + $0x4b8] sm:$0xff]
    %v228 = vld [vmem:[#allocation5 + $0x4c0] sm:$0xff]
    %v229 = vld [vmem:[#allocation5 + $0x4c8] sm:$0xff]
    %v230 = vld [vmem:[#allocation5 + $0x4d0] sm:$0xff]
    %v231 = vld [vmem:[#allocation5 + $0x4d8] sm:$0xff]
    %v232 = vld [vmem:[#allocation5 + $0x4e0] sm:$0xff]
    %v233 = vld [vmem:[#allocation5 + $0x4e8] sm:$0xff]
    %v234 = vld [vmem:[#allocation5 + $0x4f0] sm:$0xff]
    %v235 = vld [vmem:[#allocation5 + $0x4f8] sm:$0xff]
    %v236 = vld [vmem:[#allocation5 + $0x500] sm:$0xff]
    %v237 = vld [vmem:[#allocation5 + $0x508] sm:$0xff]
    %v238 = vld [vmem:[#allocation5 + $0x510] sm:$0xff]
    %v239 = vld [vmem:[#allocation5 + $0x518] sm:$0xff]
    %v240 = vld [vmem:[#allocation5 + $0x520] sm:$0xff]
    %v241 = vld [vmem:[#allocation5 + $0x528] sm:$0xff]
    %v242 = vld [vmem:[#allocation5 + $0x530] sm:$0xff]
    %v243 = vld [vmem:[#allocation5 + $0x538] sm:$0xff]
    %v244 = vld [vmem:[#allocation5 + $0x540] sm:$0xff]
    %v245 = vld [vmem:[#allocation5 + $0x548] sm:$0xff]
    %v246 = vld [vmem:[#allocation5 + $0x550] sm:$0xff]
    %v247 = vld [vmem:[#allocation5 + $0x558] sm:$0xff]
    %v248 = vld [vmem:[#allocation5 + $0x560] sm:$0xff]
    %v249 = vld [vmem:[#allocation5 + $0x568] sm:$0xff]
    %v250 = vld [vmem:[#allocation5 + $0x570] sm:$0xff]
    %v251 = vld [vmem:[#allocation5 + $0x578] sm:$0xff]
    %v252 = vld [vmem:[#allocation5 + $0x580] sm:$0xff]
    %v253 = vld [vmem:[#allocation5 + $0x588] sm:$0xff]
    %v254 = vld [vmem:[#allocation5 + $0x590] sm:$0xff]
    %v255 = vld [vmem:[#allocation5 + $0x598] sm:$0xff]
    %v256 = vld [vmem:[#allocation5 + $0x5a0] sm:$0xff]
    %v257 = vld [vmem:[#allocation5 + $0x5a8] sm:$0xff]
    %v258 = vld [vmem:[#allocation5 + $0x5b0] sm:$0xff]
    %v259 = vld [vmem:[#allocation5 + $0x5b8] sm:$0xff]
    %v260 = vld [vmem:[#allocation5 + $0x5c0] sm:$0xff]
    %v261 = vld [vmem:[#allocation5 + $0x5c8] sm:$0xff]
    %v262 = vld [vmem:[#allocation5 + $0x5d0] sm:$0xff]
    %v263 = vld [vmem:[#allocation5 + $0x5d8] sm:$0xff]
    %v264 = vld [vmem:[#allocation5 + $0x5e0] sm:$0xff]
    %v265 = vld [vmem:[#allocation5 + $0x5e8] sm:$0xff]
    %v266 = vld [vmem:[#allocation5 + $0x5f0] sm:$0xff]
    %v267 = vld [vmem:[#allocation5 + $0x5f8] sm:$0xff]
    %v268 = vld [vmem:[#allocation5 + $0x600] sm:$0xff]
    %v269 = vld [vmem:[#allocation5 + $0x608] sm:$0xff]
    %v270 = vld [vmem:[#allocation5 + $0x610] sm:$0xff]
    %v271 = vld [vmem:[#allocation5 + $0x618] sm:$0xff]
    %v272 = vld [vmem:[#allocation5 + $0x620] sm:$0xff]
    %v273 = vld [vmem:[#allocation5 + $0x628] sm:$0xff]
    %v274 = vld [vmem:[#allocation5 + $0x630] sm:$0xff]
    %v275 = vld [vmem:[#allocation5 + $0x638] sm:$0xff]
    %v276 = vld [vmem:[#allocation5 + $0x640] sm:$0xff]
    %v277 = vld [vmem:[#allocation5 + $0x648] sm:$0xff]
    %v278 = vld [vmem:[#allocation5 + $0x650] sm:$0xff]
    %v279 = vld [vmem:[#allocation5 + $0x658] sm:$0xff]
    %v280 = vld [vmem:[#allocation5 + $0x660] sm:$0xff]
    %v281 = vld [vmem:[#allocation5 + $0x668] sm:$0xff]
    %v282 = vld [vmem:[#allocation5 + $0x670] sm:$0xff]
    %v283 = vld [vmem:[#allocation5 + $0x678] sm:$0xff]
    %v284 = vld [vmem:[#allocation5 + $0x680] sm:$0xff]
    %v285 = vld [vmem:[#allocation5 + $0x688] sm:$0xff]
    %v286 = vld [vmem:[#allocation5 + $0x690] sm:$0xff]
    %v287 = vld [vmem:[#allocation5 + $0x698] sm:$0xff]
    %v288 = vld [vmem:[#allocation5 + $0x6a0] sm:$0xff]
    %v289 = vld [vmem:[#allocation5 + $0x6a8] sm:$0xff]
    %v290 = vld [vmem:[#allocation5 + $0x6b0] sm:$0xff]
    %v291 = vld [vmem:[#allocation5 + $0x6b8] sm:$0xff]
    %v292 = vld [vmem:[#allocation5 + $0x6c0] sm:$0xff]
    %v293 = vld [vmem:[#allocation5 + $0x6c8] sm:$0xff]
    %v294 = vld [vmem:[#allocation5 + $0x6d0] sm:$0xff]
    %v295 = vld [vmem:[#allocation5 + $0x6d8] sm:$0xff]
    %v296 = vld [vmem:[#allocation5 + $0x6e0] sm:$0xff]
    %v297 = vld [vmem:[#allocation5 + $0x6e8] sm:$0xff]
    %v298 = vld [vmem:[#allocation5 + $0x6f0] sm:$0xff]
    %v299 = vld [vmem:[#allocation5 + $0x6f8] sm:$0xff]
    %v300 = vld [vmem:[#allocation5 + $0x700] sm:$0xff]
    %v301 = vld [vmem:[#allocation5 + $0x708] sm:$0xff]
    %v302 = vld [vmem:[#allocation5 + $0x710] sm:$0xff]
    %v303 = vld [vmem:[#allocation5 + $0x718] sm:$0xff]
    %v304 = vld [vmem:[#allocation5 + $0x720] sm:$0xff]
    %v305 = vld [vmem:[#allocation5 + $0x728] sm:$0xff]
    %v306 = vld [vmem:[#allocation5 + $0x730] sm:$0xff]
    %v307 = vld [vmem:[#allocation5 + $0x738] sm:$0xff]
    %v308 = vld [vmem:[#allocation5 + $0x740] sm:$0xff]
    %v309 = vld [vmem:[#allocation5 + $0x748] sm:$0xff]
    %v310 = vld [vmem:[#allocation5 + $0x750] sm:$0xff]
    %v311 = vld [vmem:[#allocation5 + $0x758] sm:$0xff]
    %v312 = vld [vmem:[#allocation5 + $0x760] sm:$0xff]
    %v313 = vld [vmem:[#allocation5 + $0x768] sm:$0xff]
    %v314 = vld [vmem:[#allocation5 + $0x770] sm:$0xff]
    %v315 = vld [vmem:[#allocation5 + $0x778] sm:$0xff]
    %v316 = vld [vmem:[#allocation5 + $0x780] sm:$0xff]
    %v317 = vld [vmem:[#allocation5 + $0x788] sm:$0xff]
    %v318 = vld [vmem:[#allocation5 + $0x790] sm:$0xff]
    %v319 = vld [vmem:[#allocation5 + $0x798] sm:$0xff]
    %v320 = vld [vmem:[#allocation5 + $0x7a0] sm:$0xff]
    %v321 = vld [vmem:[#allocation5 + $0x7a8] sm:$0xff]
    %v322 = vld [vmem:[#allocation5 + $0x7b0] sm:$0xff]
    %v323 = vld [vmem:[#allocation5 + $0x7b8] sm:$0xff]
    %v324 = vld [vmem:[#allocation5 + $0x7c0] sm:$0xff]
    %v325 = vld [vmem:[#allocation5 + $0x7c8] sm:$0xff]
    %v326 = vld [vmem:[#allocation5 + $0x7d0] sm:$0xff]
    %v327 = vld [vmem:[#allocation5 + $0x7d8] sm:$0xff]
    %v328 = vld [vmem:[#allocation5 + $0x7e0] sm:$0xff]
    %v329 = vld [vmem:[#allocation5 + $0x7e8] sm:$0xff]
    %v330 = vld [vmem:[#allocation5 + $0x7f0] sm:$0xff]
    %v331 = vld [vmem:[#allocation5 + $0x7f8] sm:$0xff]
    %v332 = vld [vmem:[#allocation5 + $0x800] sm:$0xff]
    %v333 = vld [vmem:[#allocation5 + $0x808] sm:$0xff]
    %v334 = vld [vmem:[#allocation5 + $0x810] sm:$0xff]
    %v335 = vld [vmem:[#allocation5 + $0x818] sm:$0xff]
    %v336 = vld [vmem:[#allocation5 + $0x820] sm:$0xff]
    %v337 = vld [vmem:[#allocation5 + $0x828] sm:$0xff]
    %v338 = vld [vmem:[#allocation5 + $0x830] sm:$0xff]
    %v339 = vld [vmem:[#allocation5 + $0x838] sm:$0xff]
    %v340 = vld [vmem:[#allocation5 + $0x840] sm:$0xff]
    %v341 = vld [vmem:[#allocation5 + $0x848] sm:$0xff]
    %v342 = vld [vmem:[#allocation5 + $0x850] sm:$0xff]
    %v343 = vld [vmem:[#allocation5 + $0x858] sm:$0xff]
    %v344 = vld [vmem:[#allocation5 + $0x860] sm:$0xff]
    %v345 = vld [vmem:[#allocation5 + $0x868] sm:$0xff]
    %v346 = vld [vmem:[#allocation5 + $0x870] sm:$0xff]
    %v347 = vld [vmem:[#allocation5 + $0x878] sm:$0xff]
    %v348 = vld [vmem:[#allocation5 + $0x880] sm:$0xff]
    %v349 = vld [vmem:[#allocation5 + $0x888] sm:$0xff]
    %v350 = vld [vmem:[#allocation5 + $0x890] sm:$0xff]
    %v351 = vld [vmem:[#allocation5 + $0x898] sm:$0xff]
    %v352 = vld [vmem:[#allocation5 + $0x8a0] sm:$0xff]
    %v353 = vld [vmem:[#allocation5 + $0x8a8] sm:$0xff]
    %v354 = vld [vmem:[#allocation5 + $0x8b0] sm:$0xff]
    %v355 = vld [vmem:[#allocation5 + $0x8b8] sm:$0xff]
    %v356 = vld [vmem:[#allocation5 + $0x8c0] sm:$0xff]
    %v357 = vld [vmem:[#allocation5 + $0x8c8] sm:$0xff]
    %v358 = vld [vmem:[#allocation5 + $0x8d0] sm:$0xff]
    %v359 = vld [vmem:[#allocation5 + $0x8d8] sm:$0xff]
    %v360 = vld [vmem:[#allocation5 + $0x8e0] sm:$0xff]
    %v361 = vld [vmem:[#allocation5 + $0x8e8] sm:$0xff]
    %v362 = vld [vmem:[#allocation5 + $0x8f0] sm:$0xff]
    %v363 = vld [vmem:[#allocation5 + $0x8f8] sm:$0xff]
    %v364 = vld [vmem:[#allocation5 + $0x900] sm:$0xff]
    %v365 = vld [vmem:[#allocation5 + $0x908] sm:$0xff]
    %v366 = vld [vmem:[#allocation5 + $0x910] sm:$0xff]
    %v367 = vld [vmem:[#allocation5 + $0x918] sm:$0xff]
    %v368 = vld [vmem:[#allocation5 + $0x920] sm:$0xff]
    %v369 = vld [vmem:[#allocation5 + $0x928] sm:$0xff]
    %v370 = vld [vmem:[#allocation5 + $0x930] sm:$0xff]
    %v371 = vld [vmem:[#allocation5 + $0x938] sm:$0xff]
    %v372 = vld [vmem:[#allocation5 + $0x940] sm:$0xff]
    %v373 = vld [vmem:[#allocation5 + $0x948] sm:$0xff]
    %v374 = vld [vmem:[#allocation5 + $0x950] sm:$0xff]
    %v375 = vld [vmem:[#allocation5 + $0x958] sm:$0xff]
    %v376 = vld [vmem:[#allocation5 + $0x960] sm:$0xff]
    %v377 = vld [vmem:[#allocation5 + $0x968] sm:$0xff]
    %v378 = vld [vmem:[#allocation5 + $0x970] sm:$0xff]
    %v379 = vld [vmem:[#allocation5 + $0x978] sm:$0xff]
    %v380 = vld [vmem:[#allocation5 + $0x980] sm:$0xff]
    %v381 = vld [vmem:[#allocation5 + $0x988] sm:$0xff]
    %v382 = vld [vmem:[#allocation5 + $0x990] sm:$0xff]
    %v383 = vld [vmem:[#allocation5 + $0x998] sm:$0xff]
    %v384 = vld [vmem:[#allocation5 + $0x9a0] sm:$0xff]
    %v385 = vld [vmem:[#allocation5 + $0x9a8] sm:$0xff]
    %v386 = vld [vmem:[#allocation5 + $0x9b0] sm:$0xff]
    %v387 = vld [vmem:[#allocation5 + $0x9b8] sm:$0xff]
    %v388 = vld [vmem:[#allocation5 + $0x9c0] sm:$0xff]
    %v389 = vld [vmem:[#allocation5 + $0x9c8] sm:$0xff]
    %v390 = vld [vmem:[#allocation5 + $0x9d0] sm:$0xff]
    %v391 = vld [vmem:[#allocation5 + $0x9d8] sm:$0xff]
    %v392 = vld [vmem:[#allocation5 + $0x9e0] sm:$0xff]
    %v393 = vld [vmem:[#allocation5 + $0x9e8] sm:$0xff]
    %v394 = vld [vmem:[#allocation5 + $0x9f0] sm:$0xff]
    %v395 = vld [vmem:[#allocation5 + $0x9f8] sm:$0xff]
    %v396 = vld [vmem:[#allocation5 + $0xa00] sm:$0xff]
    %v397 = vld [vmem:[#allocation5 + $0xa08] sm:$0xff]
    %v398 = vld [vmem:[#allocation5 + $0xa10] sm:$0xff]
    %v399 = vld [vmem:[#allocation5 + $0xa18] sm:$0xff]
    %v400 = vld [vmem:[#allocation5 + $0xa20] sm:$0xff]
    %v401 = vld [vmem:[#allocation5 + $0xa28] sm:$0xff]
    %v402 = vld [vmem:[#allocation5 + $0xa30] sm:$0xff]
    %v403 = vld [vmem:[#allocation5 + $0xa38] sm:$0xff]
    %v404 = vld [vmem:[#allocation5 + $0xa40] sm:$0xff]
    %v405 = vld [vmem:[#allocation5 + $0xa48] sm:$0xff]
    %v406 = vld [vmem:[#allocation5 + $0xa50] sm:$0xff]
    %v407 = vld [vmem:[#allocation5 + $0xa58] sm:$0xff]
    %v408 = vld [vmem:[#allocation5 + $0xa60] sm:$0xff]
    %v409 = vld [vmem:[#allocation5 + $0xa68] sm:$0xff]
    %v410 = vld [vmem:[#allocation5 + $0xa70] sm:$0xff]
    %v411 = vld [vmem:[#allocation5 + $0xa78] sm:$0xff]
    %v412 = vld [vmem:[#allocation5 + $0xa80] sm:$0xff]
    %v413 = vld [vmem:[#allocation5 + $0xa88] sm:$0xff]
    %v414 = vld [vmem:[#allocation5 + $0xa90] sm:$0xff]
    %v415 = vld [vmem:[#allocation5 + $0xa98] sm:$0xff]
    %v416 = vld [vmem:[#allocation5 + $0xaa0] sm:$0xff]
    %v417 = vld [vmem:[#allocation5 + $0xaa8] sm:$0xff]
    %v418 = vld [vmem:[#allocation5 + $0xab0] sm:$0xff]
    %v419 = vld [vmem:[#allocation5 + $0xab8] sm:$0xff]
    %v420 = vld [vmem:[#allocation5 + $0xac0] sm:$0xff]
    %v421 = vld [vmem:[#allocation5 + $0xac8] sm:$0xff]
    %v422 = vld [vmem:[#allocation5 + $0xad0] sm:$0xff]
    %v423 = vld [vmem:[#allocation5 + $0xad8] sm:$0xff]
    %v424 = vld [vmem:[#allocation5 + $0xae0] sm:$0xff]
    %v425 = vld [vmem:[#allocation5 + $0xae8] sm:$0xff]
    %v426 = vld [vmem:[#allocation5 + $0xaf0] sm:$0xff]
    %v427 = vld [vmem:[#allocation5 + $0xaf8] sm:$0xff]
    %v428 = vld [vmem:[#allocation5 + $0xb00] sm:$0xff]
    %v429 = vld [vmem:[#allocation5 + $0xb08] sm:$0xff]
    %v430 = vld [vmem:[#allocation5 + $0xb10] sm:$0xff]
    %v431 = vld [vmem:[#allocation5 + $0xb18] sm:$0xff]
    %v432 = vld [vmem:[#allocation5 + $0xb20] sm:$0xff]
    %v433 = vld [vmem:[#allocation5 + $0xb28] sm:$0xff]
    %v434 = vld [vmem:[#allocation5 + $0xb30] sm:$0xff]
    %v435 = vld [vmem:[#allocation5 + $0xb38] sm:$0xff]
    %v436 = vld [vmem:[#allocation5 + $0xb40] sm:$0xff]
    %v437 = vld [vmem:[#allocation5 + $0xb48] sm:$0xff]
    %v438 = vld [vmem:[#allocation5 + $0xb50] sm:$0xff]
    %v439 = vld [vmem:[#allocation5 + $0xb58] sm:$0xff]
    %v440 = vld [vmem:[#allocation5 + $0xb60] sm:$0xff]
    %v441 = vld [vmem:[#allocation5 + $0xb68] sm:$0xff]
    %v442 = vld [vmem:[#allocation5 + $0xb70] sm:$0xff]
    %v443 = vld [vmem:[#allocation5 + $0xb78] sm:$0xff]
    %v444 = vld [vmem:[#allocation5 + $0xb80] sm:$0xff]
    %v445 = vld [vmem:[#allocation5 + $0xb88] sm:$0xff]
    %v446 = vld [vmem:[#allocation5 + $0xb90] sm:$0xff]
    %v447 = vld [vmem:[#allocation5 + $0xb98] sm:$0xff]
    %v448 = vld [vmem:[#allocation5 + $0xba0] sm:$0xff]
    %v449 = vld [vmem:[#allocation5 + $0xba8] sm:$0xff]
    %v450 = vld [vmem:[#allocation5 + $0xbb0] sm:$0xff]
    %v451 = vld [vmem:[#allocation5 + $0xbb8] sm:$0xff]
    %v452 = vld [vmem:[#allocation5 + $0xbc0] sm:$0xff]
    %v453 = vld [vmem:[#allocation5 + $0xbc8] sm:$0xff]
    %v454 = vld [vmem:[#allocation5 + $0xbd0] sm:$0xff]
    %v455 = vld [vmem:[#allocation5 + $0xbd8] sm:$0xff]
    %v456 = vld [vmem:[#allocation5 + $0xbe0] sm:$0xff]
    %v457 = vld [vmem:[#allocation5 + $0xbe8] sm:$0xff]
    %v458 = vld [vmem:[#allocation5 + $0xbf0] sm:$0xff]
    %v459 = vld [vmem:[#allocation5 + $0xbf8] sm:$0xff]
    %v460 = vld [vmem:[#allocation5 + $0xc00] sm:$0xff]
    %v461 = vld [vmem:[#allocation5 + $0xc08] sm:$0xff]
    %v462 = vld [vmem:[#allocation5 + $0xc10] sm:$0xff]
    %v463 = vld [vmem:[#allocation5 + $0xc18] sm:$0xff]
    %v464 = vld [vmem:[#allocation5 + $0xc20] sm:$0xff]
    %v465 = vld [vmem:[#allocation5 + $0xc28] sm:$0xff]
    %v466 = vld [vmem:[#allocation5 + $0xc30] sm:$0xff]
    %v467 = vld [vmem:[#allocation5 + $0xc38] sm:$0xff]
    %v468 = vld [vmem:[#allocation5 + $0xc40] sm:$0xff]
    %v469 = vld [vmem:[#allocation5 + $0xc48] sm:$0xff]
    %v470 = vld [vmem:[#allocation5 + $0xc50] sm:$0xff]
    %v471 = vld [vmem:[#allocation5 + $0xc58] sm:$0xff]
    %v472 = vld [vmem:[#allocation5 + $0xc60] sm:$0xff]
    %v473 = vld [vmem:[#allocation5 + $0xc68] sm:$0xff]
    %v474 = vld [vmem:[#allocation5 + $0xc70] sm:$0xff]
    %v475 = vld [vmem:[#allocation5 + $0xc78] sm:$0xff]
    %v476 = vld [vmem:[#allocation5 + $0xc80] sm:$0xff]
    %v477 = vld [vmem:[#allocation5 + $0xc88] sm:$0xff]
    %v478 = vld [vmem:[#allocation5 + $0xc90] sm:$0xff]
    %v479 = vld [vmem:[#allocation5 + $0xc98] sm:$0xff]
    %v480 = vld [vmem:[#allocation5 + $0xca0] sm:$0xff]
    %v481 = vld [vmem:[#allocation5 + $0xca8] sm:$0xff]
    %v482 = vld [vmem:[#allocation5 + $0xcb0] sm:$0xff]
    %v483 = vld [vmem:[#allocation5 + $0xcb8] sm:$0xff]
    %v484 = vld [vmem:[#allocation5 + $0xcc0] sm:$0xff]
    %v485 = vld [vmem:[#allocation5 + $0xcc8] sm:$0xff]
    %v486 = vld [vmem:[#allocation5 + $0xcd0] sm:$0xff]
    %v487 = vld [vmem:[#allocation5 + $0xcd8] sm:$0xff]
    %v488 = vld [vmem:[#allocation5 + $0xce0] sm:$0xff]
    %v489 = vld [vmem:[#allocation5 + $0xce8] sm:$0xff]
    %v490 = vld [vmem:[#allocation5 + $0xcf0] sm:$0xff]
    %v491 = vld [vmem:[#allocation5 + $0xcf8] sm:$0xff]
    %v492 = vld [vmem:[#allocation5 + $0xd00] sm:$0xff]
    %v493 = vld [vmem:[#allocation5 + $0xd08] sm:$0xff]
    %v494 = vld [vmem:[#allocation5 + $0xd10] sm:$0xff]
    %v495 = vld [vmem:[#allocation5 + $0xd18] sm:$0xff]
    %v496 = vld [vmem:[#allocation5 + $0xd20] sm:$0xff]
    %v497 = vld [vmem:[#allocation5 + $0xd28] sm:$0xff]
    %v498 = vld [vmem:[#allocation5 + $0xd30] sm:$0xff]
    %v499 = vld [vmem:[#allocation5 + $0xd38] sm:$0xff]
    %v500 = vld [vmem:[#allocation5 + $0xd40] sm:$0xff]
    %v501 = vld [vmem:[#allocation5 + $0xd48] sm:$0xff]
    %v502 = vld [vmem:[#allocation5 + $0xd50] sm:$0xff]
    %v503 = vld [vmem:[#allocation5 + $0xd58] sm:$0xff]
    %v504 = vld [vmem:[#allocation5 + $0xd60] sm:$0xff]
    %v505 = vld [vmem:[#allocation5 + $0xd68] sm:$0xff]
    %v506 = vld [vmem:[#allocation5 + $0xd70] sm:$0xff]
    %v507 = vld [vmem:[#allocation5 + $0xd78] sm:$0xff]
    %v508 = vld [vmem:[#allocation5 + $0xd80] sm:$0xff]
    %v509 = vld [vmem:[#allocation5 + $0xd88] sm:$0xff]
    %v510 = vld [vmem:[#allocation5 + $0xd90] sm:$0xff]
    %v511 = vld [vmem:[#allocation5 + $0xd98] sm:$0xff]
    %v512 = vld [vmem:[#allocation5 + $0xda0] sm:$0xff]
    %v513 = vld [vmem:[#allocation5 + $0xda8] sm:$0xff]
    %v514 = vld [vmem:[#allocation5 + $0xdb0] sm:$0xff]
    %v515 = vld [vmem:[#allocation5 + $0xdb8] sm:$0xff]
    %v516 = vld [vmem:[#allocation5 + $0xdc0] sm:$0xff]
    %v517 = vld [vmem:[#allocation5 + $0xdc8] sm:$0xff]
    %v518 = vld [vmem:[#allocation5 + $0xdd0] sm:$0xff]
    %v519 = vld [vmem:[#allocation5 + $0xdd8] sm:$0xff]
    %v520 = vld [vmem:[#allocation5 + $0xde0] sm:$0xff]
    %v521 = vld [vmem:[#allocation5 + $0xde8] sm:$0xff]
    %v522 = vld [vmem:[#allocation5 + $0xdf0] sm:$0xff]
    %v523 = vld [vmem:[#allocation5 + $0xdf8] sm:$0xff]
    %v524 = vld [vmem:[#allocation5 + $0xe00] sm:$0xff]
    %v525 = vld [vmem:[#allocation5 + $0xe08] sm:$0xff]
    %v526 = vld [vmem:[#allocation5 + $0xe10] sm:$0xff]
    %v527 = vld [vmem:[#allocation5 + $0xe18] sm:$0xff]
    %v528 = vld [vmem:[#allocation5 + $0xe20] sm:$0xff]
    %v529 = vld [vmem:[#allocation5 + $0xe28] sm:$0xff]
    %v530 = vld [vmem:[#allocation5 + $0xe30] sm:$0xff]
    %v531 = vld [vmem:[#allocation5 + $0xe38] sm:$0xff]
    %v532 = vld [vmem:[#allocation5 + $0xe40] sm:$0xff]
    %v533 = vld [vmem:[#allocation5 + $0xe48] sm:$0xff]
    %v534 = vld [vmem:[#allocation5 + $0xe50] sm:$0xff]
    %v535 = vld [vmem:[#allocation5 + $0xe58] sm:$0xff]
    %v536 = vld [vmem:[#allocation5 + $0xe60] sm:$0xff]
    %v537 = vld [vmem:[#allocation5 + $0xe68] sm:$0xff]
    %v538 = vld [vmem:[#allocation5 + $0xe70] sm:$0xff]
    %v539 = vld [vmem:[#allocation5 + $0xe78] sm:$0xff]
    %v540 = vld [vmem:[#allocation5 + $0xe80] sm:$0xff]
    %v541 = vld [vmem:[#allocation5 + $0xe88] sm:$0xff]
    %v542 = vld [vmem:[#allocation5 + $0xe90] sm:$0xff]
    %v543 = vld [vmem:[#allocation5 + $0xe98] sm:$0xff]
    %v544 = vld [vmem:[#allocation5 + $0xea0] sm:$0xff]
    %v545 = vld [vmem:[#allocation5 + $0xea8] sm:$0xff]
    %v546 = vld [vmem:[#allocation5 + $0xeb0] sm:$0xff]
    %v547 = vld [vmem:[#allocation5 + $0xeb8] sm:$0xff]
    %v548 = vld [vmem:[#allocation5 + $0xec0] sm:$0xff]
    %v549 = vld [vmem:[#allocation5 + $0xec8] sm:$0xff]
    %v550 = vld [vmem:[#allocation5 + $0xed0] sm:$0xff]
    %v551 = vld [vmem:[#allocation5 + $0xed8] sm:$0xff]
    %v552 = vld [vmem:[#allocation5 + $0xee0] sm:$0xff]
    %v553 = vld [vmem:[#allocation5 + $0xee8] sm:$0xff]
    %v554 = vld [vmem:[#allocation5 + $0xef0] sm:$0xff]
    %v555 = vld [vmem:[#allocation5 + $0xef8] sm:$0xff]
    %v556 = vld [vmem:[#allocation5 + $0xf00] sm:$0xff]
    %v557 = vld [vmem:[#allocation5 + $0xf08] sm:$0xff]
    %v558 = vld [vmem:[#allocation5 + $0xf10] sm:$0xff]
    %v559 = vld [vmem:[#allocation5 + $0xf18] sm:$0xff]
    %v560 = vld [vmem:[#allocation5 + $0xf20] sm:$0xff]
    %v561 = vld [vmem:[#allocation5 + $0xf28] sm:$0xff]
    %v562 = vld [vmem:[#allocation5 + $0xf30] sm:$0xff]
    %v563 = vld [vmem:[#allocation5 + $0xf38] sm:$0xff]
    %v564 = vld [vmem:[#allocation5 + $0xf40] sm:$0xff]
    %v565 = vld [vmem:[#allocation5 + $0xf48] sm:$0xff]
    %v566 = vld [vmem:[#allocation5 + $0xf50] sm:$0xff]
    %v567 = vld [vmem:[#allocation5 + $0xf58] sm:$0xff]
    %v568 = vld [vmem:[#allocation5 + $0xf60] sm:$0xff]
    %v569 = vld [vmem:[#allocation5 + $0xf68] sm:$0xff]
    %v570 = vld [vmem:[#allocation5 + $0xf70] sm:$0xff]
    %v571 = vld [vmem:[#allocation5 + $0xf78] sm:$0xff]
    %v572 = vld [vmem:[#allocation5 + $0xf80] sm:$0xff]
    %v573 = vld [vmem:[#allocation5 + $0xf88] sm:$0xff]
    %v574 = vld [vmem:[#allocation5 + $0xf90] sm:$0xff]
    %v575 = vld [vmem:[#allocation5 + $0xf98] sm:$0xff]
    %v576 = vld [vmem:[#allocation5 + $0xfa0] sm:$0xff]
    %v577 = vld [vmem:[#allocation5 + $0xfa8] sm:$0xff]
    %v578 = vld [vmem:[#allocation5 + $0xfb0] sm:$0xff]
    %v579 = vld [vmem:[#allocation5 + $0xfb8] sm:$0xff]
    %v580 = vld [vmem:[#allocation5 + $0xfc0] sm:$0xff]
    %v581 = vld [vmem:[#allocation5 + $0xfc8] sm:$0xff]
    %v582 = vld [vmem:[#allocation5 + $0xfd0] sm:$0xff]
    %v583 = vld [vmem:[#allocation5 + $0xfd8] sm:$0xff]
    %v584 = vld [vmem:[#allocation5 + $0xfe0] sm:$0xff]
    %v585 = vld [vmem:[#allocation5 + $0xfe8] sm:$0xff]
    %v586 = vld [vmem:[#allocation5 + $0xff0] sm:$0xff]
    %v587 = vld [vmem:[#allocation5 + $0xff8] sm:$0xff]
    %v588 = vld [vmem:[#allocation5 + $0x1000] sm:$0xff]
    %v589 = vld [vmem:[#allocation5 + $0x1008] sm:$0xff]
    %v590 = vld [vmem:[#allocation5 + $0x1010] sm:$0xff]
    %v591 = vld [vmem:[#allocation5 + $0x1018] sm:$0xff]
    %v592 = vld [vmem:[#allocation5 + $0x1020] sm:$0xff]
    %v593 = vld [vmem:[#allocation5 + $0x1028] sm:$0xff]
    %v594 = vld [vmem:[#allocation5 + $0x1030] sm:$0xff]
    %v595 = vld [vmem:[#allocation5 + $0x1038] sm:$0xff]
    %v596 = vld [vmem:[#allocation5 + $0x1040] sm:$0xff]
    %v597 = vld [vmem:[#allocation5 + $0x1048] sm:$0xff]
    %v598 = vld [vmem:[#allocation5 + $0x1050] sm:$0xff]
    %v599 = vld [vmem:[#allocation5 + $0x1058] sm:$0xff]
    %v600 = vld [vmem:[#allocation5 + $0x1060] sm:$0xff]
    %v601 = vld [vmem:[#allocation5 + $0x1068] sm:$0xff]
    %v602 = vld [vmem:[#allocation5 + $0x1070] sm:$0xff]
    %v603 = vld [vmem:[#allocation5 + $0x1078] sm:$0xff]
    %v604 = vld [vmem:[#allocation5 + $0x1080] sm:$0xff]
    %v605 = vld [vmem:[#allocation5 + $0x1088] sm:$0xff]
    %v606 = vld [vmem:[#allocation5 + $0x1090] sm:$0xff]
    %v607 = vld [vmem:[#allocation5 + $0x1098] sm:$0xff]
    %v608 = vld [vmem:[#allocation5 + $0x10a0] sm:$0xff]
    %v609 = vld [vmem:[#allocation5 + $0x10a8] sm:$0xff]
    %v610 = vld [vmem:[#allocation5 + $0x10b0] sm:$0xff]
    %v611 = vld [vmem:[#allocation5 + $0x10b8] sm:$0xff]
    %v612 = vld [vmem:[#allocation5 + $0x10c0] sm:$0xff]
    %v613 = vld [vmem:[#allocation5 + $0x10c8] sm:$0xff]
    %v614 = vld [vmem:[#allocation5 + $0x10d0] sm:$0xff]
    %v615 = vld [vmem:[#allocation5 + $0x10d8] sm:$0xff]
    %v616 = vld [vmem:[#allocation5 + $0x10e0] sm:$0xff]
    %v617 = vld [vmem:[#allocation5 + $0x10e8] sm:$0xff]
    %v618 = vld [vmem:[#allocation5 + $0x10f0] sm:$0xff]
    %v619 = vld [vmem:[#allocation5 + $0x10f8] sm:$0xff]
    %v620 = vld [vmem:[#allocation5 + $0x1100] sm:$0xff]
    %v621 = vld [vmem:[#allocation5 + $0x1108] sm:$0xff]
    %v622 = vld [vmem:[#allocation5 + $0x1110] sm:$0xff]
    %v623 = vld [vmem:[#allocation5 + $0x1118] sm:$0xff]
    %v624 = vld [vmem:[#allocation5 + $0x1120] sm:$0xff]
    %v625 = vld [vmem:[#allocation5 + $0x1128] sm:$0xff]
    %v626 = vld [vmem:[#allocation5 + $0x1130] sm:$0xff]
    %v627 = vld [vmem:[#allocation5 + $0x1138] sm:$0xff]
    %v628 = vld [vmem:[#allocation5 + $0x1140] sm:$0xff]
    %v629 = vld [vmem:[#allocation5 + $0x1148] sm:$0xff]
    %v630 = vld [vmem:[#allocation5 + $0x1150] sm:$0xff]
    %v631 = vld [vmem:[#allocation5 + $0x1158] sm:$0xff]
    %v632 = vld [vmem:[#allocation5 + $0x1160] sm:$0xff]
    %v633 = vld [vmem:[#allocation5 + $0x1168] sm:$0xff]
    %v634 = vld [vmem:[#allocation5 + $0x1170] sm:$0xff]
    %v635 = vld [vmem:[#allocation5 + $0x1178] sm:$0xff]
    %v636 = vld [vmem:[#allocation5 + $0x1180] sm:$0xff]
    %v637 = vld [vmem:[#allocation5 + $0x1188] sm:$0xff]
    %v638 = vld [vmem:[#allocation5 + $0x1190] sm:$0xff]
    %v639 = vld [vmem:[#allocation5 + $0x1198] sm:$0xff]
    %v640 = vld [vmem:[#allocation5 + $0x11a0] sm:$0xff]
    %v641 = vld [vmem:[#allocation5 + $0x11a8] sm:$0xff]
    %v642 = vld [vmem:[#allocation5 + $0x11b0] sm:$0xff]
    %v643 = vld [vmem:[#allocation5 + $0x11b8] sm:$0xff]
    %v644 = vld [vmem:[#allocation5 + $0x11c0] sm:$0xff]
    %v645 = vld [vmem:[#allocation5 + $0x11c8] sm:$0xff]
    %v646 = vld [vmem:[#allocation5 + $0x11d0] sm:$0xff]
    %v647 = vld [vmem:[#allocation5 + $0x11d8] sm:$0xff]
    %v648 = vld [vmem:[#allocation5 + $0x11e0] sm:$0xff]
    %v649 = vld [vmem:[#allocation5 + $0x11e8] sm:$0xff]
    %v650 = vld [vmem:[#allocation5 + $0x11f0] sm:$0xff]
    %v651 = vld [vmem:[#allocation5 + $0x11f8] sm:$0xff]
    %v652 = vld [vmem:[#allocation5 + $0x1200] sm:$0xff]
    %v653 = vld [vmem:[#allocation5 + $0x1208] sm:$0xff]
    %v654 = vld [vmem:[#allocation5 + $0x1210] sm:$0xff]
    %v655 = vld [vmem:[#allocation5 + $0x1218] sm:$0xff]
    %v656 = vld [vmem:[#allocation5 + $0x1220] sm:$0xff]
    %v657 = vld [vmem:[#allocation5 + $0x1228] sm:$0xff]
    %v658 = vld [vmem:[#allocation5 + $0x1230] sm:$0xff]
    %v659 = vld [vmem:[#allocation5 + $0x1238] sm:$0xff]
    %v660 = vld [vmem:[#allocation5 + $0x1240] sm:$0xff]
    %v661 = vld [vmem:[#allocation5 + $0x1248] sm:$0xff]
    %v662 = vld [vmem:[#allocation5 + $0x1250] sm:$0xff]
    %v663 = vld [vmem:[#allocation5 + $0x1258] sm:$0xff]
    %v664 = vld [vmem:[#allocation5 + $0x1260] sm:$0xff]
    %v665 = vld [vmem:[#allocation5 + $0x1268] sm:$0xff]
    %v666 = vld [vmem:[#allocation5 + $0x1270] sm:$0xff]
    %v667 = vld [vmem:[#allocation5 + $0x1278] sm:$0xff]
    %v668 = vld [vmem:[#allocation5 + $0x1280] sm:$0xff]
    %v669 = vld [vmem:[#allocation5 + $0x1288] sm:$0xff]
    %v670 = vld [vmem:[#allocation5 + $0x1290] sm:$0xff]
    %v671 = vld [vmem:[#allocation5 + $0x1298] sm:$0xff]
    %v672 = vld [vmem:[#allocation5 + $0x12a0] sm:$0xff]
    %v673 = vld [vmem:[#allocation5 + $0x12a8] sm:$0xff]
    %v674 = vld [vmem:[#allocation5 + $0x12b0] sm:$0xff]
    %v675 = vld [vmem:[#allocation5 + $0x12b8] sm:$0xff]
    %v676 = vld [vmem:[#allocation5 + $0x12c0] sm:$0xff]
    %v677 = vld [vmem:[#allocation5 + $0x12c8] sm:$0xff]
    %v678 = vld [vmem:[#allocation5 + $0x12d0] sm:$0xff]
    %v679 = vld [vmem:[#allocation5 + $0x12d8] sm:$0xff]
    %v680 = vld [vmem:[#allocation5 + $0x12e0] sm:$0xff]
    %v681 = vld [vmem:[#allocation5 + $0x12e8] sm:$0xff]
    %v682 = vld [vmem:[#allocation5 + $0x12f0] sm:$0xff]
    %v683 = vld [vmem:[#allocation5 + $0x12f8] sm:$0xff]
    %v684 = vld [vmem:[#allocation5 + $0x1300] sm:$0xff]
    %v685 = vld [vmem:[#allocation5 + $0x1308] sm:$0xff]
    %v686 = vld [vmem:[#allocation5 + $0x1310] sm:$0xff]
    %v687 = vld [vmem:[#allocation5 + $0x1318] sm:$0xff]
    %v688 = vld [vmem:[#allocation5 + $0x1320] sm:$0xff]
    %v689 = vld [vmem:[#allocation5 + $0x1328] sm:$0xff]
    %v690 = vld [vmem:[#allocation5 + $0x1330] sm:$0xff]
    %v691 = vld [vmem:[#allocation5 + $0x1338] sm:$0xff]
    %v692 = vld [vmem:[#allocation5 + $0x1340] sm:$0xff]
    %v693 = vld [vmem:[#allocation5 + $0x1348] sm:$0xff]
    %v694 = vld [vmem:[#allocation5 + $0x1350] sm:$0xff]
    %v695 = vld [vmem:[#allocation5 + $0x1358] sm:$0xff]
    %v696 = vld [vmem:[#allocation5 + $0x1360] sm:$0xff]
    %v697 = vld [vmem:[#allocation5 + $0x1368] sm:$0xff]
    %v698 = vld [vmem:[#allocation5 + $0x1370] sm:$0xff]
    %v699 = vld [vmem:[#allocation5 + $0x1378] sm:$0xff]
    %v700 = vld [vmem:[#allocation5 + $0x1380] sm:$0xff]
    %v701 = vld [vmem:[#allocation5 + $0x1388] sm:$0xff]
    %v702 = vld [vmem:[#allocation5 + $0x1390] sm:$0xff]
    %v703 = vld [vmem:[#allocation5 + $0x1398] sm:$0xff]
    %v704 = vld [vmem:[#allocation5 + $0x13a0] sm:$0xff]
    %v705 = vld [vmem:[#allocation5 + $0x13a8] sm:$0xff]
    %v706 = vld [vmem:[#allocation5 + $0x13b0] sm:$0xff]
    %v707 = vld [vmem:[#allocation5 + $0x13b8] sm:$0xff]
    %v708 = vld [vmem:[#allocation5 + $0x13c0] sm:$0xff]
    %v709 = vld [vmem:[#allocation5 + $0x13c8] sm:$0xff]
    %v710 = vld [vmem:[#allocation5 + $0x13d0] sm:$0xff]
    %v711 = vld [vmem:[#allocation5 + $0x13d8] sm:$0xff]
    %v712 = vld [vmem:[#allocation5 + $0x13e0] sm:$0xff]
    %v713 = vld [vmem:[#allocation5 + $0x13e8] sm:$0xff]
    %v714 = vld [vmem:[#allocation5 + $0x13f0] sm:$0xff]
    %v715 = vld [vmem:[#allocation5 + $0x13f8] sm:$0xff]
    %v716 = vld [vmem:[#allocation5 + $0x1400] sm:$0xff]
    %v717 = vld [vmem:[#allocation5 + $0x1408] sm:$0xff]
    %v718 = vld [vmem:[#allocation5 + $0x1410] sm:$0xff]
    %v719 = vld [vmem:[#allocation5 + $0x1418] sm:$0xff]
    %v720 = vld [vmem:[#allocation5 + $0x1420] sm:$0xff]
    %v721 = vld [vmem:[#allocation5 + $0x1428] sm:$0xff]
    %v722 = vld [vmem:[#allocation5 + $0x1430] sm:$0xff]
    %v723 = vld [vmem:[#allocation5 + $0x1438] sm:$0xff]
    %v724 = vld [vmem:[#allocation5 + $0x1440] sm:$0xff]
    %v725 = vld [vmem:[#allocation5 + $0x1448] sm:$0xff]
    %v726 = vld [vmem:[#allocation5 + $0x1450] sm:$0xff]
    %v727 = vld [vmem:[#allocation5 + $0x1458] sm:$0xff]
    %v728 = vld [vmem:[#allocation5 + $0x1460] sm:$0xff]
    %v729 = vld [vmem:[#allocation5 + $0x1468] sm:$0xff]
    %v730 = vld [vmem:[#allocation5 + $0x1470] sm:$0xff]
    %v731 = vld [vmem:[#allocation5 + $0x1478] sm:$0xff]
    %v732 = vld [vmem:[#allocation5 + $0x1480] sm:$0xff]
    %v733 = vld [vmem:[#allocation5 + $0x1488] sm:$0xff]
    %v734 = vld [vmem:[#allocation5 + $0x1490] sm:$0xff]
    %v735 = vld [vmem:[#allocation5 + $0x1498] sm:$0xff]
    %v736 = vld [vmem:[#allocation5 + $0x14a0] sm:$0xff]
    %v737 = vld [vmem:[#allocation5 + $0x14a8] sm:$0xff]
    %v738 = vld [vmem:[#allocation5 + $0x14b0] sm:$0xff]
    %v739 = vld [vmem:[#allocation5 + $0x14b8] sm:$0xff]
    %v740 = vld [vmem:[#allocation5 + $0x14c0] sm:$0xff]
    %v741 = vld [vmem:[#allocation5 + $0x14c8] sm:$0xff]
    %v742 = vld [vmem:[#allocation5 + $0x14d0] sm:$0xff]
    %v743 = vld [vmem:[#allocation5 + $0x14d8] sm:$0xff]
    %v744 = vld [vmem:[#allocation5 + $0x14e0] sm:$0xff]
    %v745 = vld [vmem:[#allocation5 + $0x14e8] sm:$0xff]
    %v746 = vld [vmem:[#allocation5 + $0x14f0] sm:$0xff]
    %v747 = vld [vmem:[#allocation5 + $0x14f8] sm:$0xff]
    %v748 = vld [vmem:[#allocation5 + $0x1500] sm:$0xff]
    %v749 = vld [vmem:[#allocation5 + $0x1508] sm:$0xff]
    %v750 = vld [vmem:[#allocation5 + $0x1510] sm:$0xff]
    %v751 = vld [vmem:[#allocation5 + $0x1518] sm:$0xff]
    %v752 = vld [vmem:[#allocation5 + $0x1520] sm:$0xff]
    %v753 = vld [vmem:[#allocation5 + $0x1528] sm:$0xff]
    %v754 = vld [vmem:[#allocation5 + $0x1530] sm:$0xff]
    %v755 = vld [vmem:[#allocation5 + $0x1538] sm:$0xff]
    %v756 = vld [vmem:[#allocation5 + $0x1540] sm:$0xff]
    %v757 = vld [vmem:[#allocation5 + $0x1548] sm:$0xff]
    %v758 = vld [vmem:[#allocation5 + $0x1550] sm:$0xff]
    %v759 = vld [vmem:[#allocation5 + $0x1558] sm:$0xff]
    %v760 = vld [vmem:[#allocation5 + $0x1560] sm:$0xff]
    %v761 = vld [vmem:[#allocation5 + $0x1568] sm:$0xff]
    %v762 = vld [vmem:[#allocation5 + $0x1570] sm:$0xff]
    %v763 = vld [vmem:[#allocation5 + $0x1578] sm:$0xff]
    %v764 = vld [vmem:[#allocation5 + $0x1580] sm:$0xff]
    %v765 = vld [vmem:[#allocation5 + $0x1588] sm:$0xff]
    %v766 = vld [vmem:[#allocation5 + $0x1590] sm:$0xff]
    %v767 = vld [vmem:[#allocation5 + $0x1598] sm:$0xff]
    %v768 = vld [vmem:[#allocation5 + $0x15a0] sm:$0xff]
    %v769 = vld [vmem:[#allocation5 + $0x15a8] sm:$0xff]
    %v770 = vld [vmem:[#allocation5 + $0x15b0] sm:$0xff]
    %v771 = vld [vmem:[#allocation5 + $0x15b8] sm:$0xff]
    %v772 = vld [vmem:[#allocation5 + $0x15c0] sm:$0xff]
    %v773 = vld [vmem:[#allocation5 + $0x15c8] sm:$0xff]
    %v774 = vld [vmem:[#allocation5 + $0x15d0] sm:$0xff]
    %v775 = vld [vmem:[#allocation5 + $0x15d8] sm:$0xff]
    %v776 = vld [vmem:[#allocation5 + $0x15e0] sm:$0xff]
    %v777 = vld [vmem:[#allocation5 + $0x15e8] sm:$0xff]
    %v778 = vld [vmem:[#allocation5 + $0x15f0] sm:$0xff]
    %v779 = vld [vmem:[#allocation5 + $0x15f8] sm:$0xff]
    %v780 = vld [vmem:[#allocation5 + $0x1600] sm:$0xff]
    %v781 = vld [vmem:[#allocation5 + $0x1608] sm:$0xff]
    %v782 = vld [vmem:[#allocation5 + $0x1610] sm:$0xff]
    %v783 = vld [vmem:[#allocation5 + $0x1618] sm:$0xff]
    %v784 = vld [vmem:[#allocation5 + $0x1620] sm:$0xff]
    %v785 = vld [vmem:[#allocation5 + $0x1628] sm:$0xff]
    %v786 = vld [vmem:[#allocation5 + $0x1630] sm:$0xff]
    %v787 = vld [vmem:[#allocation5 + $0x1638] sm:$0xff]
    %v788 = vld [vmem:[#allocation5 + $0x1640] sm:$0xff]
    %v789 = vld [vmem:[#allocation5 + $0x1648] sm:$0xff]
    %v790 = vld [vmem:[#allocation5 + $0x1650] sm:$0xff]
    %v791 = vld [vmem:[#allocation5 + $0x1658] sm:$0xff]
    %v792 = vld [vmem:[#allocation5 + $0x1660] sm:$0xff]
    %v793 = vld [vmem:[#allocation5 + $0x1668] sm:$0xff]
    %v794 = vld [vmem:[#allocation5 + $0x1670] sm:$0xff]
    %v795 = vld [vmem:[#allocation5 + $0x1678] sm:$0xff]
    %v796 = vld [vmem:[#allocation5 + $0x1680] sm:$0xff]
    %v797 = vld [vmem:[#allocation5 + $0x1688] sm:$0xff]
    %v798 = vld [vmem:[#allocation5 + $0x1690] sm:$0xff]
    %v799 = vld [vmem:[#allocation5 + $0x1698] sm:$0xff]
    %v800 = vld [vmem:[#allocation5 + $0x16a0] sm:$0xff]
    %v801 = vld [vmem:[#allocation5 + $0x16a8] sm:$0xff]
    %v802 = vld [vmem:[#allocation5 + $0x16b0] sm:$0xff]
    %v803 = vld [vmem:[#allocation5 + $0x16b8] sm:$0xff]
    %v804 = vld [vmem:[#allocation5 + $0x16c0] sm:$0xff]
    %v805 = vld [vmem:[#allocation5 + $0x16c8] sm:$0xff]
    %v806 = vld [vmem:[#allocation5 + $0x16d0] sm:$0xff]
    %v807 = vld [vmem:[#allocation5 + $0x16d8] sm:$0xff]
    %v808 = vld [vmem:[#allocation5 + $0x16e0] sm:$0xff]
    %v809 = vld [vmem:[#allocation5 + $0x16e8] sm:$0xff]
    %v810 = vld [vmem:[#allocation5 + $0x16f0] sm:$0xff]
    %v811 = vld [vmem:[#allocation5 + $0x16f8] sm:$0xff]
    %v812 = vld [vmem:[#allocation5 + $0x1700] sm:$0xff]
    %v813 = vld [vmem:[#allocation5 + $0x1708] sm:$0xff]
    %v814 = vld [vmem:[#allocation5 + $0x1710] sm:$0xff]
    %v815 = vld [vmem:[#allocation5 + $0x1718] sm:$0xff]
    %v816 = vld [vmem:[#allocation5 + $0x1720] sm:$0xff]
    %v817 = vld [vmem:[#allocation5 + $0x1728] sm:$0xff]
    %v818 = vld [vmem:[#allocation5 + $0x1730] sm:$0xff]
    %v819 = vld [vmem:[#allocation5 + $0x1738] sm:$0xff]
    %v820 = vld [vmem:[#allocation5 + $0x1740] sm:$0xff]
    %v821 = vld [vmem:[#allocation5 + $0x1748] sm:$0xff]
    %v822 = vld [vmem:[#allocation5 + $0x1750] sm:$0xff]
    %v823 = vld [vmem:[#allocation5 + $0x1758] sm:$0xff]
    %v824 = vld [vmem:[#allocation5 + $0x1760] sm:$0xff]
    %v825 = vld [vmem:[#allocation5 + $0x1768] sm:$0xff]
    %v826 = vld [vmem:[#allocation5 + $0x1770] sm:$0xff]
    %v827 = vld [vmem:[#allocation5 + $0x1778] sm:$0xff]
    %v828 = vld [vmem:[#allocation5 + $0x1780] sm:$0xff]
    %v829 = vld [vmem:[#allocation5 + $0x1788] sm:$0xff]
    %v830 = vld [vmem:[#allocation5 + $0x1790] sm:$0xff]
    %v831 = vld [vmem:[#allocation5 + $0x1798] sm:$0xff]
    %v832 = vld [vmem:[#allocation5 + $0x17a0] sm:$0xff]
    %v833 = vld [vmem:[#allocation5 + $0x17a8] sm:$0xff]
    %v834 = vld [vmem:[#allocation5 + $0x17b0] sm:$0xff]
    %v835 = vld [vmem:[#allocation5 + $0x17b8] sm:$0xff]
    %v836 = vld [vmem:[#allocation5 + $0x17c0] sm:$0xff]
    %v837 = vld [vmem:[#allocation5 + $0x17c8] sm:$0xff]
    %v838 = vld [vmem:[#allocation5 + $0x17d0] sm:$0xff]
    %v839 = vld [vmem:[#allocation5 + $0x17d8] sm:$0xff]
    %v840 = vld [vmem:[#allocation5 + $0x17e0] sm:$0xff]
    %v841 = vld [vmem:[#allocation5 + $0x17e8] sm:$0xff]
    %v842 = vld [vmem:[#allocation5 + $0x17f0] sm:$0xff]
    %v843 = vld [vmem:[#allocation5 + $0x17f8] sm:$0xff]
    %v844 = vld [vmem:[#allocation5 + $0x1800] sm:$0xff]
    %v845 = vld [vmem:[#allocation5 + $0x1808] sm:$0xff]
    %v846 = vld [vmem:[#allocation5 + $0x1810] sm:$0xff]
    %v847 = vld [vmem:[#allocation5 + $0x1818] sm:$0xff]
    %v848 = vld [vmem:[#allocation5 + $0x1820] sm:$0xff]
    %v849 = vld [vmem:[#allocation5 + $0x1828] sm:$0xff]
    %v850 = vld [vmem:[#allocation5 + $0x1830] sm:$0xff]
    %v851 = vld [vmem:[#allocation5 + $0x1838] sm:$0xff]
    %v852 = vld [vmem:[#allocation5 + $0x1840] sm:$0xff]
    %v853 = vld [vmem:[#allocation5 + $0x1848] sm:$0xff]
    %v854 = vld [vmem:[#allocation5 + $0x1850] sm:$0xff]
    %v855 = vld [vmem:[#allocation5 + $0x1858] sm:$0xff]
    %v856 = vld [vmem:[#allocation5 + $0x1860] sm:$0xff]
    %v857 = vld [vmem:[#allocation5 + $0x1868] sm:$0xff]
    %v858 = vld [vmem:[#allocation5 + $0x1870] sm:$0xff]
    %v859 = vld [vmem:[#allocation5 + $0x1878] sm:$0xff]
    %v860 = vld [vmem:[#allocation5 + $0x1880] sm:$0xff]
    %v861 = vld [vmem:[#allocation5 + $0x1888] sm:$0xff]
    %v862 = vld [vmem:[#allocation5 + $0x1890] sm:$0xff]
    %v863 = vld [vmem:[#allocation5 + $0x1898] sm:$0xff]
    %v864 = vld [vmem:[#allocation5 + $0x18a0] sm:$0xff]
    %v865 = vld [vmem:[#allocation5 + $0x18a8] sm:$0xff]
    %v866 = vld [vmem:[#allocation5 + $0x18b0] sm:$0xff]
    %v867 = vld [vmem:[#allocation5 + $0x18b8] sm:$0xff]
    %v868 = vld [vmem:[#allocation5 + $0x18c0] sm:$0xff]
    %v869 = vld [vmem:[#allocation5 + $0x18c8] sm:$0xff]
    %v870 = vld [vmem:[#allocation5 + $0x18d0] sm:$0xff]
    %v871 = vld [vmem:[#allocation5 + $0x18d8] sm:$0xff]
    %v872 = vld [vmem:[#allocation5 + $0x18e0] sm:$0xff]
    %v873 = vld [vmem:[#allocation5 + $0x18e8] sm:$0xff]
    %v874 = vld [vmem:[#allocation5 + $0x18f0] sm:$0xff]
    %v875 = vld [vmem:[#allocation5 + $0x18f8] sm:$0xff]
    %v876 = vld [vmem:[#allocation5 + $0x1900] sm:$0xff]
    %v877 = vld [vmem:[#allocation5 + $0x1908] sm:$0xff]
    %v878 = vld [vmem:[#allocation5 + $0x1910] sm:$0xff]
    %v879 = vld [vmem:[#allocation5 + $0x1918] sm:$0xff]
    %v880 = vld [vmem:[#allocation5 + $0x1920] sm:$0xff]
    %v881 = vld [vmem:[#allocation5 + $0x1928] sm:$0xff]
    %v882 = vld [vmem:[#allocation5 + $0x1930] sm:$0xff]
    %v883 = vld [vmem:[#allocation5 + $0x1938] sm:$0xff]
    %v884 = vld [vmem:[#allocation5 + $0x1940] sm:$0xff]
    %v885 = vld [vmem:[#allocation5 + $0x1948] sm:$0xff]
    %v886 = vld [vmem:[#allocation5 + $0x1950] sm:$0xff]
    %v887 = vld [vmem:[#allocation5 + $0x1958] sm:$0xff]
    %v888 = vld [vmem:[#allocation5 + $0x1960] sm:$0xff]
    %v889 = vld [vmem:[#allocation5 + $0x1968] sm:$0xff]
    %v890 = vld [vmem:[#allocation5 + $0x1970] sm:$0xff]
    %v891 = vld [vmem:[#allocation5 + $0x1978] sm:$0xff]
    %v892 = vld [vmem:[#allocation5 + $0x1980] sm:$0xff]
    %v893 = vld [vmem:[#allocation5 + $0x1988] sm:$0xff]
    %v894 = vld [vmem:[#allocation5 + $0x1990] sm:$0xff]
    %v895 = vld [vmem:[#allocation5 + $0x1998] sm:$0xff]
    %v896 = vld [vmem:[#allocation5 + $0x19a0] sm:$0xff]
    %v897 = vld [vmem:[#allocation5 + $0x19a8] sm:$0xff]
    %v898 = vld [vmem:[#allocation5 + $0x19b0] sm:$0xff]
    %v899 = vld [vmem:[#allocation5 + $0x19b8] sm:$0xff]
    %v900 = vld [vmem:[#allocation5 + $0x19c0] sm:$0xff]
    %v901 = vld [vmem:[#allocation5 + $0x19c8] sm:$0xff]
    %v902 = vld [vmem:[#allocation5 + $0x19d0] sm:$0xff]
    %v903 = vld [vmem:[#allocation5 + $0x19d8] sm:$0xff]
    %v904 = vld [vmem:[#allocation5 + $0x19e0] sm:$0xff]
    %v905 = vld [vmem:[#allocation5 + $0x19e8] sm:$0xff]
    %v906 = vld [vmem:[#allocation5 + $0x19f0] sm:$0xff]
    %v907 = vld [vmem:[#allocation5 + $0x19f8] sm:$0xff]
    %v908 = vld [vmem:[#allocation5 + $0x1a00] sm:$0xff]
    %v909 = vld [vmem:[#allocation5 + $0x1a08] sm:$0xff]
    %v910 = vld [vmem:[#allocation5 + $0x1a10] sm:$0xff]
    %v911 = vld [vmem:[#allocation5 + $0x1a18] sm:$0xff]
    %v912 = vld [vmem:[#allocation5 + $0x1a20] sm:$0xff]
    %v913 = vld [vmem:[#allocation5 + $0x1a28] sm:$0xff]
    %v914 = vld [vmem:[#allocation5 + $0x1a30] sm:$0xff]
    %v915 = vld [vmem:[#allocation5 + $0x1a38] sm:$0xff]
    %v916 = vld [vmem:[#allocation5 + $0x1a40] sm:$0xff]
    %v917 = vld [vmem:[#allocation5 + $0x1a48] sm:$0xff]
    %v918 = vld [vmem:[#allocation5 + $0x1a50] sm:$0xff]
    %v919 = vld [vmem:[#allocation5 + $0x1a58] sm:$0xff]
    %v920 = vld [vmem:[#allocation5 + $0x1a60] sm:$0xff]
    %v921 = vld [vmem:[#allocation5 + $0x1a68] sm:$0xff]
    %v922 = vld [vmem:[#allocation5 + $0x1a70] sm:$0xff]
    %v923 = vld [vmem:[#allocation5 + $0x1a78] sm:$0xff]
    %v924 = vld [vmem:[#allocation5 + $0x1a80] sm:$0xff]
    %v925 = vld [vmem:[#allocation5 + $0x1a88] sm:$0xff]
    %v926 = vld [vmem:[#allocation5 + $0x1a90] sm:$0xff]
    %v927 = vld [vmem:[#allocation5 + $0x1a98] sm:$0xff]
    %v928 = vld [vmem:[#allocation5 + $0x1aa0] sm:$0xff]
    %v929 = vld [vmem:[#allocation5 + $0x1aa8] sm:$0xff]
    %v930 = vld [vmem:[#allocation5 + $0x1ab0] sm:$0xff]
    %v931 = vld [vmem:[#allocation5 + $0x1ab8] sm:$0xff]
    %v932 = vld [vmem:[#allocation5 + $0x1ac0] sm:$0xff]
    %v933 = vld [vmem:[#allocation5 + $0x1ac8] sm:$0xff]
    %v934 = vld [vmem:[#allocation5 + $0x1ad0] sm:$0xff]
    %v935 = vld [vmem:[#allocation5 + $0x1ad8] sm:$0xff]
    %v936 = vld [vmem:[#allocation5 + $0x1ae0] sm:$0xff]
    %v937 = vld [vmem:[#allocation5 + $0x1ae8] sm:$0xff]
    %v938 = vld [vmem:[#allocation5 + $0x1af0] sm:$0xff]
    %v939 = vld [vmem:[#allocation5 + $0x1af8] sm:$0xff]
    %v940 = vld [vmem:[#allocation5 + $0x1b00] sm:$0xff]
    %v941 = vld [vmem:[#allocation5 + $0x1b08] sm:$0xff]
    %v942 = vld [vmem:[#allocation5 + $0x1b10] sm:$0xff]
    %v943 = vld [vmem:[#allocation5 + $0x1b18] sm:$0xff]
    %v944 = vld [vmem:[#allocation5 + $0x1b20] sm:$0xff]
    %v945 = vld [vmem:[#allocation5 + $0x1b28] sm:$0xff]
    %v946 = vld [vmem:[#allocation5 + $0x1b30] sm:$0xff]
    %v947 = vld [vmem:[#allocation5 + $0x1b38] sm:$0xff]
    %v948 = vld [vmem:[#allocation5 + $0x1b40] sm:$0xff]
    %v949 = vld [vmem:[#allocation5 + $0x1b48] sm:$0xff]
    %v950 = vld [vmem:[#allocation5 + $0x1b50] sm:$0xff]
    %v951 = vld [vmem:[#allocation5 + $0x1b58] sm:$0xff]
    %v952 = vld [vmem:[#allocation5 + $0x1b60] sm:$0xff]
    %v953 = vld [vmem:[#allocation5 + $0x1b68] sm:$0xff]
    %v954 = vld [vmem:[#allocation5 + $0x1b70] sm:$0xff]
    %v955 = vld [vmem:[#allocation5 + $0x1b78] sm:$0xff]
    %v956 = vld [vmem:[#allocation5 + $0x1b80] sm:$0xff]
    %v957 = vld [vmem:[#allocation5 + $0x1b88] sm:$0xff]
    %v958 = vld [vmem:[#allocation5 + $0x1b90] sm:$0xff]
    %v959 = vld [vmem:[#allocation5 + $0x1b98] sm:$0xff]
    %v960 = vld [vmem:[#allocation5 + $0x1ba0] sm:$0xff]
    %v961 = vld [vmem:[#allocation5 + $0x1ba8] sm:$0xff]
    %v962 = vld [vmem:[#allocation5 + $0x1bb0] sm:$0xff]
    %v963 = vld [vmem:[#allocation5 + $0x1bb8] sm:$0xff]
    %v964 = vld [vmem:[#allocation5 + $0x1bc0] sm:$0xff]
    %v965 = vld [vmem:[#allocation5 + $0x1bc8] sm:$0xff]
    %v966 = vld [vmem:[#allocation5 + $0x1bd0] sm:$0xff]
    %v967 = vld [vmem:[#allocation5 + $0x1bd8] sm:$0xff]
    %v968 = vld [vmem:[#allocation5 + $0x1be0] sm:$0xff]
    %v969 = vld [vmem:[#allocation5 + $0x1be8] sm:$0xff]
    %v970 = vld [vmem:[#allocation5 + $0x1bf0] sm:$0xff]
    %v971 = vld [vmem:[#allocation5 + $0x1bf8] sm:$0xff]
    %v972 = vld [vmem:[#allocation5 + $0x1c00] sm:$0xff]
    %v973 = vld [vmem:[#allocation5 + $0x1c08] sm:$0xff]
    %v974 = vld [vmem:[#allocation5 + $0x1c10] sm:$0xff]
    %v975 = vld [vmem:[#allocation5 + $0x1c18] sm:$0xff]
    %v976 = vld [vmem:[#allocation5 + $0x1c20] sm:$0xff]
    %v977 = vld [vmem:[#allocation5 + $0x1c28] sm:$0xff]
    %v978 = vld [vmem:[#allocation5 + $0x1c30] sm:$0xff]
    %v979 = vld [vmem:[#allocation5 + $0x1c38] sm:$0xff]
    %v980 = vld [vmem:[#allocation5 + $0x1c40] sm:$0xff]
    %v981 = vld [vmem:[#allocation5 + $0x1c48] sm:$0xff]
    %v982 = vld [vmem:[#allocation5 + $0x1c50] sm:$0xff]
    %v983 = vld [vmem:[#allocation5 + $0x1c58] sm:$0xff]
    %v984 = vld [vmem:[#allocation5 + $0x1c60] sm:$0xff]
    %v985 = vld [vmem:[#allocation5 + $0x1c68] sm:$0xff]
    %v986 = vld [vmem:[#allocation5 + $0x1c70] sm:$0xff]
    %v987 = vld [vmem:[#allocation5 + $0x1c78] sm:$0xff]
    %v988 = vld [vmem:[#allocation5 + $0x1c80] sm:$0xff]
    %v989 = vld [vmem:[#allocation5 + $0x1c88] sm:$0xff]
    %v990 = vld [vmem:[#allocation5 + $0x1c90] sm:$0xff]
    %v991 = vld [vmem:[#allocation5 + $0x1c98] sm:$0xff]
    %v992 = vld [vmem:[#allocation5 + $0x1ca0] sm:$0xff]
    %v993 = vld [vmem:[#allocation5 + $0x1ca8] sm:$0xff]
    %v994 = vld [vmem:[#allocation5 + $0x1cb0] sm:$0xff]
    %v995 = vld [vmem:[#allocation5 + $0x1cb8] sm:$0xff]
    %v996 = vld [vmem:[#allocation5 + $0x1cc0] sm:$0xff]
    %v997 = vld [vmem:[#allocation5 + $0x1cc8] sm:$0xff]
    %v998 = vld [vmem:[#allocation5 + $0x1cd0] sm:$0xff]
    %v999 = vld [vmem:[#allocation5 + $0x1cd8] sm:$0xff]
    %v1000 = vld [vmem:[#allocation5 + $0x1ce0] sm:$0xff]
    %v1001 = vld [vmem:[#allocation5 + $0x1ce8] sm:$0xff]
    %v1002 = vld [vmem:[#allocation5 + $0x1cf0] sm:$0xff]
    %v1003 = vld [vmem:[#allocation5 + $0x1cf8] sm:$0xff]
    %v1004 = vld [vmem:[#allocation5 + $0x1d00] sm:$0xff]
    %v1005 = vld [vmem:[#allocation5 + $0x1d08] sm:$0xff]
    %v1006 = vld [vmem:[#allocation5 + $0x1d10] sm:$0xff]
    %v1007 = vld [vmem:[#allocation5 + $0x1d18] sm:$0xff]
    %v1008 = vld [vmem:[#allocation5 + $0x1d20] sm:$0xff]
    %v1009 = vld [vmem:[#allocation5 + $0x1d28] sm:$0xff]
    %v1010 = vld [vmem:[#allocation5 + $0x1d30] sm:$0xff]
    %v1011 = vld [vmem:[#allocation5 + $0x1d38] sm:$0xff]
    %v1012 = vld [vmem:[#allocation5 + $0x1d40] sm:$0xff]
    %v1013 = vld [vmem:[#allocation5 + $0x1d48] sm:$0xff]
    %v1014 = vld [vmem:[#allocation5 + $0x1d50] sm:$0xff]
    %v1015 = vld [vmem:[#allocation5 + $0x1d58] sm:$0xff]
    %v1016 = vld [vmem:[#allocation5 + $0x1d60] sm:$0xff]
    %v1017 = vld [vmem:[#allocation5 + $0x1d68] sm:$0xff]
    %v1018 = vld [vmem:[#allocation5 + $0x1d70] sm:$0xff]
    %v1019 = vld [vmem:[#allocation5 + $0x1d78] sm:$0xff]
    %v1020 = vld [vmem:[#allocation5 + $0x1d80] sm:$0xff]
    %v1021 = vld [vmem:[#allocation5 + $0x1d88] sm:$0xff]
    %v1022 = vld [vmem:[#allocation5 + $0x1d90] sm:$0xff]
    %v1023 = vld [vmem:[#allocation5 + $0x1d98] sm:$0xff]
    %v1024 = vld [vmem:[#allocation5 + $0x1da0] sm:$0xff]
    %v1025 = vld [vmem:[#allocation5 + $0x1da8] sm:$0xff]
    %v1026 = vld [vmem:[#allocation5 + $0x1db0] sm:$0xff]
    %v1027 = vld [vmem:[#allocation5 + $0x1db8] sm:$0xff]
    %v1028 = vld [vmem:[#allocation5 + $0x1dc0] sm:$0xff]
    %v1029 = vld [vmem:[#allocation5 + $0x1dc8] sm:$0xff]
    %v1030 = vld [vmem:[#allocation5 + $0x1dd0] sm:$0xff]
    %v1031 = vld [vmem:[#allocation5 + $0x1dd8] sm:$0xff]
    %v1032 = vld [vmem:[#allocation5 + $0x1de0] sm:$0xff]
    %v1033 = vld [vmem:[#allocation5 + $0x1de8] sm:$0xff]
    %v1034 = vld [vmem:[#allocation5 + $0x1df0] sm:$0xff]
    %v1035 = vld [vmem:[#allocation5 + $0x1df8] sm:$0xff]
    %v1036 = vld [vmem:[#allocation5 + $0x1e00] sm:$0xff]
    %v1037 = vld [vmem:[#allocation5 + $0x1e08] sm:$0xff]
    %v1038 = vld [vmem:[#allocation5 + $0x1e10] sm:$0xff]
    %v1039 = vld [vmem:[#allocation5 + $0x1e18] sm:$0xff]
    %v1040 = vld [vmem:[#allocation5 + $0x1e20] sm:$0xff]
    %v1041 = vld [vmem:[#allocation5 + $0x1e28] sm:$0xff]
    %v1042 = vld [vmem:[#allocation5 + $0x1e30] sm:$0xff]
    %v1043 = vld [vmem:[#allocation5 + $0x1e38] sm:$0xff]
    %v1044 = vld [vmem:[#allocation5 + $0x1e40] sm:$0xff]
    %v1045 = vld [vmem:[#allocation5 + $0x1e48] sm:$0xff]
    %v1046 = vld [vmem:[#allocation5 + $0x1e50] sm:$0xff]
    %v1047 = vld [vmem:[#allocation5 + $0x1e58] sm:$0xff]
    %v1048 = vld [vmem:[#allocation5 + $0x1e60] sm:$0xff]
    %v1049 = vld [vmem:[#allocation5 + $0x1e68] sm:$0xff]
    %v1050 = vld [vmem:[#allocation5 + $0x1e70] sm:$0xff]
    %v1051 = vld [vmem:[#allocation5 + $0x1e78] sm:$0xff]
    %v1052 = vld [vmem:[#allocation5 + $0x1e80] sm:$0xff]
    %v1053 = vld [vmem:[#allocation5 + $0x1e88] sm:$0xff]
    %v1054 = vld [vmem:[#allocation5 + $0x1e90] sm:$0xff]
    %v1055 = vld [vmem:[#allocation5 + $0x1e98] sm:$0xff]
    %v1056 = vld [vmem:[#allocation5 + $0x1ea0] sm:$0xff]
    %v1057 = vld [vmem:[#allocation5 + $0x1ea8] sm:$0xff]
    %v1058 = vld [vmem:[#allocation5 + $0x1eb0] sm:$0xff]
    %v1059 = vld [vmem:[#allocation5 + $0x1eb8] sm:$0xff]
    %v1060 = vld [vmem:[#allocation5 + $0x1ec0] sm:$0xff]
    %v1061 = vld [vmem:[#allocation5 + $0x1ec8] sm:$0xff]
    %v1062 = vld [vmem:[#allocation5 + $0x1ed0] sm:$0xff]
    %v1063 = vld [vmem:[#allocation5 + $0x1ed8] sm:$0xff]
    %v1064 = vld [vmem:[#allocation5 + $0x1ee0] sm:$0xff]
    %v1065 = vld [vmem:[#allocation5 + $0x1ee8] sm:$0xff]
    %v1066 = vld [vmem:[#allocation5 + $0x1ef0] sm:$0xff]
    %v1067 = vld [vmem:[#allocation5 + $0x1ef8] sm:$0xff]
    %v1068 = vld [vmem:[#allocation5 + $0x1f00] sm:$0xff]
    %v1069 = vld [vmem:[#allocation5 + $0x1f08] sm:$0xff]
    %v1070 = vld [vmem:[#allocation5 + $0x1f10] sm:$0xff]
    %v1071 = vld [vmem:[#allocation5 + $0x1f18] sm:$0xff]
    %v1072 = vld [vmem:[#allocation5 + $0x1f20] sm:$0xff]
    %v1073 = vld [vmem:[#allocation5 + $0x1f28] sm:$0xff]
    %v1074 = vld [vmem:[#allocation5 + $0x1f30] sm:$0xff]
    %v1075 = vld [vmem:[#allocation5 + $0x1f38] sm:$0xff]
    %v1076 = vld [vmem:[#allocation5 + $0x1f40] sm:$0xff]
    %v1077 = vld [vmem:[#allocation5 + $0x1f48] sm:$0xff]
    %v1078 = vld [vmem:[#allocation5 + $0x1f50] sm:$0xff]
    %v1079 = vld [vmem:[#allocation5 + $0x1f58] sm:$0xff]
    %v1080 = vld [vmem:[#allocation5 + $0x1f60] sm:$0xff]
    %v1081 = vld [vmem:[#allocation5 + $0x1f68] sm:$0xff]
    %v1082 = vld [vmem:[#allocation5 + $0x1f70] sm:$0xff]
    %v1083 = vld [vmem:[#allocation5 + $0x1f78] sm:$0xff]
    %v1084 = vld [vmem:[#allocation5 + $0x1f80] sm:$0xff]
    %v1085 = vld [vmem:[#allocation5 + $0x1f88] sm:$0xff]
    %v1086 = vld [vmem:[#allocation5 + $0x1f90] sm:$0xff]
    %v1087 = vld [vmem:[#allocation5 + $0x1f98] sm:$0xff]
    %v1088 = vld [vmem:[#allocation5 + $0x1fa0] sm:$0xff]
    %v1089 = vld [vmem:[#allocation5 + $0x1fa8] sm:$0xff]
    %v1090 = vld [vmem:[#allocation5 + $0x1fb0] sm:$0xff]
    %v1091 = vld [vmem:[#allocation5 + $0x1fb8] sm:$0xff]
    %v1092 = vld [vmem:[#allocation5 + $0x1fc0] sm:$0xff]
    %v1093 = vld [vmem:[#allocation5 + $0x1fc8] sm:$0xff]
    %v1094 = vld [vmem:[#allocation5 + $0x1fd0] sm:$0xff]
    %v1095 = vld [vmem:[#allocation5 + $0x1fd8] sm:$0xff]
    %v1096 = vld [vmem:[#allocation5 + $0x1fe0] sm:$0xff]
    %v1097 = vld [vmem:[#allocation5 + $0x1fe8] sm:$0xff]
    %v1098 = vld [vmem:[#allocation5 + $0x1ff0] sm:$0xff]
    %v1099 = vld [vmem:[#allocation5 + $0x1ff8] sm:$0xff]
    %v1100 = vld [vmem:[#allocation5 + $0x2000] sm:$0xff]
    %v1101 = vld [vmem:[#allocation5 + $0x2008] sm:$0xff]
    %v1102 = vld [vmem:[#allocation5 + $0x2010] sm:$0xff]
    %v1103 = vld [vmem:[#allocation5 + $0x2018] sm:$0xff]
    %v1104 = vld [vmem:[#allocation5 + $0x2020] sm:$0xff]
    %v1105 = vld [vmem:[#allocation5 + $0x2028] sm:$0xff]
    %v1106 = vld [vmem:[#allocation5 + $0x2030] sm:$0xff]
    %v1107 = vld [vmem:[#allocation5 + $0x2038] sm:$0xff]
    %v1108 = vld [vmem:[#allocation5 + $0x2040] sm:$0xff]
    %v1109 = vld [vmem:[#allocation5 + $0x2048] sm:$0xff]
    %v1110 = vld [vmem:[#allocation5 + $0x2050] sm:$0xff]
    %v1111 = vld [vmem:[#allocation5 + $0x2058] sm:$0xff]
    %v1112 = vld [vmem:[#allocation5 + $0x2060] sm:$0xff]
    %v1113 = vld [vmem:[#allocation5 + $0x2068] sm:$0xff]
    %v1114 = vld [vmem:[#allocation5 + $0x2070] sm:$0xff]
    %v1115 = vld [vmem:[#allocation5 + $0x2078] sm:$0xff]
    %v1116 = vld [vmem:[#allocation5 + $0x2080] sm:$0xff]
    %v1117 = vld [vmem:[#allocation5 + $0x2088] sm:$0xff]
    %v1118 = vld [vmem:[#allocation5 + $0x2090] sm:$0xff]
    %v1119 = vld [vmem:[#allocation5 + $0x2098] sm:$0xff]
    %v1120 = vld [vmem:[#allocation5 + $0x20a0] sm:$0xff]
    %v1121 = vld [vmem:[#allocation5 + $0x20a8] sm:$0xff]
    %v1122 = vld [vmem:[#allocation5 + $0x20b0] sm:$0xff]
    %v1123 = vld [vmem:[#allocation5 + $0x20b8] sm:$0xff]
    %v1124 = vld [vmem:[#allocation5 + $0x20c0] sm:$0xff]
    %v1125 = vld [vmem:[#allocation5 + $0x20c8] sm:$0xff]
    %v1126 = vld [vmem:[#allocation5 + $0x20d0] sm:$0xff]
    %v1127 = vld [vmem:[#allocation5 + $0x20d8] sm:$0xff]
    %v1128 = vld [vmem:[#allocation5 + $0x20e0] sm:$0xff]
    %v1129 = vld [vmem:[#allocation5 + $0x20e8] sm:$0xff]
    %v1130 = vld [vmem:[#allocation5 + $0x20f0] sm:$0xff]
    %v1131 = vld [vmem:[#allocation5 + $0x20f8] sm:$0xff]
    %v1132 = vld [vmem:[#allocation5 + $0x2100] sm:$0xff]
    %v1133 = vld [vmem:[#allocation5 + $0x2108] sm:$0xff]
    %v1134 = vld [vmem:[#allocation5 + $0x2110] sm:$0xff]
    %v1135 = vld [vmem:[#allocation5 + $0x2118] sm:$0xff]
    %v1136 = vld [vmem:[#allocation5 + $0x2120] sm:$0xff]
    %v1137 = vld [vmem:[#allocation5 + $0x2128] sm:$0xff]
    %v1138 = vld [vmem:[#allocation5 + $0x2130] sm:$0xff]
    %v1139 = vld [vmem:[#allocation5 + $0x2138] sm:$0xff]
    %v1140 = vld [vmem:[#allocation5 + $0x2140] sm:$0xff]
    %v1141 = vld [vmem:[#allocation5 + $0x2148] sm:$0xff]
    %v1142 = vld [vmem:[#allocation5 + $0x2150] sm:$0xff]
    %v1143 = vld [vmem:[#allocation5 + $0x2158] sm:$0xff]
    %v1144 = vld [vmem:[#allocation5 + $0x2160] sm:$0xff]
    %v1145 = vld [vmem:[#allocation5 + $0x2168] sm:$0xff]
    %v1146 = vld [vmem:[#allocation5 + $0x2170] sm:$0xff]
    %v1147 = vld [vmem:[#allocation5 + $0x2178] sm:$0xff]
    %v1148 = vld [vmem:[#allocation5 + $0x2180] sm:$0xff]
    %v1149 = vld [vmem:[#allocation5 + $0x2188] sm:$0xff]
    %v1150 = vld [vmem:[#allocation5 + $0x2190] sm:$0xff]
    %v1151 = vld [vmem:[#allocation5 + $0x2198] sm:$0xff]
    %v1152 = vld [vmem:[#allocation5 + $0x21a0] sm:$0xff]
    %v1153 = vld [vmem:[#allocation5 + $0x21a8] sm:$0xff]
    %v1154 = vld [vmem:[#allocation5 + $0x21b0] sm:$0xff]
    %v1155 = vld [vmem:[#allocation5 + $0x21b8] sm:$0xff]
    %v1156 = vld [vmem:[#allocation5 + $0x21c0] sm:$0xff]
    %v1157 = vld [vmem:[#allocation5 + $0x21c8] sm:$0xff]
    %v1158 = vld [vmem:[#allocation5 + $0x21d0] sm:$0xff]
    %v1159 = vld [vmem:[#allocation5 + $0x21d8] sm:$0xff]
    %v1160 = vld [vmem:[#allocation5 + $0x21e0] sm:$0xff]
    %v1161 = vld [vmem:[#allocation5 + $0x21e8] sm:$0xff]
    %v1162 = vld [vmem:[#allocation5 + $0x21f0] sm:$0xff]
    %v1163 = vld [vmem:[#allocation5 + $0x21f8] sm:$0xff]
    %v1164 = vld [vmem:[#allocation5 + $0x2200] sm:$0xff]
    %v1165 = vld [vmem:[#allocation5 + $0x2208] sm:$0xff]
    %v1166 = vld [vmem:[#allocation5 + $0x2210] sm:$0xff]
    %v1167 = vld [vmem:[#allocation5 + $0x2218] sm:$0xff]
    %v1168 = vld [vmem:[#allocation5 + $0x2220] sm:$0xff]
    %v1169 = vld [vmem:[#allocation5 + $0x2228] sm:$0xff]
    %v1170 = vld [vmem:[#allocation5 + $0x2230] sm:$0xff]
    %v1171 = vld [vmem:[#allocation5 + $0x2238] sm:$0xff]
    %v1172 = vld [vmem:[#allocation5 + $0x2240] sm:$0xff]
    %v1173 = vld [vmem:[#allocation5 + $0x2248] sm:$0xff]
    %v1174 = vld [vmem:[#allocation5 + $0x2250] sm:$0xff]
    %v1175 = vld [vmem:[#allocation5 + $0x2258] sm:$0xff]
    %v1176 = vld [vmem:[#allocation5 + $0x2260] sm:$0xff]
    %v1177 = vld [vmem:[#allocation5 + $0x2268] sm:$0xff]
    %v1178 = vld [vmem:[#allocation5 + $0x2270] sm:$0xff]
    %v1179 = vld [vmem:[#allocation5 + $0x2278] sm:$0xff]
    %v1180 = vld [vmem:[#allocation5 + $0x2280] sm:$0xff]
    %v1181 = vld [vmem:[#allocation5 + $0x2288] sm:$0xff]
    %v1182 = vld [vmem:[#allocation5 + $0x2290] sm:$0xff]
    %v1183 = vld [vmem:[#allocation5 + $0x2298] sm:$0xff]
    %v1184 = vld [vmem:[#allocation5 + $0x22a0] sm:$0xff]
    %v1185 = vld [vmem:[#allocation5 + $0x22a8] sm:$0xff]
    %v1186 = vld [vmem:[#allocation5 + $0x22b0] sm:$0xff]
    %v1187 = vld [vmem:[#allocation5 + $0x22b8] sm:$0xff]
    %v1188 = vld [vmem:[#allocation5 + $0x22c0] sm:$0xff]
    %v1189 = vld [vmem:[#allocation5 + $0x22c8] sm:$0xff]
    %v1190 = vld [vmem:[#allocation5 + $0x22d0] sm:$0xff]
    %v1191 = vld [vmem:[#allocation5 + $0x22d8] sm:$0xff]
    %v1192 = vld [vmem:[#allocation5 + $0x22e0] sm:$0xff]
    %v1193 = vld [vmem:[#allocation5 + $0x22e8] sm:$0xff]
    %v1194 = vld [vmem:[#allocation5 + $0x22f0] sm:$0xff]
    %v1195 = vld [vmem:[#allocation5 + $0x22f8] sm:$0xff]
    %v1196 = vld [vmem:[#allocation5 + $0x2300] sm:$0xff]
    %v1197 = vld [vmem:[#allocation5 + $0x2308] sm:$0xff]
    %v1198 = vld [vmem:[#allocation5 + $0x2310] sm:$0xff]
    %v1199 = vld [vmem:[#allocation5 + $0x2318] sm:$0xff]
    %v1200 = vld [vmem:[#allocation5 + $0x2320] sm:$0xff]
    %v1201 = vld [vmem:[#allocation5 + $0x2328] sm:$0xff]
    %v1202 = vld [vmem:[#allocation5 + $0x2330] sm:$0xff]
    %v1203 = vld [vmem:[#allocation5 + $0x2338] sm:$0xff]
    %v1204 = vld [vmem:[#allocation5 + $0x2340] sm:$0xff]
    %v1205 = vld [vmem:[#allocation5 + $0x2348] sm:$0xff]
    %v1206 = vld [vmem:[#allocation5 + $0x2350] sm:$0xff]
    %v1207 = vld [vmem:[#allocation5 + $0x2358] sm:$0xff]
    %v1208 = vld [vmem:[#allocation5 + $0x2360] sm:$0xff]
    %v1209 = vld [vmem:[#allocation5 + $0x2368] sm:$0xff]
    %v1210 = vld [vmem:[#allocation5 + $0x2370] sm:$0xff]
    %v1211 = vld [vmem:[#allocation5 + $0x2378] sm:$0xff]
    %v1212 = vld [vmem:[#allocation5 + $0x2380] sm:$0xff]
    %v1213 = vld [vmem:[#allocation5 + $0x2388] sm:$0xff]
    %v1214 = vld [vmem:[#allocation5 + $0x2390] sm:$0xff]
    %v1215 = vld [vmem:[#allocation5 + $0x2398] sm:$0xff]
    %v1216 = vld [vmem:[#allocation5 + $0x23a0] sm:$0xff]
    %v1217 = vld [vmem:[#allocation5 + $0x23a8] sm:$0xff]
    %v1218 = vld [vmem:[#allocation5 + $0x23b0] sm:$0xff]
    %v1219 = vld [vmem:[#allocation5 + $0x23b8] sm:$0xff]
    %v1220 = vld [vmem:[#allocation5 + $0x23c0] sm:$0xff]
    %v1221 = vld [vmem:[#allocation5 + $0x23c8] sm:$0xff]
    %v1222 = vld [vmem:[#allocation5 + $0x23d0] sm:$0xff]
    %v1223 = vld [vmem:[#allocation5 + $0x23d8] sm:$0xff]
    %v1224 = vld [vmem:[#allocation5 + $0x23e0] sm:$0xff]
    %v1225 = vld [vmem:[#allocation5 + $0x23e8] sm:$0xff]
    %v1226 = vld [vmem:[#allocation5 + $0x23f0] sm:$0xff]
    %v1227 = vld [vmem:[#allocation5 + $0x23f8] sm:$0xff]
    %v1228 = vld [vmem:[#allocation5 + $0x2400] sm:$0xff]
    %v1229 = vld [vmem:[#allocation5 + $0x2408] sm:$0xff]
    %v1230 = vld [vmem:[#allocation5 + $0x2410] sm:$0xff]
    %v1231 = vld [vmem:[#allocation5 + $0x2418] sm:$0xff]
    %v1232 = vld [vmem:[#allocation5 + $0x2420] sm:$0xff]
    %v1233 = vld [vmem:[#allocation5 + $0x2428] sm:$0xff]
    %v1234 = vld [vmem:[#allocation5 + $0x2430] sm:$0xff]
    %v1235 = vld [vmem:[#allocation5 + $0x2438] sm:$0xff]
    %v1236 = vld [vmem:[#allocation5 + $0x2440] sm:$0xff]
    %v1237 = vld [vmem:[#allocation5 + $0x2448] sm:$0xff]
    %v1238 = vld [vmem:[#allocation5 + $0x2450] sm:$0xff]
    %v1239 = vld [vmem:[#allocation5 + $0x2458] sm:$0xff]
    %v1240 = vld [vmem:[#allocation5 + $0x2460] sm:$0xff]
    %v1241 = vld [vmem:[#allocation5 + $0x2468] sm:$0xff]
    %v1242 = vld [vmem:[#allocation5 + $0x2470] sm:$0xff]
    %v1243 = vld [vmem:[#allocation5 + $0x2478] sm:$0xff]
    %v1244 = vld [vmem:[#allocation5 + $0x2480] sm:$0xff]
    %v1245 = vld [vmem:[#allocation5 + $0x2488] sm:$0xff]
    %v1246 = vld [vmem:[#allocation5 + $0x2490] sm:$0xff]
    %v1247 = vld [vmem:[#allocation5 + $0x2498] sm:$0xff]
    %v1248 = vld [vmem:[#allocation5 + $0x24a0] sm:$0xff]
    %v1249 = vld [vmem:[#allocation5 + $0x24a8] sm:$0xff]
    %v1250 = vld [vmem:[#allocation5 + $0x24b0] sm:$0xff]
    %v1251 = vld [vmem:[#allocation5 + $0x24b8] sm:$0xff]
    %v1252 = vld [vmem:[#allocation5 + $0x24c0] sm:$0xff]
    %v1253 = vld [vmem:[#allocation5 + $0x24c8] sm:$0xff]
    %v1254 = vld [vmem:[#allocation5 + $0x24d0] sm:$0xff]
    %v1255 = vld [vmem:[#allocation5 + $0x24d8] sm:$0xff]
    %v1256 = vld [vmem:[#allocation5 + $0x24e0] sm:$0xff]
    %v1257 = vld [vmem:[#allocation5 + $0x24e8] sm:$0xff]
    %v1258 = vld [vmem:[#allocation5 + $0x24f0] sm:$0xff]
    %v1259 = vld [vmem:[#allocation5 + $0x24f8] sm:$0xff]
    %v1260 = vld [vmem:[#allocation5 + $0x2500] sm:$0xff]
    %v1261 = vld [vmem:[#allocation5 + $0x2508] sm:$0xff]
    %v1262 = vld [vmem:[#allocation5 + $0x2510] sm:$0xff]
    %v1263 = vld [vmem:[#allocation5 + $0x2518] sm:$0xff]
    %v1264 = vld [vmem:[#allocation5 + $0x2520] sm:$0xff]
    %v1265 = vld [vmem:[#allocation5 + $0x2528] sm:$0xff]
    %v1266 = vld [vmem:[#allocation5 + $0x2530] sm:$0xff]
    %v1267 = vld [vmem:[#allocation5 + $0x2538] sm:$0xff]
    %v1268 = vld [vmem:[#allocation5 + $0x2540] sm:$0xff]
    %v1269 = vld [vmem:[#allocation5 + $0x2548] sm:$0xff]
    %v1270 = vld [vmem:[#allocation5 + $0x2550] sm:$0xff]
    %v1271 = vld [vmem:[#allocation5 + $0x2558] sm:$0xff]
    %v1272 = vld [vmem:[#allocation5 + $0x2560] sm:$0xff]
    %v1273 = vld [vmem:[#allocation5 + $0x2568] sm:$0xff]
    %v1274 = vld [vmem:[#allocation5 + $0x2570] sm:$0xff]
    %v1275 = vld [vmem:[#allocation5 + $0x2578] sm:$0xff]
    %v1276 = vld [vmem:[#allocation5 + $0x2580] sm:$0xff]
    %v1277 = vld [vmem:[#allocation5 + $0x2588] sm:$0xff]
    %v1278 = vld [vmem:[#allocation5 + $0x2590] sm:$0xff]
    %v1279 = vld [vmem:[#allocation5 + $0x2598] sm:$0xff]
    %v1280 = vld [vmem:[#allocation5 + $0x25a0] sm:$0xff]
    %v1281 = vld [vmem:[#allocation5 + $0x25a8] sm:$0xff]
    %v1282 = vld [vmem:[#allocation5 + $0x25b0] sm:$0xff]
    %v1283 = vld [vmem:[#allocation5 + $0x25b8] sm:$0xff]
    %v1284 = vld [vmem:[#allocation5 + $0x25c0] sm:$0xff]
    %v1285 = vld [vmem:[#allocation5 + $0x25c8] sm:$0xff]
    %v1286 = vld [vmem:[#allocation5 + $0x25d0] sm:$0xff]
    %v1287 = vld [vmem:[#allocation5 + $0x25d8] sm:$0xff]
    %v1288 = vld [vmem:[#allocation5 + $0x25e0] sm:$0xff]
    %v1289 = vld [vmem:[#allocation5 + $0x25e8] sm:$0xff]
    %v1290 = vld [vmem:[#allocation5 + $0x25f0] sm:$0xff]
    %v1291 = vld [vmem:[#allocation5 + $0x25f8] sm:$0xff]
    %v1292 = vld [vmem:[#allocation5 + $0x2600] sm:$0xff]
    %v1293 = vld [vmem:[#allocation5 + $0x2608] sm:$0xff]
    %v1294 = vld [vmem:[#allocation5 + $0x2610] sm:$0xff]
    %v1295 = vld [vmem:[#allocation5 + $0x2618] sm:$0xff]
    %v1296 = vld [vmem:[#allocation5 + $0x2620] sm:$0xff]
    %v1297 = vld [vmem:[#allocation5 + $0x2628] sm:$0xff]
    %v1298 = vld [vmem:[#allocation5 + $0x2630] sm:$0xff]
    %v1299 = vld [vmem:[#allocation5 + $0x2638] sm:$0xff]
    %v1300 = vld [vmem:[#allocation5 + $0x2640] sm:$0xff]
    %v1301 = vld [vmem:[#allocation5 + $0x2648] sm:$0xff]
    %v1302 = vld [vmem:[#allocation5 + $0x2650] sm:$0xff]
    %v1303 = vld [vmem:[#allocation5 + $0x2658] sm:$0xff]
    %v1304 = vld [vmem:[#allocation5 + $0x2660] sm:$0xff]
    %v1305 = vld [vmem:[#allocation5 + $0x2668] sm:$0xff]
    %v1306 = vld [vmem:[#allocation5 + $0x2670] sm:$0xff]
    %v1307 = vld [vmem:[#allocation5 + $0x2678] sm:$0xff]
    %v1308 = vld [vmem:[#allocation5 + $0x2680] sm:$0xff]
    %v1309 = vld [vmem:[#allocation5 + $0x2688] sm:$0xff]
    %v1310 = vld [vmem:[#allocation5 + $0x2690] sm:$0xff]
    %v1311 = vld [vmem:[#allocation5 + $0x2698] sm:$0xff]
    %v1312 = vld [vmem:[#allocation5 + $0x26a0] sm:$0xff]
    %v1313 = vld [vmem:[#allocation5 + $0x26a8] sm:$0xff]
    %v1314 = vld [vmem:[#allocation5 + $0x26b0] sm:$0xff]
    %v1315 = vld [vmem:[#allocation5 + $0x26b8] sm:$0xff]
    %v1316 = vld [vmem:[#allocation5 + $0x26c0] sm:$0xff]
    %v1317 = vld [vmem:[#allocation5 + $0x26c8] sm:$0xff]
    %v1318 = vld [vmem:[#allocation5 + $0x26d0] sm:$0xff]
    %v1319 = vld [vmem:[#allocation5 + $0x26d8] sm:$0xff]
    %v1320 = vld [vmem:[#allocation5 + $0x26e0] sm:$0xff]
    %v1321 = vld [vmem:[#allocation5 + $0x26e8] sm:$0xff]
    %v1322 = vld [vmem:[#allocation5 + $0x26f0] sm:$0xff]
    %v1323 = vld [vmem:[#allocation5 + $0x26f8] sm:$0xff]
    %v1324 = vld [vmem:[#allocation5 + $0x2700] sm:$0xff]
    %v1325 = vld [vmem:[#allocation5 + $0x2708] sm:$0xff]
    %v1326 = vld [vmem:[#allocation5 + $0x2710] sm:$0xff]
    %v1327 = vld [vmem:[#allocation5 + $0x2718] sm:$0xff]
    %v1328 = vld [vmem:[#allocation5 + $0x2720] sm:$0xff]
    %v1329 = vld [vmem:[#allocation5 + $0x2728] sm:$0xff]
    %v1330 = vld [vmem:[#allocation5 + $0x2730] sm:$0xff]
    %v1331 = vld [vmem:[#allocation5 + $0x2738] sm:$0xff]
    %v1332 = vld [vmem:[#allocation5 + $0x2740] sm:$0xff]
    %v1333 = vld [vmem:[#allocation5 + $0x2748] sm:$0xff]
    %v1334 = vld [vmem:[#allocation5 + $0x2750] sm:$0xff]
    %v1335 = vld [vmem:[#allocation5 + $0x2758] sm:$0xff]
    %v1336 = vld [vmem:[#allocation5 + $0x2760] sm:$0xff]
    %v1337 = vld [vmem:[#allocation5 + $0x2768] sm:$0xff]
    %v1338 = vld [vmem:[#allocation5 + $0x2770] sm:$0xff]
    %v1339 = vld [vmem:[#allocation5 + $0x2778] sm:$0xff]
    %v1340 = vld [vmem:[#allocation5 + $0x2780] sm:$0xff]
    %v1341 = vld [vmem:[#allocation5 + $0x2788] sm:$0xff]
    %v1342 = vld [vmem:[#allocation5 + $0x2790] sm:$0xff]
    %v1343 = vld [vmem:[#allocation5 + $0x2798] sm:$0xff]
    %v1344 = vld [vmem:[#allocation5 + $0x27a0] sm:$0xff]
    %v1345 = vld [vmem:[#allocation5 + $0x27a8] sm:$0xff]
    %v1346 = vld [vmem:[#allocation5 + $0x27b0] sm:$0xff]
    %v1347 = vld [vmem:[#allocation5 + $0x27b8] sm:$0xff]
    %v1348 = vld [vmem:[#allocation5 + $0x27c0] sm:$0xff]
    %v1349 = vld [vmem:[#allocation5 + $0x27c8] sm:$0xff]
    %v1350 = vld [vmem:[#allocation5 + $0x27d0] sm:$0xff]
    %v1351 = vld [vmem:[#allocation5 + $0x27d8] sm:$0xff]
    %v1352 = vld [vmem:[#allocation5 + $0x27e0] sm:$0xff]
    %v1353 = vld [vmem:[#allocation5 + $0x27e8] sm:$0xff]
    %v1354 = vld [vmem:[#allocation5 + $0x27f0] sm:$0xff]
    %v1355 = vld [vmem:[#allocation5 + $0x27f8] sm:$0xff]
    %v1356 = vld [vmem:[#allocation5 + $0x2800] sm:$0xff]
    %v1357 = vld [vmem:[#allocation5 + $0x2808] sm:$0xff]
    %v1358 = vld [vmem:[#allocation5 + $0x2810] sm:$0xff]
    %v1359 = vld [vmem:[#allocation5 + $0x2818] sm:$0xff]
    %v1360 = vld [vmem:[#allocation5 + $0x2820] sm:$0xff]
    %v1361 = vld [vmem:[#allocation5 + $0x2828] sm:$0xff]
    %v1362 = vld [vmem:[#allocation5 + $0x2830] sm:$0xff]
    %v1363 = vld [vmem:[#allocation5 + $0x2838] sm:$0xff]
    %v1364 = vld [vmem:[#allocation5 + $0x2840] sm:$0xff]
    %v1365 = vld [vmem:[#allocation5 + $0x2848] sm:$0xff]
    %v1366 = vld [vmem:[#allocation5 + $0x2850] sm:$0xff]
    %v1367 = vld [vmem:[#allocation5 + $0x2858] sm:$0xff]
    %v1368 = vld [vmem:[#allocation5 + $0x2860] sm:$0xff]
    %v1369 = vld [vmem:[#allocation5 + $0x2868] sm:$0xff]
    %v1370 = vld [vmem:[#allocation5 + $0x2870] sm:$0xff]
    %v1371 = vld [vmem:[#allocation5 + $0x2878] sm:$0xff]
    %v1372 = vld [vmem:[#allocation5 + $0x2880] sm:$0xff]
    %v1373 = vld [vmem:[#allocation5 + $0x2888] sm:$0xff]
    %v1374 = vld [vmem:[#allocation5 + $0x2890] sm:$0xff]
    %v1375 = vld [vmem:[#allocation5 + $0x2898] sm:$0xff]
    %v1376 = vld [vmem:[#allocation5 + $0x28a0] sm:$0xff]
    %v1377 = vld [vmem:[#allocation5 + $0x28a8] sm:$0xff]
    %v1378 = vld [vmem:[#allocation5 + $0x28b0] sm:$0xff]
    %v1379 = vld [vmem:[#allocation5 + $0x28b8] sm:$0xff]
    %v1380 = vld [vmem:[#allocation5 + $0x28c0] sm:$0xff]
    %v1381 = vld [vmem:[#allocation5 + $0x28c8] sm:$0xff]
    %v1382 = vld [vmem:[#allocation5 + $0x28d0] sm:$0xff]
    %v1383 = vld [vmem:[#allocation5 + $0x28d8] sm:$0xff]
    %v1384 = vld [vmem:[#allocation5 + $0x28e0] sm:$0xff]
    %v1385 = vld [vmem:[#allocation5 + $0x28e8] sm:$0xff]
    %v1386 = vld [vmem:[#allocation5 + $0x28f0] sm:$0xff]
    %v1387 = vld [vmem:[#allocation5 + $0x28f8] sm:$0xff]
    %v1388 = vld [vmem:[#allocation5 + $0x2900] sm:$0xff]
    %v1389 = vld [vmem:[#allocation5 + $0x2908] sm:$0xff]
    %v1390 = vld [vmem:[#allocation5 + $0x2910] sm:$0xff]
    %v1391 = vld [vmem:[#allocation5 + $0x2918] sm:$0xff]
    %v1392 = vld [vmem:[#allocation5 + $0x2920] sm:$0xff]
    %v1393 = vld [vmem:[#allocation5 + $0x2928] sm:$0xff]
    %v1394 = vld [vmem:[#allocation5 + $0x2930] sm:$0xff]
    %v1395 = vld [vmem:[#allocation5 + $0x2938] sm:$0xff]
    %v1396 = vld [vmem:[#allocation5 + $0x2940] sm:$0xff]
    %v1397 = vld [vmem:[#allocation5 + $0x2948] sm:$0xff]
    %v1398 = vld [vmem:[#allocation5 + $0x2950] sm:$0xff]
    %v1399 = vld [vmem:[#allocation5 + $0x2958] sm:$0xff]
    %v1400 = vld [vmem:[#allocation5 + $0x2960] sm:$0xff]
    %v1401 = vld [vmem:[#allocation5 + $0x2968] sm:$0xff]
    %v1402 = vld [vmem:[#allocation5 + $0x2970] sm:$0xff]
    %v1403 = vld [vmem:[#allocation5 + $0x2978] sm:$0xff]
    %v1404 = vld [vmem:[#allocation5 + $0x2980] sm:$0xff]
    %v1405 = vld [vmem:[#allocation5 + $0x2988] sm:$0xff]
    %v1406 = vld [vmem:[#allocation5 + $0x2990] sm:$0xff]
    %v1407 = vld [vmem:[#allocation5 + $0x2998] sm:$0xff]
    %v1408 = vld [vmem:[#allocation5 + $0x29a0] sm:$0xff]
    %v1409 = vld [vmem:[#allocation5 + $0x29a8] sm:$0xff]
    %v1410 = vld [vmem:[#allocation5 + $0x29b0] sm:$0xff]
    %v1411 = vld [vmem:[#allocation5 + $0x29b8] sm:$0xff]
    %v1412 = vld [vmem:[#allocation5 + $0x29c0] sm:$0xff]
    %v1413 = vld [vmem:[#allocation5 + $0x29c8] sm:$0xff]
    %v1414 = vld [vmem:[#allocation5 + $0x29d0] sm:$0xff]
    %v1415 = vld [vmem:[#allocation5 + $0x29d8] sm:$0xff]
    %v1416 = vld [vmem:[#allocation5 + $0x29e0] sm:$0xff]
    %v1417 = vld [vmem:[#allocation5 + $0x29e8] sm:$0xff]
    %v1418 = vld [vmem:[#allocation5 + $0x29f0] sm:$0xff]
    %v1419 = vld [vmem:[#allocation5 + $0x29f8] sm:$0xff]
    %v1420 = vld [vmem:[#allocation5 + $0x2a00] sm:$0xff]
    %v1421 = vld [vmem:[#allocation5 + $0x2a08] sm:$0xff]
    %v1422 = vld [vmem:[#allocation5 + $0x2a10] sm:$0xff]
    %v1423 = vld [vmem:[#allocation5 + $0x2a18] sm:$0xff]
    %v1424 = vld [vmem:[#allocation5 + $0x2a20] sm:$0xff]
    %v1425 = vld [vmem:[#allocation5 + $0x2a28] sm:$0xff]
    %v1426 = vld [vmem:[#allocation5 + $0x2a30] sm:$0xff]
    %v1427 = vld [vmem:[#allocation5 + $0x2a38] sm:$0xff]
    %v1428 = vld [vmem:[#allocation5 + $0x2a40] sm:$0xff]
    %v1429 = vld [vmem:[#allocation5 + $0x2a48] sm:$0xff]
    %v1430 = vld [vmem:[#allocation5 + $0x2a50] sm:$0xff]
    %v1431 = vld [vmem:[#allocation5 + $0x2a58] sm:$0xff]
    %v1432 = vld [vmem:[#allocation5 + $0x2a60] sm:$0xff]
    %v1433 = vld [vmem:[#allocation5 + $0x2a68] sm:$0xff]
    %v1434 = vld [vmem:[#allocation5 + $0x2a70] sm:$0xff]
    %v1435 = vld [vmem:[#allocation5 + $0x2a78] sm:$0xff]
    %v1436 = vld [vmem:[#allocation5 + $0x2a80] sm:$0xff]
    %v1437 = vld [vmem:[#allocation5 + $0x2a88] sm:$0xff]
    %v1438 = vld [vmem:[#allocation5 + $0x2a90] sm:$0xff]
    %v1439 = vld [vmem:[#allocation5 + $0x2a98] sm:$0xff]
    %v1440 = vld [vmem:[#allocation5 + $0x2aa0] sm:$0xff]
    %v1441 = vld [vmem:[#allocation5 + $0x2aa8] sm:$0xff]
    %v1442 = vld [vmem:[#allocation5 + $0x2ab0] sm:$0xff]
    %v1443 = vld [vmem:[#allocation5 + $0x2ab8] sm:$0xff]
    %v1444 = vld [vmem:[#allocation5 + $0x2ac0] sm:$0xff]
    %v1445 = vld [vmem:[#allocation5 + $0x2ac8] sm:$0xff]
    %v1446 = vld [vmem:[#allocation5 + $0x2ad0] sm:$0xff]
    %v1447 = vld [vmem:[#allocation5 + $0x2ad8] sm:$0xff]
    %v1448 = vld [vmem:[#allocation5 + $0x2ae0] sm:$0xff]
    %v1449 = vld [vmem:[#allocation5 + $0x2ae8] sm:$0xff]
    %v1450 = vld [vmem:[#allocation5 + $0x2af0] sm:$0xff]
    %v1451 = vld [vmem:[#allocation5 + $0x2af8] sm:$0xff]
    %v1452 = vld [vmem:[#allocation5 + $0x2b00] sm:$0xff]
    %v1453 = vld [vmem:[#allocation5 + $0x2b08] sm:$0xff]
    %v1454 = vld [vmem:[#allocation5 + $0x2b10] sm:$0xff]
    %v1455 = vld [vmem:[#allocation5 + $0x2b18] sm:$0xff]
    %v1456 = vld [vmem:[#allocation5 + $0x2b20] sm:$0xff]
    %v1457 = vld [vmem:[#allocation5 + $0x2b28] sm:$0xff]
    %v1458 = vld [vmem:[#allocation5 + $0x2b30] sm:$0xff]
    %v1459 = vld [vmem:[#allocation5 + $0x2b38] sm:$0xff]
    %v1460 = vld [vmem:[#allocation5 + $0x2b40] sm:$0xff]
    %v1461 = vld [vmem:[#allocation5 + $0x2b48] sm:$0xff]
    %v1462 = vld [vmem:[#allocation5 + $0x2b50] sm:$0xff]
    %v1463 = vld [vmem:[#allocation5 + $0x2b58] sm:$0xff]
    %v1464 = vld [vmem:[#allocation5 + $0x2b60] sm:$0xff]
    %v1465 = vld [vmem:[#allocation5 + $0x2b68] sm:$0xff]
    %v1466 = vld [vmem:[#allocation5 + $0x2b70] sm:$0xff]
    %v1467 = vld [vmem:[#allocation5 + $0x2b78] sm:$0xff]
    %v1468 = vld [vmem:[#allocation5 + $0x2b80] sm:$0xff]
    %v1469 = vld [vmem:[#allocation5 + $0x2b88] sm:$0xff]
    %v1470 = vld [vmem:[#allocation5 + $0x2b90] sm:$0xff]
    %v1471 = vld [vmem:[#allocation5 + $0x2b98] sm:$0xff]
    %v1472 = vld [vmem:[#allocation5 + $0x2ba0] sm:$0xff]
    %v1473 = vld [vmem:[#allocation5 + $0x2ba8] sm:$0xff]
    %v1474 = vld [vmem:[#allocation5 + $0x2bb0] sm:$0xff]
    %v1475 = vld [vmem:[#allocation5 + $0x2bb8] sm:$0xff]
    %v1476 = vld [vmem:[#allocation5 + $0x2bc0] sm:$0xff]
    %v1477 = vld [vmem:[#allocation5 + $0x2bc8] sm:$0xff]
    %v1478 = vld [vmem:[#allocation5 + $0x2bd0] sm:$0xff]
    %v1479 = vld [vmem:[#allocation5 + $0x2bd8] sm:$0xff]
    %v1480 = vld [vmem:[#allocation5 + $0x2be0] sm:$0xff]
    %v1481 = vld [vmem:[#allocation5 + $0x2be8] sm:$0xff]
    %v1482 = vld [vmem:[#allocation5 + $0x2bf0] sm:$0xff]
    %v1483 = vld [vmem:[#allocation5 + $0x2bf8] sm:$0xff]
    %v1484 = vld [vmem:[#allocation5 + $0x2c00] sm:$0xff]
    %v1485 = vld [vmem:[#allocation5 + $0x2c08] sm:$0xff]
    %v1486 = vld [vmem:[#allocation5 + $0x2c10] sm:$0xff]
    %v1487 = vld [vmem:[#allocation5 + $0x2c18] sm:$0xff]
    %v1488 = vld [vmem:[#allocation5 + $0x2c20] sm:$0xff]
    %v1489 = vld [vmem:[#allocation5 + $0x2c28] sm:$0xff]
    %v1490 = vld [vmem:[#allocation5 + $0x2c30] sm:$0xff]
    %v1491 = vld [vmem:[#allocation5 + $0x2c38] sm:$0xff]
    %v1492 = vld [vmem:[#allocation5 + $0x2c40] sm:$0xff]
    %v1493 = vld [vmem:[#allocation5 + $0x2c48] sm:$0xff]
    %v1494 = vld [vmem:[#allocation5 + $0x2c50] sm:$0xff]
    %v1495 = vld [vmem:[#allocation5 + $0x2c58] sm:$0xff]
    %v1496 = vld [vmem:[#allocation5 + $0x2c60] sm:$0xff]
    %v1497 = vld [vmem:[#allocation5 + $0x2c68] sm:$0xff]
    %v1498 = vld [vmem:[#allocation5 + $0x2c70] sm:$0xff]
    %v1499 = vld [vmem:[#allocation5 + $0x2c78] sm:$0xff]
    %v1500 = vld [vmem:[#allocation5 + $0x2c80] sm:$0xff]
    %v1501 = vld [vmem:[#allocation5 + $0x2c88] sm:$0xff]
    %v1502 = vld [vmem:[#allocation5 + $0x2c90] sm:$0xff]
    %v1503 = vld [vmem:[#allocation5 + $0x2c98] sm:$0xff]
    %v1504 = vld [vmem:[#allocation5 + $0x2ca0] sm:$0xff]
    %v1505 = vld [vmem:[#allocation5 + $0x2ca8] sm:$0xff]
    %v1506 = vld [vmem:[#allocation5 + $0x2cb0] sm:$0xff]
    %v1507 = vld [vmem:[#allocation5 + $0x2cb8] sm:$0xff]
    %v1508 = vld [vmem:[#allocation5 + $0x2cc0] sm:$0xff]
    %v1509 = vld [vmem:[#allocation5 + $0x2cc8] sm:$0xff]
    %v1510 = vld [vmem:[#allocation5 + $0x2cd0] sm:$0xff]
    %v1511 = vld [vmem:[#allocation5 + $0x2cd8] sm:$0xff]
    %v1512 = vld [vmem:[#allocation5 + $0x2ce0] sm:$0xff]
    %v1513 = vld [vmem:[#allocation5 + $0x2ce8] sm:$0xff]
    %v1514 = vld [vmem:[#allocation5 + $0x2cf0] sm:$0xff]
    %v1515 = vld [vmem:[#allocation5 + $0x2cf8] sm:$0xff]
    %v1516 = vld [vmem:[#allocation5 + $0x2d00] sm:$0xff]
    %v1517 = vld [vmem:[#allocation5 + $0x2d08] sm:$0xff]
    %v1518 = vld [vmem:[#allocation5 + $0x2d10] sm:$0xff]
    %v1519 = vld [vmem:[#allocation5 + $0x2d18] sm:$0xff]
    %v1520 = vld [vmem:[#allocation5 + $0x2d20] sm:$0xff]
    %v1521 = vld [vmem:[#allocation5 + $0x2d28] sm:$0xff]
    %v1522 = vld [vmem:[#allocation5 + $0x2d30] sm:$0xff]
    %v1523 = vld [vmem:[#allocation5 + $0x2d38] sm:$0xff]
    %v1524 = vld [vmem:[#allocation5 + $0x2d40] sm:$0xff]
    %v1525 = vld [vmem:[#allocation5 + $0x2d48] sm:$0xff]
    %v1526 = vld [vmem:[#allocation5 + $0x2d50] sm:$0xff]
    %v1527 = vld [vmem:[#allocation5 + $0x2d58] sm:$0xff]
    %v1528 = vld [vmem:[#allocation5 + $0x2d60] sm:$0xff]
    %v1529 = vld [vmem:[#allocation5 + $0x2d68] sm:$0xff]
    %v1530 = vld [vmem:[#allocation5 + $0x2d70] sm:$0xff]
    %v1531 = vld [vmem:[#allocation5 + $0x2d78] sm:$0xff]
    %v1532 = vld [vmem:[#allocation5 + $0x2d80] sm:$0xff]
    %v1533 = vld [vmem:[#allocation5 + $0x2d88] sm:$0xff]
    %v1534 = vld [vmem:[#allocation5 + $0x2d90] sm:$0xff]
    %v1535 = vld [vmem:[#allocation5 + $0x2d98] sm:$0xff]
    %v1536 = vld [vmem:[#allocation5 + $0x2da0] sm:$0xff]
    %v1537 = vld [vmem:[#allocation5 + $0x2da8] sm:$0xff]
    %v1538 = vld [vmem:[#allocation5 + $0x2db0] sm:$0xff]
    %v1539 = vld [vmem:[#allocation5 + $0x2db8] sm:$0xff]
    %v1540 = vld [vmem:[#allocation5 + $0x2dc0] sm:$0xff]
    %v1541 = vld [vmem:[#allocation5 + $0x2dc8] sm:$0xff]
    %v1542 = vld [vmem:[#allocation5 + $0x2dd0] sm:$0xff]
    %v1543 = vld [vmem:[#allocation5 + $0x2dd8] sm:$0xff]
    %v1544 = vld [vmem:[#allocation5 + $0x2de0] sm:$0xff]
    %v1545 = vld [vmem:[#allocation5 + $0x2de8] sm:$0xff]
    %v1546 = vld [vmem:[#allocation5 + $0x2df0] sm:$0xff]
    %v1547 = vld [vmem:[#allocation5 + $0x2df8] sm:$0xff]
    %v1548 = vld [vmem:[#allocation5 + $0x2e00] sm:$0xff]
    %v1549 = vld [vmem:[#allocation5 + $0x2e08] sm:$0xff]
    %v1550 = vld [vmem:[#allocation5 + $0x2e10] sm:$0xff]
    %v1551 = vld [vmem:[#allocation5 + $0x2e18] sm:$0xff]
    %v1552 = vld [vmem:[#allocation5 + $0x2e20] sm:$0xff]
    %v1553 = vld [vmem:[#allocation5 + $0x2e28] sm:$0xff]
    %v1554 = vld [vmem:[#allocation5 + $0x2e30] sm:$0xff]
    %v1555 = vld [vmem:[#allocation5 + $0x2e38] sm:$0xff]
    %v1556 = vld [vmem:[#allocation5 + $0x2e40] sm:$0xff]
    %v1557 = vld [vmem:[#allocation5 + $0x2e48] sm:$0xff]
    %v1558 = vld [vmem:[#allocation5 + $0x2e50] sm:$0xff]
    %v1559 = vld [vmem:[#allocation5 + $0x2e58] sm:$0xff]
    %v1560 = vld [vmem:[#allocation5 + $0x2e60] sm:$0xff]
    %v1561 = vld [vmem:[#allocation5 + $0x2e68] sm:$0xff]
    %v1562 = vld [vmem:[#allocation5 + $0x2e70] sm:$0xff]
    %v1563 = vld [vmem:[#allocation5 + $0x2e78] sm:$0xff]
    %v1564 = vld [vmem:[#allocation5 + $0x2e80] sm:$0xff]
    %v1565 = vld [vmem:[#allocation5 + $0x2e88] sm:$0xff]
    %v1566 = vld [vmem:[#allocation5 + $0x2e90] sm:$0xff]
    %v1567 = vld [vmem:[#allocation5 + $0x2e98] sm:$0xff]
    %v1568 = vld [vmem:[#allocation5 + $0x2ea0] sm:$0xff]
    %v1569 = vld [vmem:[#allocation5 + $0x2ea8] sm:$0xff]
    %v1570 = vld [vmem:[#allocation5 + $0x2eb0] sm:$0xff]
    %v1571 = vld [vmem:[#allocation5 + $0x2eb8] sm:$0xff]
    %v1572 = vld [vmem:[#allocation5 + $0x2ec0] sm:$0xff]
    %v1573 = vld [vmem:[#allocation5 + $0x2ec8] sm:$0xff]
    %v1574 = vld [vmem:[#allocation5 + $0x2ed0] sm:$0xff]
    %v1575 = vld [vmem:[#allocation5 + $0x2ed8] sm:$0xff]
    %v1576 = vld [vmem:[#allocation5 + $0x2ee0] sm:$0xff]
    %v1577 = vld [vmem:[#allocation5 + $0x2ee8] sm:$0xff]
    %v1578 = vld [vmem:[#allocation5 + $0x2ef0] sm:$0xff]
    %v1579 = vld [vmem:[#allocation5 + $0x2ef8] sm:$0xff]
    %v1580 = vld [vmem:[#allocation5 + $0x2f00] sm:$0xff]
    %v1581 = vld [vmem:[#allocation5 + $0x2f08] sm:$0xff]
    %v1582 = vld [vmem:[#allocation5 + $0x2f10] sm:$0xff]
    %v1583 = vld [vmem:[#allocation5 + $0x2f18] sm:$0xff]
    %v1584 = vld [vmem:[#allocation5 + $0x2f20] sm:$0xff]
    %v1585 = vld [vmem:[#allocation5 + $0x2f28] sm:$0xff]
    %v1586 = vld [vmem:[#allocation5 + $0x2f30] sm:$0xff]
    %v1587 = vld [vmem:[#allocation5 + $0x2f38] sm:$0xff]
    %v1588 = vld [vmem:[#allocation5 + $0x2f40] sm:$0xff]
    %v1589 = vld [vmem:[#allocation5 + $0x2f48] sm:$0xff]
    %v1590 = vld [vmem:[#allocation5 + $0x2f50] sm:$0xff]
    %v1591 = vld [vmem:[#allocation5 + $0x2f58] sm:$0xff]
    %v1592 = vld [vmem:[#allocation5 + $0x2f60] sm:$0xff]
    %v1593 = vld [vmem:[#allocation5 + $0x2f68] sm:$0xff]
    %v1594 = vld [vmem:[#allocation5 + $0x2f70] sm:$0xff]
    %v1595 = vld [vmem:[#allocation5 + $0x2f78] sm:$0xff]
    %v1596 = vld [vmem:[#allocation5 + $0x2f80] sm:$0xff]
    %v1597 = vld [vmem:[#allocation5 + $0x2f88] sm:$0xff]
    %v1598 = vld [vmem:[#allocation5 + $0x2f90] sm:$0xff]
    %v1599 = vld [vmem:[#allocation5 + $0x2f98] sm:$0xff]
    %v1600 = vld [vmem:[#allocation5 + $0x2fa0] sm:$0xff]
    %v1601 = vld [vmem:[#allocation5 + $0x2fa8] sm:$0xff]
    %v1602 = vld [vmem:[#allocation5 + $0x2fb0] sm:$0xff]
    %v1603 = vld [vmem:[#allocation5 + $0x2fb8] sm:$0xff]
    %v1604 = vld [vmem:[#allocation5 + $0x2fc0] sm:$0xff]
    %v1605 = vld [vmem:[#allocation5 + $0x2fc8] sm:$0xff]
    %v1606 = vld [vmem:[#allocation5 + $0x2fd0] sm:$0xff]
    %v1607 = vld [vmem:[#allocation5 + $0x2fd8] sm:$0xff]
    %v1608 = vld [vmem:[#allocation5 + $0x2fe0] sm:$0xff]
    %v1609 = vld [vmem:[#allocation5 + $0x2fe8] sm:$0xff]
    %v1610 = vld [vmem:[#allocation5 + $0x2ff0] sm:$0xff]
    %v1611 = vld [vmem:[#allocation5 + $0x2ff8] sm:$0xff]
    %v1612 = vld [vmem:[#allocation7] sm:$0x1]
    %v1614 = vlaneseq
    %v1615 = vshrl.u32 %v1614, 7
    %v1616 = vsub.s32 0, %v1615
    %v1617 = vrot.slane %v1612, %v1616
    %v1643 = vcombine.high %v52, %v52
    %v1645 = vunpack.c.l.s4 1983009808
    %v1646 = vunpack.c.0.s8 %v1645
    %v1647 = vlaneseq
    %v1648 = vshrl.u32 %v1647, 7
    %v1649 = vsub.s32 %v1646, %v1648
    %v1650 = vrot.slane %v52, %v1649
    %v1652 = vunpack.c.l.s4 1983009808
    %v1653 = vunpack.c.0.s8 %v1652
    %v1654 = vlaneseq
    %v1655 = vshrl.u32 %v1654, 7
    %v1656 = vsub.s32 %v1653, %v1655
    %v1657 = vrot.slane %v1643, %v1656
    %v1658 = vcombine.high %v1650, %v1650
    %v1659 = vcombine.high %v1657, %v1657
    %v1660 = vcombine.high %v53, %v53
    %v1662 = vunpack.c.l.s4 1983009808
    %v1663 = vunpack.c.0.s8 %v1662
    %v1664 = vlaneseq
    %v1665 = vshrl.u32 %v1664, 7
    %v1666 = vsub.s32 %v1663, %v1665
    %v1667 = vrot.slane %v53, %v1666
    %v1669 = vunpack.c.l.s4 1983009808
    %v1670 = vunpack.c.0.s8 %v1669
    %v1671 = vlaneseq
    %v1672 = vshrl.u32 %v1671, 7
    %v1673 = vsub.s32 %v1670, %v1672
    %v1674 = vrot.slane %v1660, %v1673
    %v1675 = vcombine.high %v1667, %v1667
    %v1676 = vcombine.high %v1674, %v1674
    %v1677 = vcombine.high %v54, %v54
    %v1679 = vunpack.c.l.s4 1983009808
    %v1680 = vunpack.c.0.s8 %v1679
    %v1681 = vlaneseq
    %v1682 = vshrl.u32 %v1681, 7
    %v1683 = vsub.s32 %v1680, %v1682
    %v1684 = vrot.slane %v54, %v1683
    %v1686 = vunpack.c.l.s4 1983009808
    %v1687 = vunpack.c.0.s8 %v1686
    %v1688 = vlaneseq
    %v1689 = vshrl.u32 %v1688, 7
    %v1690 = vsub.s32 %v1687, %v1689
    %v1691 = vrot.slane %v1677, %v1690
    %v1692 = vcombine.high %v1684, %v1684
    %v1693 = vcombine.high %v1691, %v1691
    %v1694 = vcombine.high %v55, %v55
    %v1696 = vunpack.c.l.s4 1983009808
    %v1697 = vunpack.c.0.s8 %v1696
    %v1698 = vlaneseq
    %v1699 = vshrl.u32 %v1698, 7
    %v1700 = vsub.s32 %v1697, %v1699
    %v1701 = vrot.slane %v55, %v1700
    %v1703 = vunpack.c.l.s4 1983009808
    %v1704 = vunpack.c.0.s8 %v1703
    %v1705 = vlaneseq
    %v1706 = vshrl.u32 %v1705, 7
    %v1707 = vsub.s32 %v1704, %v1706
    %v1708 = vrot.slane %v1694, %v1707
    %v1709 = vcombine.high %v1701, %v1701
    %v1710 = vcombine.high %v1708, %v1708
    %v1711 = vcombine.high %v56, %v56
    %v1713 = vunpack.c.l.s4 1983009808
    %v1714 = vunpack.c.0.s8 %v1713
    %v1715 = vlaneseq
    %v1716 = vshrl.u32 %v1715, 7
    %v1717 = vsub.s32 %v1714, %v1716
    %v1718 = vrot.slane %v56, %v1717
    %v1720 = vunpack.c.l.s4 1983009808
    %v1721 = vunpack.c.0.s8 %v1720
    %v1722 = vlaneseq
    %v1723 = vshrl.u32 %v1722, 7
    %v1724 = vsub.s32 %v1721, %v1723
    %v1725 = vrot.slane %v1711, %v1724
    %v1726 = vcombine.high %v1718, %v1718
    %v1727 = vcombine.high %v1725, %v1725
    %v1728 = vcombine.high %v57, %v57
    %v1730 = vunpack.c.l.s4 1983009808
    %v1731 = vunpack.c.0.s8 %v1730
    %v1732 = vlaneseq
    %v1733 = vshrl.u32 %v1732, 7
    %v1734 = vsub.s32 %v1731, %v1733
    %v1735 = vrot.slane %v57, %v1734
    %v1737 = vunpack.c.l.s4 1983009808
    %v1738 = vunpack.c.0.s8 %v1737
    %v1739 = vlaneseq
    %v1740 = vshrl.u32 %v1739, 7
    %v1741 = vsub.s32 %v1738, %v1740
    %v1742 = vrot.slane %v1728, %v1741
    %v1743 = vcombine.high %v1735, %v1735
    %v1744 = vcombine.high %v1742, %v1742
    %v1745 = vcombine.high %v58, %v58
    %v1747 = vunpack.c.l.s4 1983009808
    %v1748 = vunpack.c.0.s8 %v1747
    %v1749 = vlaneseq
    %v1750 = vshrl.u32 %v1749, 7
    %v1751 = vsub.s32 %v1748, %v1750
    %v1752 = vrot.slane %v58, %v1751
    %v1754 = vunpack.c.l.s4 1983009808
    %v1755 = vunpack.c.0.s8 %v1754
    %v1756 = vlaneseq
    %v1757 = vshrl.u32 %v1756, 7
    %v1758 = vsub.s32 %v1755, %v1757
    %v1759 = vrot.slane %v1745, %v1758
    %v1760 = vcombine.high %v1752, %v1752
    %v1761 = vcombine.high %v1759, %v1759
    %v1762 = vcombine.high %v59, %v59
    %v1764 = vunpack.c.l.s4 1983009808
    %v1765 = vunpack.c.0.s8 %v1764
    %v1766 = vlaneseq
    %v1767 = vshrl.u32 %v1766, 7
    %v1768 = vsub.s32 %v1765, %v1767
    %v1769 = vrot.slane %v59, %v1768
    %v1771 = vunpack.c.l.s4 1983009808
    %v1772 = vunpack.c.0.s8 %v1771
    %v1773 = vlaneseq
    %v1774 = vshrl.u32 %v1773, 7
    %v1775 = vsub.s32 %v1772, %v1774
    %v1776 = vrot.slane %v1762, %v1775
    %v1777 = vcombine.high %v1769, %v1769
    %v1778 = vcombine.high %v1776, %v1776
    %v1779 = vcombine.high %v60, %v60
    %v1781 = vunpack.c.l.s4 1983009808
    %v1782 = vunpack.c.0.s8 %v1781
    %v1783 = vlaneseq
    %v1784 = vshrl.u32 %v1783, 7
    %v1785 = vsub.s32 %v1782, %v1784
    %v1786 = vrot.slane %v60, %v1785
    %v1788 = vunpack.c.l.s4 1983009808
    %v1789 = vunpack.c.0.s8 %v1788
    %v1790 = vlaneseq
    %v1791 = vshrl.u32 %v1790, 7
    %v1792 = vsub.s32 %v1789, %v1791
    %v1793 = vrot.slane %v1779, %v1792
    %v1794 = vcombine.high %v1786, %v1786
    %v1795 = vcombine.high %v1793, %v1793
    %v1796 = vcombine.high %v61, %v61
    %v1798 = vunpack.c.l.s4 1983009808
    %v1799 = vunpack.c.0.s8 %v1798
    %v1800 = vlaneseq
    %v1801 = vshrl.u32 %v1800, 7
    %v1802 = vsub.s32 %v1799, %v1801
    %v1803 = vrot.slane %v61, %v1802
    %v1805 = vunpack.c.l.s4 1983009808
    %v1806 = vunpack.c.0.s8 %v1805
    %v1807 = vlaneseq
    %v1808 = vshrl.u32 %v1807, 7
    %v1809 = vsub.s32 %v1806, %v1808
    %v1810 = vrot.slane %v1796, %v1809
    %v1811 = vcombine.high %v1803, %v1803
    %v1812 = vcombine.high %v1810, %v1810
    %v1813 = vcombine.high %v62, %v62
    %v1815 = vunpack.c.l.s4 1983009808
    %v1816 = vunpack.c.0.s8 %v1815
    %v1817 = vlaneseq
    %v1818 = vshrl.u32 %v1817, 7
    %v1819 = vsub.s32 %v1816, %v1818
    %v1820 = vrot.slane %v62, %v1819
    %v1822 = vunpack.c.l.s4 1983009808
    %v1823 = vunpack.c.0.s8 %v1822
    %v1824 = vlaneseq
    %v1825 = vshrl.u32 %v1824, 7
    %v1826 = vsub.s32 %v1823, %v1825
    %v1827 = vrot.slane %v1813, %v1826
    %v1828 = vcombine.high %v1820, %v1820
    %v1829 = vcombine.high %v1827, %v1827
    %v1830 = vcombine.high %v63, %v63
    %v1832 = vunpack.c.l.s4 1983009808
    %v1833 = vunpack.c.0.s8 %v1832
    %v1834 = vlaneseq
    %v1835 = vshrl.u32 %v1834, 7
    %v1836 = vsub.s32 %v1833, %v1835
    %v1837 = vrot.slane %v63, %v1836
    %v1839 = vunpack.c.l.s4 1983009808
    %v1840 = vunpack.c.0.s8 %v1839
    %v1841 = vlaneseq
    %v1842 = vshrl.u32 %v1841, 7
    %v1843 = vsub.s32 %v1840, %v1842
    %v1844 = vrot.slane %v1830, %v1843
    %v1845 = vcombine.high %v1837, %v1837
    %v1846 = vcombine.high %v1844, %v1844
    %v1847 = vcombine.high %v64, %v64
    %v1849 = vunpack.c.l.s4 1983009808
    %v1850 = vunpack.c.0.s8 %v1849
    %v1851 = vlaneseq
    %v1852 = vshrl.u32 %v1851, 7
    %v1853 = vsub.s32 %v1850, %v1852
    %v1854 = vrot.slane %v64, %v1853
    %v1856 = vunpack.c.l.s4 1983009808
    %v1857 = vunpack.c.0.s8 %v1856
    %v1858 = vlaneseq
    %v1859 = vshrl.u32 %v1858, 7
    %v1860 = vsub.s32 %v1857, %v1859
    %v1861 = vrot.slane %v1847, %v1860
    %v1862 = vcombine.high %v1854, %v1854
    %v1863 = vcombine.high %v1861, %v1861
    %v1864 = vcombine.high %v65, %v65
    %v1866 = vunpack.c.l.s4 1983009808
    %v1867 = vunpack.c.0.s8 %v1866
    %v1868 = vlaneseq
    %v1869 = vshrl.u32 %v1868, 7
    %v1870 = vsub.s32 %v1867, %v1869
    %v1871 = vrot.slane %v65, %v1870
    %v1873 = vunpack.c.l.s4 1983009808
    %v1874 = vunpack.c.0.s8 %v1873
    %v1875 = vlaneseq
    %v1876 = vshrl.u32 %v1875, 7
    %v1877 = vsub.s32 %v1874, %v1876
    %v1878 = vrot.slane %v1864, %v1877
    %v1879 = vcombine.high %v1871, %v1871
    %v1880 = vcombine.high %v1878, %v1878
    %v1881 = vcombine.high %v66, %v66
    %v1883 = vunpack.c.l.s4 1983009808
    %v1884 = vunpack.c.0.s8 %v1883
    %v1885 = vlaneseq
    %v1886 = vshrl.u32 %v1885, 7
    %v1887 = vsub.s32 %v1884, %v1886
    %v1888 = vrot.slane %v66, %v1887
    %v1890 = vunpack.c.l.s4 1983009808
    %v1891 = vunpack.c.0.s8 %v1890
    %v1892 = vlaneseq
    %v1893 = vshrl.u32 %v1892, 7
    %v1894 = vsub.s32 %v1891, %v1893
    %v1895 = vrot.slane %v1881, %v1894
    %v1896 = vcombine.high %v1888, %v1888
    %v1897 = vcombine.high %v1895, %v1895
    %v1898 = vcombine.high %v67, %v67
    %v1900 = vunpack.c.l.s4 1983009808
    %v1901 = vunpack.c.0.s8 %v1900
    %v1902 = vlaneseq
    %v1903 = vshrl.u32 %v1902, 7
    %v1904 = vsub.s32 %v1901, %v1903
    %v1905 = vrot.slane %v67, %v1904
    %v1907 = vunpack.c.l.s4 1983009808
    %v1908 = vunpack.c.0.s8 %v1907
    %v1909 = vlaneseq
    %v1910 = vshrl.u32 %v1909, 7
    %v1911 = vsub.s32 %v1908, %v1910
    %v1912 = vrot.slane %v1898, %v1911
    %v1913 = vcombine.high %v1905, %v1905
    %v1914 = vcombine.high %v1912, %v1912
    %v1915 = vcombine.high %v68, %v68
    %v1917 = vunpack.c.l.s4 1983009808
    %v1918 = vunpack.c.0.s8 %v1917
    %v1919 = vlaneseq
    %v1920 = vshrl.u32 %v1919, 7
    %v1921 = vsub.s32 %v1918, %v1920
    %v1922 = vrot.slane %v68, %v1921
    %v1924 = vunpack.c.l.s4 1983009808
    %v1925 = vunpack.c.0.s8 %v1924
    %v1926 = vlaneseq
    %v1927 = vshrl.u32 %v1926, 7
    %v1928 = vsub.s32 %v1925, %v1927
    %v1929 = vrot.slane %v1915, %v1928
    %v1930 = vcombine.high %v1922, %v1922
    %v1931 = vcombine.high %v1929, %v1929
    %v1932 = vcombine.high %v69, %v69
    %v1934 = vunpack.c.l.s4 1983009808
    %v1935 = vunpack.c.0.s8 %v1934
    %v1936 = vlaneseq
    %v1937 = vshrl.u32 %v1936, 7
    %v1938 = vsub.s32 %v1935, %v1937
    %v1939 = vrot.slane %v69, %v1938
    %v1941 = vunpack.c.l.s4 1983009808
    %v1942 = vunpack.c.0.s8 %v1941
    %v1943 = vlaneseq
    %v1944 = vshrl.u32 %v1943, 7
    %v1945 = vsub.s32 %v1942, %v1944
    %v1946 = vrot.slane %v1932, %v1945
    %v1947 = vcombine.high %v1939, %v1939
    %v1948 = vcombine.high %v1946, %v1946
    %v1949 = vcombine.high %v70, %v70
    %v1951 = vunpack.c.l.s4 1983009808
    %v1952 = vunpack.c.0.s8 %v1951
    %v1953 = vlaneseq
    %v1954 = vshrl.u32 %v1953, 7
    %v1955 = vsub.s32 %v1952, %v1954
    %v1956 = vrot.slane %v70, %v1955
    %v1958 = vunpack.c.l.s4 1983009808
    %v1959 = vunpack.c.0.s8 %v1958
    %v1960 = vlaneseq
    %v1961 = vshrl.u32 %v1960, 7
    %v1962 = vsub.s32 %v1959, %v1961
    %v1963 = vrot.slane %v1949, %v1962
    %v1964 = vcombine.high %v1956, %v1956
    %v1965 = vcombine.high %v1963, %v1963
    %v1966 = vcombine.high %v71, %v71
    %v1968 = vunpack.c.l.s4 1983009808
    %v1969 = vunpack.c.0.s8 %v1968
    %v1970 = vlaneseq
    %v1971 = vshrl.u32 %v1970, 7
    %v1972 = vsub.s32 %v1969, %v1971
    %v1973 = vrot.slane %v71, %v1972
    %v1975 = vunpack.c.l.s4 1983009808
    %v1976 = vunpack.c.0.s8 %v1975
    %v1977 = vlaneseq
    %v1978 = vshrl.u32 %v1977, 7
    %v1979 = vsub.s32 %v1976, %v1978
    %v1980 = vrot.slane %v1966, %v1979
    %v1981 = vcombine.high %v1973, %v1973
    %v1982 = vcombine.high %v1980, %v1980
    %v1983 = vcombine.high %v72, %v72
    %v1985 = vunpack.c.l.s4 1983009808
    %v1986 = vunpack.c.0.s8 %v1985
    %v1987 = vlaneseq
    %v1988 = vshrl.u32 %v1987, 7
    %v1989 = vsub.s32 %v1986, %v1988
    %v1990 = vrot.slane %v72, %v1989
    %v1992 = vunpack.c.l.s4 1983009808
    %v1993 = vunpack.c.0.s8 %v1992
    %v1994 = vlaneseq
    %v1995 = vshrl.u32 %v1994, 7
    %v1996 = vsub.s32 %v1993, %v1995
    %v1997 = vrot.slane %v1983, %v1996
    %v1998 = vcombine.high %v1990, %v1990
    %v1999 = vcombine.high %v1997, %v1997
    %v2000 = vcombine.high %v73, %v73
    %v2002 = vunpack.c.l.s4 1983009808
    %v2003 = vunpack.c.0.s8 %v2002
    %v2004 = vlaneseq
    %v2005 = vshrl.u32 %v2004, 7
    %v2006 = vsub.s32 %v2003, %v2005
    %v2007 = vrot.slane %v73, %v2006
    %v2009 = vunpack.c.l.s4 1983009808
    %v2010 = vunpack.c.0.s8 %v2009
    %v2011 = vlaneseq
    %v2012 = vshrl.u32 %v2011, 7
    %v2013 = vsub.s32 %v2010, %v2012
    %v2014 = vrot.slane %v2000, %v2013
    %v2015 = vcombine.high %v2007, %v2007
    %v2016 = vcombine.high %v2014, %v2014
    %v2017 = vcombine.high %v74, %v74
    %v2019 = vunpack.c.l.s4 1983009808
    %v2020 = vunpack.c.0.s8 %v2019
    %v2021 = vlaneseq
    %v2022 = vshrl.u32 %v2021, 7
    %v2023 = vsub.s32 %v2020, %v2022
    %v2024 = vrot.slane %v74, %v2023
    %v2026 = vunpack.c.l.s4 1983009808
    %v2027 = vunpack.c.0.s8 %v2026
    %v2028 = vlaneseq
    %v2029 = vshrl.u32 %v2028, 7
    %v2030 = vsub.s32 %v2027, %v2029
    %v2031 = vrot.slane %v2017, %v2030
    %v2032 = vcombine.high %v2024, %v2024
    %v2033 = vcombine.high %v2031, %v2031
    %v2034 = vcombine.high %v75, %v75
    %v2036 = vunpack.c.l.s4 1983009808
    %v2037 = vunpack.c.0.s8 %v2036
    %v2038 = vlaneseq
    %v2039 = vshrl.u32 %v2038, 7
    %v2040 = vsub.s32 %v2037, %v2039
    %v2041 = vrot.slane %v75, %v2040
    %v2043 = vunpack.c.l.s4 1983009808
    %v2044 = vunpack.c.0.s8 %v2043
    %v2045 = vlaneseq
    %v2046 = vshrl.u32 %v2045, 7
    %v2047 = vsub.s32 %v2044, %v2046
    %v2048 = vrot.slane %v2034, %v2047
    %v2049 = vcombine.high %v2041, %v2041
    %v2050 = vcombine.high %v2048, %v2048
    %2147 = vmatprep.subr.mxu0 0.0
    %2148 = vmatpush1.msra.mxu0 %v76
    %2149 = vmatprep.subr.mxu0 0.0
    %2150 = vmatpush1.msra.mxu0 %v77
    %2151 = vmatprep.subr.mxu0 0.0
    %2152 = vmatpush1.msra.mxu0 %v78
    %2153 = vmatprep.subr.mxu0 0.0
    %2154 = vmatpush1.msra.mxu0 %v79
    %2155 = vmatprep.subr.mxu0 0.0
    %2156 = vmatpush1.msra.mxu0 %v80
    %2157 = vmatprep.subr.mxu0 0.0
    %2158 = vmatpush1.msra.mxu0 %v81
    %2159 = vmatprep.subr.mxu0 0.0
    %2160 = vmatpush1.msra.mxu0 %v82
    %2161 = vmatprep.subr.mxu0 0.0
    %2162 = vmatpush1.msra.mxu0 %v83
    %2163 = vmatprep.subr.mxu0 0.0
    %2164 = vmatpush1.msra.mxu0 %v84
    %2165 = vmatprep.subr.mxu0 0.0
    %2166 = vmatpush1.msra.mxu0 %v85
    %2167 = vmatprep.subr.mxu0 0.0
    %2168 = vmatpush1.msra.mxu0 %v86
    %2169 = vmatprep.subr.mxu0 0.0
    %2170 = vmatpush1.msra.mxu0 %v87
    %2171 = vmatprep.subr.mxu0 0.0
    %2172 = vmatpush1.msra.mxu0 %v88
    %2173 = vmatprep.subr.mxu0 0.0
    %2174 = vmatpush1.msra.mxu0 %v89
    %2175 = vmatprep.subr.mxu0 0.0
    %2176 = vmatpush1.msra.mxu0 %v90
    %2177 = vmatprep.subr.mxu0 0.0
    %2178 = vmatpush1.msra.mxu0 %v91
    %2179 = vmatprep.subr.mxu0 0.0
    %2180 = vmatpush1.msra.mxu0 %v92
    %2181 = vmatprep.subr.mxu0 0.0
    %2182 = vmatpush1.msra.mxu0 %v93
    %2183 = vmatprep.subr.mxu0 0.0
    %2184 = vmatpush1.msra.mxu0 %v94
    %2185 = vmatprep.subr.mxu0 0.0
    %2186 = vmatpush1.msra.mxu0 %v95
    %2187 = vmatprep.subr.mxu0 0.0
    %2188 = vmatpush1.msra.mxu0 %v96
    %2189 = vmatprep.subr.mxu0 0.0
    %2190 = vmatpush1.msra.mxu0 %v97
    %2191 = vmatprep.subr.mxu0 0.0
    %2192 = vmatpush1.msra.mxu0 %v98
    %2193 = vmatprep.subr.mxu0 0.0
    %2194 = vmatpush1.msra.mxu0 %v99
    %2195 = vmatprep.subr.mxu0 0.0
    %2196 = vmatpush1.msra.mxu0 %v100
    %2197 = vmatprep.subr.mxu0 0.0
    %2198 = vmatpush1.msra.mxu0 %v101
    %2199 = vmatprep.subr.mxu0 0.0
    %2200 = vmatpush1.msra.mxu0 %v102
    %2201 = vmatprep.subr.mxu0 0.0
    %2202 = vmatpush1.msra.mxu0 %v103
    %2203 = vmatprep.subr.mxu0 0.0
    %2204 = vmatpush1.msra.mxu0 %v104
    %2205 = vmatprep.subr.mxu0 0.0
    %2206 = vmatpush1.msra.mxu0 %v105
    %2207 = vmatprep.subr.mxu0 0.0
    %2208 = vmatpush1.msra.mxu0 %v106
    %2209 = vmatprep.subr.mxu0 0.0
    %2210 = vmatpush1.msra.mxu0 %v107
    %2211 = vmatprep.mubr.f32.mxu0 %v1658
    %2212 = vmatmul.mubr.f32.gmra.mrb[0].mxu0 %v1650
    %v2213 = vpop.f32.mrb[0].mxu0
    %v2214 = vadd.f32 %v1617, %v2213
    %v2215 = vpop.f32.mrb[0].mxu0
    %2216 = vdwg.mxu0
    %2217 = vmatprep.subr.mxu0 0.0
    %2218 = vmatpush1.msra.mxu0 %v108
    %2219 = vmatprep.subr.mxu0 0.0
    %2220 = vmatpush1.msra.mxu0 %v109
    %2221 = vmatprep.subr.mxu0 0.0
    %2222 = vmatpush1.msra.mxu0 %v110
    %2223 = vmatprep.subr.mxu0 0.0
    %2224 = vmatpush1.msra.mxu0 %v111
    %2225 = vmatprep.subr.mxu0 0.0
    %2226 = vmatpush1.msra.mxu0 %v112
    %2227 = vmatprep.subr.mxu0 0.0
    %2228 = vmatpush1.msra.mxu0 %v113
    %2229 = vmatprep.subr.mxu0 0.0
    %2230 = vmatpush1.msra.mxu0 %v114
    %2231 = vmatprep.subr.mxu0 0.0
    %2232 = vmatpush1.msra.mxu0 %v115
    %2233 = vmatprep.subr.mxu0 0.0
    %2234 = vmatpush1.msra.mxu0 %v116
    %2235 = vmatprep.subr.mxu0 0.0
    %2236 = vmatpush1.msra.mxu0 %v117
    %2237 = vmatprep.subr.mxu0 0.0
    %2238 = vmatpush1.msra.mxu0 %v118
    %2239 = vmatprep.subr.mxu0 0.0
    %2240 = vmatpush1.msra.mxu0 %v119
    %2241 = vmatprep.subr.mxu0 0.0
    %2242 = vmatpush1.msra.mxu0 %v120
    %2243 = vmatprep.subr.mxu0 0.0
    %2244 = vmatpush1.msra.mxu0 %v121
    %2245 = vmatprep.subr.mxu0 0.0
    %2246 = vmatpush1.msra.mxu0 %v122
    %2247 = vmatprep.subr.mxu0 0.0
    %2248 = vmatpush1.msra.mxu0 %v123
    %2249 = vmatprep.subr.mxu0 0.0
    %2250 = vmatpush1.msra.mxu0 %v124
    %2251 = vmatprep.subr.mxu0 0.0
    %2252 = vmatpush1.msra.mxu0 %v125
    %2253 = vmatprep.subr.mxu0 0.0
    %2254 = vmatpush1.msra.mxu0 %v126
    %2255 = vmatprep.subr.mxu0 0.0
    %2256 = vmatpush1.msra.mxu0 %v127
    %2257 = vmatprep.subr.mxu0 0.0
    %2258 = vmatpush1.msra.mxu0 %v128
    %2259 = vmatprep.subr.mxu0 0.0
    %2260 = vmatpush1.msra.mxu0 %v129
    %2261 = vmatprep.subr.mxu0 0.0
    %2262 = vmatpush1.msra.mxu0 %v130
    %2263 = vmatprep.subr.mxu0 0.0
    %2264 = vmatpush1.msra.mxu0 %v131
    %2265 = vmatprep.subr.mxu0 0.0
    %2266 = vmatpush1.msra.mxu0 %v132
    %2267 = vmatprep.subr.mxu0 0.0
    %2268 = vmatpush1.msra.mxu0 %v133
    %2269 = vmatprep.subr.mxu0 0.0
    %2270 = vmatpush1.msra.mxu0 %v134
    %2271 = vmatprep.subr.mxu0 0.0
    %2272 = vmatpush1.msra.mxu0 %v135
    %2273 = vmatprep.subr.mxu0 0.0
    %2274 = vmatpush1.msra.mxu0 %v136
    %2275 = vmatprep.subr.mxu0 0.0
    %2276 = vmatpush1.msra.mxu0 %v137
    %2277 = vmatprep.subr.mxu0 0.0
    %2278 = vmatpush1.msra.mxu0 %v138
    %2279 = vmatprep.subr.mxu0 0.0
    %2280 = vmatpush1.msra.mxu0 %v139
    %2281 = vmatprep.mubr.f32.mxu0 %v1659
    %2282 = vmatmul.mubr.f32.gmra.mrb[0].mxu0 %v1657
    %v2283 = vpop.f32.mrb[0].mxu0
    %v2284 = vadd.f32 %v2214, %v2283
    %v2285 = vpop.f32.mrb[0].mxu0
    %2286 = vdwg.mxu0
    %2287 = vmatprep.subr.mxu0 0.0
    %2288 = vmatpush1.msra.mxu0 %v140
    %2289 = vmatprep.subr.mxu0 0.0
    %2290 = vmatpush1.msra.mxu0 %v141
    %2291 = vmatprep.subr.mxu0 0.0
    %2292 = vmatpush1.msra.mxu0 %v142
    %2293 = vmatprep.subr.mxu0 0.0
    %2294 = vmatpush1.msra.mxu0 %v143
    %2295 = vmatprep.subr.mxu0 0.0
    %2296 = vmatpush1.msra.mxu0 %v144
    %2297 = vmatprep.subr.mxu0 0.0
    %2298 = vmatpush1.msra.mxu0 %v145
    %2299 = vmatprep.subr.mxu0 0.0
    %2300 = vmatpush1.msra.mxu0 %v146
    %2301 = vmatprep.subr.mxu0 0.0
    %2302 = vmatpush1.msra.mxu0 %v147
    %2303 = vmatprep.subr.mxu0 0.0
    %2304 = vmatpush1.msra.mxu0 %v148
    %2305 = vmatprep.subr.mxu0 0.0
    %2306 = vmatpush1.msra.mxu0 %v149
    %2307 = vmatprep.subr.mxu0 0.0
    %2308 = vmatpush1.msra.mxu0 %v150
    %2309 = vmatprep.subr.mxu0 0.0
    %2310 = vmatpush1.msra.mxu0 %v151
    %2311 = vmatprep.subr.mxu0 0.0
    %2312 = vmatpush1.msra.mxu0 %v152
    %2313 = vmatprep.subr.mxu0 0.0
    %2314 = vmatpush1.msra.mxu0 %v153
    %2315 = vmatprep.subr.mxu0 0.0
    %2316 = vmatpush1.msra.mxu0 %v154
    %2317 = vmatprep.subr.mxu0 0.0
    %2318 = vmatpush1.msra.mxu0 %v155
    %2319 = vmatprep.subr.mxu0 0.0
    %2320 = vmatpush1.msra.mxu0 %v156
    %2321 = vmatprep.subr.mxu0 0.0
    %2322 = vmatpush1.msra.mxu0 %v157
    %2323 = vmatprep.subr.mxu0 0.0
    %2324 = vmatpush1.msra.mxu0 %v158
    %2325 = vmatprep.subr.mxu0 0.0
    %2326 = vmatpush1.msra.mxu0 %v159
    %2327 = vmatprep.subr.mxu0 0.0
    %2328 = vmatpush1.msra.mxu0 %v160
    %2329 = vmatprep.subr.mxu0 0.0
    %2330 = vmatpush1.msra.mxu0 %v161
    %2331 = vmatprep.subr.mxu0 0.0
    %2332 = vmatpush1.msra.mxu0 %v162
    %2333 = vmatprep.subr.mxu0 0.0
    %2334 = vmatpush1.msra.mxu0 %v163
    %2335 = vmatprep.subr.mxu0 0.0
    %2336 = vmatpush1.msra.mxu0 %v164
    %2337 = vmatprep.subr.mxu0 0.0
    %2338 = vmatpush1.msra.mxu0 %v165
    %2339 = vmatprep.subr.mxu0 0.0
    %2340 = vmatpush1.msra.mxu0 %v166
    %2341 = vmatprep.subr.mxu0 0.0
    %2342 = vmatpush1.msra.mxu0 %v167
    %2343 = vmatprep.subr.mxu0 0.0
    %2344 = vmatpush1.msra.mxu0 %v168
    %2345 = vmatprep.subr.mxu0 0.0
    %2346 = vmatpush1.msra.mxu0 %v169
    %2347 = vmatprep.subr.mxu0 0.0
    %2348 = vmatpush1.msra.mxu0 %v170
    %2349 = vmatprep.subr.mxu0 0.0
    %2350 = vmatpush1.msra.mxu0 %v171
    %2351 = vmatprep.mubr.f32.mxu0 %v1675
    %2352 = vmatmul.mubr.f32.gmra.mrb[0].mxu0 %v1667
    %v2353 = vpop.f32.mrb[0].mxu0
    %v2354 = vadd.f32 %v2284, %v2353
    %v2355 = vpop.f32.mrb[0].mxu0
    %2356 = vdwg.mxu0
    %2357 = vmatprep.subr.mxu0 0.0
    %2358 = vmatpush1.msra.mxu0 %v172
    %2359 = vmatprep.subr.mxu0 0.0
    %2360 = vmatpush1.msra.mxu0 %v173
    %2361 = vmatprep.subr.mxu0 0.0
    %2362 = vmatpush1.msra.mxu0 %v174
    %2363 = vmatprep.subr.mxu0 0.0
    %2364 = vmatpush1.msra.mxu0 %v175
    %2365 = vmatprep.subr.mxu0 0.0
    %2366 = vmatpush1.msra.mxu0 %v176
    %2367 = vmatprep.subr.mxu0 0.0
    %2368 = vmatpush1.msra.mxu0 %v177
    %2369 = vmatprep.subr.mxu0 0.0
    %2370 = vmatpush1.msra.mxu0 %v178
    %2371 = vmatprep.subr.mxu0 0.0
    %2372 = vmatpush1.msra.mxu0 %v179
    %2373 = vmatprep.subr.mxu0 0.0
    %2374 = vmatpush1.msra.mxu0 %v180
    %2375 = vmatprep.subr.mxu0 0.0
    %2376 = vmatpush1.msra.mxu0 %v181
    %2377 = vmatprep.subr.mxu0 0.0
    %2378 = vmatpush1.msra.mxu0 %v182
    %2379 = vmatprep.subr.mxu0 0.0
    %2380 = vmatpush1.msra.mxu0 %v183
    %2381 = vmatprep.subr.mxu0 0.0
    %2382 = vmatpush1.msra.mxu0 %v184
    %2383 = vmatprep.subr.mxu0 0.0
    %2384 = vmatpush1.msra.mxu0 %v185
    %2385 = vmatprep.subr.mxu0 0.0
    %2386 = vmatpush1.msra.mxu0 %v186
    %2387 = vmatprep.subr.mxu0 0.0
    %2388 = vmatpush1.msra.mxu0 %v187
    %2389 = vmatprep.subr.mxu0 0.0
    %2390 = vmatpush1.msra.mxu0 %v188
    %2391 = vmatprep.subr.mxu0 0.0
    %2392 = vmatpush1.msra.mxu0 %v189
    %2393 = vmatprep.subr.mxu0 0.0
    %2394 = vmatpush1.msra.mxu0 %v190
    %2395 = vmatprep.subr.mxu0 0.0
    %2396 = vmatpush1.msra.mxu0 %v191
    %2397 = vmatprep.subr.mxu0 0.0
    %2398 = vmatpush1.msra.mxu0 %v192
    %2399 = vmatprep.subr.mxu0 0.0
    %2400 = vmatpush1.msra.mxu0 %v193
    %2401 = vmatprep.subr.mxu0 0.0
    %2402 = vmatpush1.msra.mxu0 %v194
    %2403 = vmatprep.subr.mxu0 0.0
    %2404 = vmatpush1.msra.mxu0 %v195
    %2405 = vmatprep.subr.mxu0 0.0
    %2406 = vmatpush1.msra.mxu0 %v196
    %2407 = vmatprep.subr.mxu0 0.0
    %2408 = vmatpush1.msra.mxu0 %v197
    %2409 = vmatprep.subr.mxu0 0.0
    %2410 = vmatpush1.msra.mxu0 %v198
    %2411 = vmatprep.subr.mxu0 0.0
    %2412 = vmatpush1.msra.mxu0 %v199
    %2413 = vmatprep.subr.mxu0 0.0
    %2414 = vmatpush1.msra.mxu0 %v200
    %2415 = vmatprep.subr.mxu0 0.0
    %2416 = vmatpush1.msra.mxu0 %v201
    %2417 = vmatprep.subr.mxu0 0.0
    %2418 = vmatpush1.msra.mxu0 %v202
    %2419 = vmatprep.subr.mxu0 0.0
    %2420 = vmatpush1.msra.mxu0 %v203
    %2421 = vmatprep.mubr.f32.mxu0 %v1676
    %2422 = vmatmul.mubr.f32.gmra.mrb[0].mxu0 %v1674
    %v2423 = vpop.f32.mrb[0].mxu0
    %v2424 = vadd.f32 %v2354, %v2423
    %v2425 = vpop.f32.mrb[0].mxu0
    %2426 = vdwg.mxu0
    %2427 = vmatprep.subr.mxu0 0.0
    %2428 = vmatpush1.msra.mxu0 %v204
    %2429 = vmatprep.subr.mxu0 0.0
    %2430 = vmatpush1.msra.mxu0 %v205
    %2431 = vmatprep.subr.mxu0 0.0
    %2432 = vmatpush1.msra.mxu0 %v206
    %2433 = vmatprep.subr.mxu0 0.0
    %2434 = vmatpush1.msra.mxu0 %v207
    %2435 = vmatprep.subr.mxu0 0.0
    %2436 = vmatpush1.msra.mxu0 %v208
    %2437 = vmatprep.subr.mxu0 0.0
    %2438 = vmatpush1.msra.mxu0 %v209
    %2439 = vmatprep.subr.mxu0 0.0
    %2440 = vmatpush1.msra.mxu0 %v210
    %2441 = vmatprep.subr.mxu0 0.0
    %2442 = vmatpush1.msra.mxu0 %v211
    %2443 = vmatprep.subr.mxu0 0.0
    %2444 = vmatpush1.msra.mxu0 %v212
    %2445 = vmatprep.subr.mxu0 0.0
    %2446 = vmatpush1.msra.mxu0 %v213
    %2447 = vmatprep.subr.mxu0 0.0
    %2448 = vmatpush1.msra.mxu0 %v214
    %2449 = vmatprep.subr.mxu0 0.0
    %2450 = vmatpush1.msra.mxu0 %v215
    %2451 = vmatprep.subr.mxu0 0.0
    %2452 = vmatpush1.msra.mxu0 %v216
    %2453 = vmatprep.subr.mxu0 0.0
    %2454 = vmatpush1.msra.mxu0 %v217
    %2455 = vmatprep.subr.mxu0 0.0
    %2456 = vmatpush1.msra.mxu0 %v218
    %2457 = vmatprep.subr.mxu0 0.0
    %2458 = vmatpush1.msra.mxu0 %v219
    %2459 = vmatprep.subr.mxu0 0.0
    %2460 = vmatpush1.msra.mxu0 %v220
    %2461 = vmatprep.subr.mxu0 0.0
    %2462 = vmatpush1.msra.mxu0 %v221
    %2463 = vmatprep.subr.mxu0 0.0
    %2464 = vmatpush1.msra.mxu0 %v222
    %2465 = vmatprep.subr.mxu0 0.0
    %2466 = vmatpush1.msra.mxu0 %v223
    %2467 = vmatprep.subr.mxu0 0.0
    %2468 = vmatpush1.msra.mxu0 %v224
    %2469 = vmatprep.subr.mxu0 0.0
    %2470 = vmatpush1.msra.mxu0 %v225
    %2471 = vmatprep.subr.mxu0 0.0
    %2472 = vmatpush1.msra.mxu0 %v226
    %2473 = vmatprep.subr.mxu0 0.0
    %2474 = vmatpush1.msra.mxu0 %v227
    %2475 = vmatprep.subr.mxu0 0.0
    %2476 = vmatpush1.msra.mxu0 %v228
    %2477 = vmatprep.subr.mxu0 0.0
    %2478 = vmatpush1.msra.mxu0 %v229
    %2479 = vmatprep.subr.mxu0 0.0
    %2480 = vmatpush1.msra.mxu0 %v230
    %2481 = vmatprep.subr.mxu0 0.0
    %2482 = vmatpush1.msra.mxu0 %v231
    %2483 = vmatprep.subr.mxu0 0.0
    %2484 = vmatpush1.msra.mxu0 %v232
    %2485 = vmatprep.subr.mxu0 0.0
    %2486 = vmatpush1.msra.mxu0 %v233
    %2487 = vmatprep.subr.mxu0 0.0
    %2488 = vmatpush1.msra.mxu0 %v234
    %2489 = vmatprep.subr.mxu0 0.0
    %2490 = vmatpush1.msra.mxu0 %v235
    %2491 = vmatprep.mubr.f32.mxu0 %v1692
    %2492 = vmatmul.mubr.f32.gmra.mrb[0].mxu0 %v1684
    %v2493 = vpop.f32.mrb[0].mxu0
    %v2494 = vadd.f32 %v2424, %v2493
    %v2495 = vpop.f32.mrb[0].mxu0
    %2496 = vdwg.mxu0
    %2497 = vmatprep.subr.mxu0 0.0
    %2498 = vmatpush1.msra.mxu0 %v236
    %2499 = vmatprep.subr.mxu0 0.0
    %2500 = vmatpush1.msra.mxu0 %v237
    %2501 = vmatprep.subr.mxu0 0.0
    %2502 = vmatpush1.msra.mxu0 %v238
    %2503 = vmatprep.subr.mxu0 0.0
    %2504 = vmatpush1.msra.mxu0 %v239
    %2505 = vmatprep.subr.mxu0 0.0
    %2506 = vmatpush1.msra.mxu0 %v240
    %2507 = vmatprep.subr.mxu0 0.0
    %2508 = vmatpush1.msra.mxu0 %v241
    %2509 = vmatprep.subr.mxu0 0.0
    %2510 = vmatpush1.msra.mxu0 %v242
    %2511 = vmatprep.subr.mxu0 0.0
    %2512 = vmatpush1.msra.mxu0 %v243
    %2513 = vmatprep.subr.mxu0 0.0
    %2514 = vmatpush1.msra.mxu0 %v244
    %2515 = vmatprep.subr.mxu0 0.0
    %2516 = vmatpush1.msra.mxu0 %v245
    %2517 = vmatprep.subr.mxu0 0.0
    %2518 = vmatpush1.msra.mxu0 %v246
    %2519 = vmatprep.subr.mxu0 0.0
    %2520 = vmatpush1.msra.mxu0 %v247
    %2521 = vmatprep.subr.mxu0 0.0
    %2522 = vmatpush1.msra.mxu0 %v248
    %2523 = vmatprep.subr.mxu0 0.0
    %2524 = vmatpush1.msra.mxu0 %v249
    %2525 = vmatprep.subr.mxu0 0.0
    %2526 = vmatpush1.msra.mxu0 %v250
    %2527 = vmatprep.subr.mxu0 0.0
    %2528 = vmatpush1.msra.mxu0 %v251
    %2529 = vmatprep.subr.mxu0 0.0
    %2530 = vmatpush1.msra.mxu0 %v252
    %2531 = vmatprep.subr.mxu0 0.0
    %2532 = vmatpush1.msra.mxu0 %v253
    %2533 = vmatprep.subr.mxu0 0.0
    %2534 = vmatpush1.msra.mxu0 %v254
    %2535 = vmatprep.subr.mxu0 0.0
    %2536 = vmatpush1.msra.mxu0 %v255
    %2537 = vmatprep.subr.mxu0 0.0
    %2538 = vmatpush1.msra.mxu0 %v256
    %2539 = vmatprep.subr.mxu0 0.0
    %2540 = vmatpush1.msra.mxu0 %v257
    %2541 = vmatprep.subr.mxu0 0.0
    %2542 = vmatpush1.msra.mxu0 %v258
    %2543 = vmatprep.subr.mxu0 0.0
    %2544 = vmatpush1.msra.mxu0 %v259
    %2545 = vmatprep.subr.mxu0 0.0
    %2546 = vmatpush1.msra.mxu0 %v260
    %2547 = vmatprep.subr.mxu0 0.0
    %2548 = vmatpush1.msra.mxu0 %v261
    %2549 = vmatprep.subr.mxu0 0.0
    %2550 = vmatpush1.msra.mxu0 %v262
    %2551 = vmatprep.subr.mxu0 0.0
    %2552 = vmatpush1.msra.mxu0 %v263
    %2553 = vmatprep.subr.mxu0 0.0
    %2554 = vmatpush1.msra.mxu0 %v264
    %2555 = vmatprep.subr.mxu0 0.0
    %2556 = vmatpush1.msra.mxu0 %v265
    %2557 = vmatprep.subr.mxu0 0.0
    %2558 = vmatpush1.msra.mxu0 %v266
    %2559 = vmatprep.subr.mxu0 0.0
    %2560 = vmatpush1.msra.mxu0 %v267
    %2561 = vmatprep.mubr.f32.mxu0 %v1693
    %2562 = vmatmul.mubr.f32.gmra.mrb[0].mxu0 %v1691
    %v2563 = vpop.f32.mrb[0].mxu0
    %v2564 = vadd.f32 %v2494, %v2563
    %v2565 = vpop.f32.mrb[0].mxu0
    %2566 = vdwg.mxu0
    %2567 = vmatprep.subr.mxu0 0.0
    %2568 = vmatpush1.msra.mxu0 %v268
    %2569 = vmatprep.subr.mxu0 0.0
    %2570 = vmatpush1.msra.mxu0 %v269
    %2571 = vmatprep.subr.mxu0 0.0
    %2572 = vmatpush1.msra.mxu0 %v270
    %2573 = vmatprep.subr.mxu0 0.0
    %2574 = vmatpush1.msra.mxu0 %v271
    %2575 = vmatprep.subr.mxu0 0.0
    %2576 = vmatpush1.msra.mxu0 %v272
    %2577 = vmatprep.subr.mxu0 0.0
    %2578 = vmatpush1.msra.mxu0 %v273
    %2579 = vmatprep.subr.mxu0 0.0
    %2580 = vmatpush1.msra.mxu0 %v274
    %2581 = vmatprep.subr.mxu0 0.0
    %2582 = vmatpush1.msra.mxu0 %v275
    %2583 = vmatprep.subr.mxu0 0.0
    %2584 = vmatpush1.msra.mxu0 %v276
    %2585 = vmatprep.subr.mxu0 0.0
    %2586 = vmatpush1.msra.mxu0 %v277
    %2587 = vmatprep.subr.mxu0 0.0
    %2588 = vmatpush1.msra.mxu0 %v278
    %2589 = vmatprep.subr.mxu0 0.0
    %2590 = vmatpush1.msra.mxu0 %v279
    %2591 = vmatprep.subr.mxu0 0.0
    %2592 = vmatpush1.msra.mxu0 %v280
    %2593 = vmatprep.subr.mxu0 0.0
    %2594 = vmatpush1.msra.mxu0 %v281
    %2595 = vmatprep.subr.mxu0 0.0
    %2596 = vmatpush1.msra.mxu0 %v282
    %2597 = vmatprep.subr.mxu0 0.0
    %2598 = vmatpush1.msra.mxu0 %v283
    %2599 = vmatprep.subr.mxu0 0.0
    %2600 = vmatpush1.msra.mxu0 %v284
    %2601 = vmatprep.subr.mxu0 0.0
    %2602 = vmatpush1.msra.mxu0 %v285
    %2603 = vmatprep.subr.mxu0 0.0
    %2604 = vmatpush1.msra.mxu0 %v286
    %2605 = vmatprep.subr.mxu0 0.0
    %2606 = vmatpush1.msra.mxu0 %v287
    %2607 = vmatprep.subr.mxu0 0.0
    %2608 = vmatpush1.msra.mxu0 %v288
    %2609 = vmatprep.subr.mxu0 0.0
    %2610 = vmatpush1.msra.mxu0 %v289
    %2611 = vmatprep.subr.mxu0 0.0
    %2612 = vmatpush1.msra.mxu0 %v290
    %2613 = vmatprep.subr.mxu0 0.0
    %2614 = vmatpush1.msra.mxu0 %v291
    %2615 = vmatprep.subr.mxu0 0.0
    %2616 = vmatpush1.msra.mxu0 %v292
    %2617 = vmatprep.subr.mxu0 0.0
    %2618 = vmatpush1.msra.mxu0 %v293
    %2619 = vmatprep.subr.mxu0 0.0
    %2620 = vmatpush1.msra.mxu0 %v294
    %2621 = vmatprep.subr.mxu0 0.0
    %2622 = vmatpush1.msra.mxu0 %v295
    %2623 = vmatprep.subr.mxu0 0.0
    %2624 = vmatpush1.msra.mxu0 %v296
    %2625 = vmatprep.subr.mxu0 0.0
    %2626 = vmatpush1.msra.mxu0 %v297
    %2627 = vmatprep.subr.mxu0 0.0
    %2628 = vmatpush1.msra.mxu0 %v298
    %2629 = vmatprep.subr.mxu0 0.0
    %2630 = vmatpush1.msra.mxu0 %v299
    %2631 = vmatprep.mubr.f32.mxu0 %v1709
    %2632 = vmatmul.mubr.f32.gmra.mrb[0].mxu0 %v1701
    %v2633 = vpop.f32.mrb[0].mxu0
    %v2634 = vadd.f32 %v2564, %v2633
    %v2635 = vpop.f32.mrb[0].mxu0
    %2636 = vdwg.mxu0
    %2637 = vmatprep.subr.mxu0 0.0
    %2638 = vmatpush1.msra.mxu0 %v300
    %2639 = vmatprep.subr.mxu0 0.0
    %2640 = vmatpush1.msra.mxu0 %v301
    %2641 = vmatprep.subr.mxu0 0.0
    %2642 = vmatpush1.msra.mxu0 %v302
    %2643 = vmatprep.subr.mxu0 0.0
    %2644 = vmatpush1.msra.mxu0 %v303
    %2645 = vmatprep.subr.mxu0 0.0
    %2646 = vmatpush1.msra.mxu0 %v304
    %2647 = vmatprep.subr.mxu0 0.0
    %2648 = vmatpush1.msra.mxu0 %v305
    %2649 = vmatprep.subr.mxu0 0.0
    %2650 = vmatpush1.msra.mxu0 %v306
    %2651 = vmatprep.subr.mxu0 0.0
    %2652 = vmatpush1.msra.mxu0 %v307
    %2653 = vmatprep.subr.mxu0 0.0
    %2654 = vmatpush1.msra.mxu0 %v308
    %2655 = vmatprep.subr.mxu0 0.0
    %2656 = vmatpush1.msra.mxu0 %v309
    %2657 = vmatprep.subr.mxu0 0.0
    %2658 = vmatpush1.msra.mxu0 %v310
    %2659 = vmatprep.subr.mxu0 0.0
    %2660 = vmatpush1.msra.mxu0 %v311
    %2661 = vmatprep.subr.mxu0 0.0
    %2662 = vmatpush1.msra.mxu0 %v312
    %2663 = vmatprep.subr.mxu0 0.0
    %2664 = vmatpush1.msra.mxu0 %v313
    %2665 = vmatprep.subr.mxu0 0.0
    %2666 = vmatpush1.msra.mxu0 %v314
    %2667 = vmatprep.subr.mxu0 0.0
    %2668 = vmatpush1.msra.mxu0 %v315
    %2669 = vmatprep.subr.mxu0 0.0
    %2670 = vmatpush1.msra.mxu0 %v316
    %2671 = vmatprep.subr.mxu0 0.0
    %2672 = vmatpush1.msra.mxu0 %v317
    %2673 = vmatprep.subr.mxu0 0.0
    %2674 = vmatpush1.msra.mxu0 %v318
    %2675 = vmatprep.subr.mxu0 0.0
    %2676 = vmatpush1.msra.mxu0 %v319
    %2677 = vmatprep.subr.mxu0 0.0
    %2678 = vmatpush1.msra.mxu0 %v320
    %2679 = vmatprep.subr.mxu0 0.0
    %2680 = vmatpush1.msra.mxu0 %v321
    %2681 = vmatprep.subr.mxu0 0.0
    %2682 = vmatpush1.msra.mxu0 %v322
    %2683 = vmatprep.subr.mxu0 0.0
    %2684 = vmatpush1.msra.mxu0 %v323
    %2685 = vmatprep.subr.mxu0 0.0
    %2686 = vmatpush1.msra.mxu0 %v324
    %2687 = vmatprep.subr.mxu0 0.0
    %2688 = vmatpush1.msra.mxu0 %v325
    %2689 = vmatprep.subr.mxu0 0.0
    %2690 = vmatpush1.msra.mxu0 %v326
    %2691 = vmatprep.subr.mxu0 0.0
    %2692 = vmatpush1.msra.mxu0 %v327
    %2693 = vmatprep.subr.mxu0 0.0
    %2694 = vmatpush1.msra.mxu0 %v328
    %2695 = vmatprep.subr.mxu0 0.0
    %2696 = vmatpush1.msra.mxu0 %v329
    %2697 = vmatprep.subr.mxu0 0.0
    %2698 = vmatpush1.msra.mxu0 %v330
    %2699 = vmatprep.subr.mxu0 0.0
    %2700 = vmatpush1.msra.mxu0 %v331
    %2701 = vmatprep.mubr.f32.mxu0 %v1710
    %2702 = vmatmul.mubr.f32.gmra.mrb[0].mxu0 %v1708
    %v2703 = vpop.f32.mrb[0].mxu0
    %v2704 = vadd.f32 %v2634, %v2703
    %v2705 = vpop.f32.mrb[0].mxu0
    %2706 = vdwg.mxu0
    %2707 = vmatprep.subr.mxu0 0.0
    %2708 = vmatpush1.msra.mxu0 %v332
    %2709 = vmatprep.subr.mxu0 0.0
    %2710 = vmatpush1.msra.mxu0 %v333
    %2711 = vmatprep.subr.mxu0 0.0
    %2712 = vmatpush1.msra.mxu0 %v334
    %2713 = vmatprep.subr.mxu0 0.0
    %2714 = vmatpush1.msra.mxu0 %v335
    %2715 = vmatprep.subr.mxu0 0.0
    %2716 = vmatpush1.msra.mxu0 %v336
    %2717 = vmatprep.subr.mxu0 0.0
    %2718 = vmatpush1.msra.mxu0 %v337
    %2719 = vmatprep.subr.mxu0 0.0
    %2720 = vmatpush1.msra.mxu0 %v338
    %2721 = vmatprep.subr.mxu0 0.0
    %2722 = vmatpush1.msra.mxu0 %v339
    %2723 = vmatprep.subr.mxu0 0.0
    %2724 = vmatpush1.msra.mxu0 %v340
    %2725 = vmatprep.subr.mxu0 0.0
    %2726 = vmatpush1.msra.mxu0 %v341
    %2727 = vmatprep.subr.mxu0 0.0
    %2728 = vmatpush1.msra.mxu0 %v342
    %2729 = vmatprep.subr.mxu0 0.0
    %2730 = vmatpush1.msra.mxu0 %v343
    %2731 = vmatprep.subr.mxu0 0.0
    %2732 = vmatpush1.msra.mxu0 %v344
    %2733 = vmatprep.subr.mxu0 0.0
    %2734 = vmatpush1.msra.mxu0 %v345
    %2735 = vmatprep.subr.mxu0 0.0
    %2736 = vmatpush1.msra.mxu0 %v346
    %2737 = vmatprep.subr.mxu0 0.0
    %2738 = vmatpush1.msra.mxu0 %v347
    %2739 = vmatprep.subr.mxu0 0.0
    %2740 = vmatpush1.msra.mxu0 %v348
    %2741 = vmatprep.subr.mxu0 0.0
    %2742 = vmatpush1.msra.mxu0 %v349
    %2743 = vmatprep.subr.mxu0 0.0
    %2744 = vmatpush1.msra.mxu0 %v350
    %2745 = vmatprep.subr.mxu0 0.0
    %2746 = vmatpush1.msra.mxu0 %v351
    %2747 = vmatprep.subr.mxu0 0.0
    %2748 = vmatpush1.msra.mxu0 %v352
    %2749 = vmatprep.subr.mxu0 0.0
    %2750 = vmatpush1.msra.mxu0 %v353
    %2751 = vmatprep.subr.mxu0 0.0
    %2752 = vmatpush1.msra.mxu0 %v354
    %2753 = vmatprep.subr.mxu0 0.0
    %2754 = vmatpush1.msra.mxu0 %v355
    %2755 = vmatprep.subr.mxu0 0.0
    %2756 = vmatpush1.msra.mxu0 %v356
    %2757 = vmatprep.subr.mxu0 0.0
    %2758 = vmatpush1.msra.mxu0 %v357
    %2759 = vmatprep.subr.mxu0 0.0
    %2760 = vmatpush1.msra.mxu0 %v358
    %2761 = vmatprep.subr.mxu0 0.0
    %2762 = vmatpush1.msra.mxu0 %v359
    %2763 = vmatprep.subr.mxu0 0.0
    %2764 = vmatpush1.msra.mxu0 %v360
    %2765 = vmatprep.subr.mxu0 0.0
    %2766 = vmatpush1.msra.mxu0 %v361
    %2767 = vmatprep.subr.mxu0 0.0
    %2768 = vmatpush1.msra.mxu0 %v362
    %2769 = vmatprep.subr.mxu0 0.0
    %2770 = vmatpush1.msra.mxu0 %v363
    %2771 = vmatprep.mubr.f32.mxu0 %v1726
    %2772 = vmatmul.mubr.f32.gmra.mrb[0].mxu0 %v1718
    %v2773 = vpop.f32.mrb[0].mxu0
    %v2774 = vadd.f32 %v2704, %v2773
    %v2775 = vpop.f32.mrb[0].mxu0
    %2776 = vdwg.mxu0
    %2777 = vmatprep.subr.mxu0 0.0
    %2778 = vmatpush1.msra.mxu0 %v364
    %2779 = vmatprep.subr.mxu0 0.0
    %2780 = vmatpush1.msra.mxu0 %v365
    %2781 = vmatprep.subr.mxu0 0.0
    %2782 = vmatpush1.msra.mxu0 %v366
    %2783 = vmatprep.subr.mxu0 0.0
    %2784 = vmatpush1.msra.mxu0 %v367
    %2785 = vmatprep.subr.mxu0 0.0
    %2786 = vmatpush1.msra.mxu0 %v368
    %2787 = vmatprep.subr.mxu0 0.0
    %2788 = vmatpush1.msra.mxu0 %v369
    %2789 = vmatprep.subr.mxu0 0.0
    %2790 = vmatpush1.msra.mxu0 %v370
    %2791 = vmatprep.subr.mxu0 0.0
    %2792 = vmatpush1.msra.mxu0 %v371
    %2793 = vmatprep.subr.mxu0 0.0
    %2794 = vmatpush1.msra.mxu0 %v372
    %2795 = vmatprep.subr.mxu0 0.0
    %2796 = vmatpush1.msra.mxu0 %v373
    %2797 = vmatprep.subr.mxu0 0.0
    %2798 = vmatpush1.msra.mxu0 %v374
    %2799 = vmatprep.subr.mxu0 0.0
    %2800 = vmatpush1.msra.mxu0 %v375
    %2801 = vmatprep.subr.mxu0 0.0
    %2802 = vmatpush1.msra.mxu0 %v376
    %2803 = vmatprep.subr.mxu0 0.0
    %2804 = vmatpush1.msra.mxu0 %v377
    %2805 = vmatprep.subr.mxu0 0.0
    %2806 = vmatpush1.msra.mxu0 %v378
    %2807 = vmatprep.subr.mxu0 0.0
    %2808 = vmatpush1.msra.mxu0 %v379
    %2809 = vmatprep.subr.mxu0 0.0
    %2810 = vmatpush1.msra.mxu0 %v380
    %2811 = vmatprep.subr.mxu0 0.0
    %2812 = vmatpush1.msra.mxu0 %v381
    %2813 = vmatprep.subr.mxu0 0.0
    %2814 = vmatpush1.msra.mxu0 %v382
    %2815 = vmatprep.subr.mxu0 0.0
    %2816 = vmatpush1.msra.mxu0 %v383
    %2817 = vmatprep.subr.mxu0 0.0
    %2818 = vmatpush1.msra.mxu0 %v384
    %2819 = vmatprep.subr.mxu0 0.0
    %2820 = vmatpush1.msra.mxu0 %v385
    %2821 = vmatprep.subr.mxu0 0.0
    %2822 = vmatpush1.msra.mxu0 %v386
    %2823 = vmatprep.subr.mxu0 0.0
    %2824 = vmatpush1.msra.mxu0 %v387
    %2825 = vmatprep.subr.mxu0 0.0
    %2826 = vmatpush1.msra.mxu0 %v388
    %2827 = vmatprep.subr.mxu0 0.0
    %2828 = vmatpush1.msra.mxu0 %v389
    %2829 = vmatprep.subr.mxu0 0.0
    %2830 = vmatpush1.msra.mxu0 %v390
    %2831 = vmatprep.subr.mxu0 0.0
    %2832 = vmatpush1.msra.mxu0 %v391
    %2833 = vmatprep.subr.mxu0 0.0
    %2834 = vmatpush1.msra.mxu0 %v392
    %2835 = vmatprep.subr.mxu0 0.0
    %2836 = vmatpush1.msra.mxu0 %v393
    %2837 = vmatprep.subr.mxu0 0.0
    %2838 = vmatpush1.msra.mxu0 %v394
    %2839 = vmatprep.subr.mxu0 0.0
    %2840 = vmatpush1.msra.mxu0 %v395
    %2841 = vmatprep.mubr.f32.mxu0 %v1727
    %2842 = vmatmul.mubr.f32.gmra.mrb[0].mxu0 %v1725
    %v2843 = vpop.f32.mrb[0].mxu0
    %v2844 = vadd.f32 %v2774, %v2843
    %v2845 = vpop.f32.mrb[0].mxu0
    %2846 = vdwg.mxu0
    %2847 = vmatprep.subr.mxu0 0.0
    %2848 = vmatpush1.msra.mxu0 %v396
    %2849 = vmatprep.subr.mxu0 0.0
    %2850 = vmatpush1.msra.mxu0 %v397
    %2851 = vmatprep.subr.mxu0 0.0
    %2852 = vmatpush1.msra.mxu0 %v398
    %2853 = vmatprep.subr.mxu0 0.0
    %2854 = vmatpush1.msra.mxu0 %v399
    %2855 = vmatprep.subr.mxu0 0.0
    %2856 = vmatpush1.msra.mxu0 %v400
    %2857 = vmatprep.subr.mxu0 0.0
    %2858 = vmatpush1.msra.mxu0 %v401
    %2859 = vmatprep.subr.mxu0 0.0
    %2860 = vmatpush1.msra.mxu0 %v402
    %2861 = vmatprep.subr.mxu0 0.0
    %2862 = vmatpush1.msra.mxu0 %v403
    %2863 = vmatprep.subr.mxu0 0.0
    %2864 = vmatpush1.msra.mxu0 %v404
    %2865 = vmatprep.subr.mxu0 0.0
    %2866 = vmatpush1.msra.mxu0 %v405
    %2867 = vmatprep.subr.mxu0 0.0
    %2868 = vmatpush1.msra.mxu0 %v406
    %2869 = vmatprep.subr.mxu0 0.0
    %2870 = vmatpush1.msra.mxu0 %v407
    %2871 = vmatprep.subr.mxu0 0.0
    %2872 = vmatpush1.msra.mxu0 %v408
    %2873 = vmatprep.subr.mxu0 0.0
    %2874 = vmatpush1.msra.mxu0 %v409
    %2875 = vmatprep.subr.mxu0 0.0
    %2876 = vmatpush1.msra.mxu0 %v410
    %2877 = vmatprep.subr.mxu0 0.0
    %2878 = vmatpush1.msra.mxu0 %v411
    %2879 = vmatprep.subr.mxu0 0.0
    %2880 = vmatpush1.msra.mxu0 %v412
    %2881 = vmatprep.subr.mxu0 0.0
    %2882 = vmatpush1.msra.mxu0 %v413
    %2883 = vmatprep.subr.mxu0 0.0
    %2884 = vmatpush1.msra.mxu0 %v414
    %2885 = vmatprep.subr.mxu0 0.0
    %2886 = vmatpush1.msra.mxu0 %v415
    %2887 = vmatprep.subr.mxu0 0.0
    %2888 = vmatpush1.msra.mxu0 %v416
    %2889 = vmatprep.subr.mxu0 0.0
    %2890 = vmatpush1.msra.mxu0 %v417
    %2891 = vmatprep.subr.mxu0 0.0
    %2892 = vmatpush1.msra.mxu0 %v418
    %2893 = vmatprep.subr.mxu0 0.0
    %2894 = vmatpush1.msra.mxu0 %v419
    %2895 = vmatprep.subr.mxu0 0.0
    %2896 = vmatpush1.msra.mxu0 %v420
    %2897 = vmatprep.subr.mxu0 0.0
    %2898 = vmatpush1.msra.mxu0 %v421
    %2899 = vmatprep.subr.mxu0 0.0
    %2900 = vmatpush1.msra.mxu0 %v422
    %2901 = vmatprep.subr.mxu0 0.0
    %2902 = vmatpush1.msra.mxu0 %v423
    %2903 = vmatprep.subr.mxu0 0.0
    %2904 = vmatpush1.msra.mxu0 %v424
    %2905 = vmatprep.subr.mxu0 0.0
    %2906 = vmatpush1.msra.mxu0 %v425
    %2907 = vmatprep.subr.mxu0 0.0
    %2908 = vmatpush1.msra.mxu0 %v426
    %2909 = vmatprep.subr.mxu0 0.0
    %2910 = vmatpush1.msra.mxu0 %v427
    %2911 = vmatprep.mubr.f32.mxu0 %v1743
    %2912 = vmatmul.mubr.f32.gmra.mrb[0].mxu0 %v1735
    %v2913 = vpop.f32.mrb[0].mxu0
    %v2914 = vadd.f32 %v2844, %v2913
    %v2915 = vpop.f32.mrb[0].mxu0
    %2916 = vdwg.mxu0
    %2917 = vmatprep.subr.mxu0 0.0
    %2918 = vmatpush1.msra.mxu0 %v428
    %2919 = vmatprep.subr.mxu0 0.0
    %2920 = vmatpush1.msra.mxu0 %v429
    %2921 = vmatprep.subr.mxu0 0.0
    %2922 = vmatpush1.msra.mxu0 %v430
    %2923 = vmatprep.subr.mxu0 0.0
    %2924 = vmatpush1.msra.mxu0 %v431
    %2925 = vmatprep.subr.mxu0 0.0
    %2926 = vmatpush1.msra.mxu0 %v432
    %2927 = vmatprep.subr.mxu0 0.0
    %2928 = vmatpush1.msra.mxu0 %v433
    %2929 = vmatprep.subr.mxu0 0.0
    %2930 = vmatpush1.msra.mxu0 %v434
    %2931 = vmatprep.subr.mxu0 0.0
    %2932 = vmatpush1.msra.mxu0 %v435
    %2933 = vmatprep.subr.mxu0 0.0
    %2934 = vmatpush1.msra.mxu0 %v436
    %2935 = vmatprep.subr.mxu0 0.0
    %2936 = vmatpush1.msra.mxu0 %v437
    %2937 = vmatprep.subr.mxu0 0.0
    %2938 = vmatpush1.msra.mxu0 %v438
    %2939 = vmatprep.subr.mxu0 0.0
    %2940 = vmatpush1.msra.mxu0 %v439
    %2941 = vmatprep.subr.mxu0 0.0
    %2942 = vmatpush1.msra.mxu0 %v440
    %2943 = vmatprep.subr.mxu0 0.0
    %2944 = vmatpush1.msra.mxu0 %v441
    %2945 = vmatprep.subr.mxu0 0.0
    %2946 = vmatpush1.msra.mxu0 %v442
    %2947 = vmatprep.subr.mxu0 0.0
    %2948 = vmatpush1.msra.mxu0 %v443
    %2949 = vmatprep.subr.mxu0 0.0
    %2950 = vmatpush1.msra.mxu0 %v444
    %2951 = vmatprep.subr.mxu0 0.0
    %2952 = vmatpush1.msra.mxu0 %v445
    %2953 = vmatprep.subr.mxu0 0.0
    %2954 = vmatpush1.msra.mxu0 %v446
    %2955 = vmatprep.subr.mxu0 0.0
    %2956 = vmatpush1.msra.mxu0 %v447
    %2957 = vmatprep.subr.mxu0 0.0
    %2958 = vmatpush1.msra.mxu0 %v448
    %2959 = vmatprep.subr.mxu0 0.0
    %2960 = vmatpush1.msra.mxu0 %v449
    %2961 = vmatprep.subr.mxu0 0.0
    %2962 = vmatpush1.msra.mxu0 %v450
    %2963 = vmatprep.subr.mxu0 0.0
    %2964 = vmatpush1.msra.mxu0 %v451
    %2965 = vmatprep.subr.mxu0 0.0
    %2966 = vmatpush1.msra.mxu0 %v452
    %2967 = vmatprep.subr.mxu0 0.0
    %2968 = vmatpush1.msra.mxu0 %v453
    %2969 = vmatprep.subr.mxu0 0.0
    %2970 = vmatpush1.msra.mxu0 %v454
    %2971 = vmatprep.subr.mxu0 0.0
    %2972 = vmatpush1.msra.mxu0 %v455
    %2973 = vmatprep.subr.mxu0 0.0
    %2974 = vmatpush1.msra.mxu0 %v456
    %2975 = vmatprep.subr.mxu0 0.0
    %2976 = vmatpush1.msra.mxu0 %v457
    %2977 = vmatprep.subr.mxu0 0.0
    %2978 = vmatpush1.msra.mxu0 %v458
    %2979 = vmatprep.subr.mxu0 0.0
    %2980 = vmatpush1.msra.mxu0 %v459
    %2981 = vmatprep.mubr.f32.mxu0 %v1744
    %2982 = vmatmul.mubr.f32.gmra.mrb[0].mxu0 %v1742
    %v2983 = vpop.f32.mrb[0].mxu0
    %v2984 = vadd.f32 %v2914, %v2983
    %v2985 = vpop.f32.mrb[0].mxu0
    %2986 = vdwg.mxu0
    %2987 = vmatprep.subr.mxu0 0.0
    %2988 = vmatpush1.msra.mxu0 %v460
    %2989 = vmatprep.subr.mxu0 0.0
    %2990 = vmatpush1.msra.mxu0 %v461
    %2991 = vmatprep.subr.mxu0 0.0
    %2992 = vmatpush1.msra.mxu0 %v462
    %2993 = vmatprep.subr.mxu0 0.0
    %2994 = vmatpush1.msra.mxu0 %v463
    %2995 = vmatprep.subr.mxu0 0.0
    %2996 = vmatpush1.msra.mxu0 %v464
    %2997 = vmatprep.subr.mxu0 0.0
    %2998 = vmatpush1.msra.mxu0 %v465
    %2999 = vmatprep.subr.mxu0 0.0
    %3000 = vmatpush1.msra.mxu0 %v466
    %3001 = vmatprep.subr.mxu0 0.0
    %3002 = vmatpush1.msra.mxu0 %v467
    %3003 = vmatprep.subr.mxu0 0.0
    %3004 = vmatpush1.msra.mxu0 %v468
    %3005 = vmatprep.subr.mxu0 0.0
    %3006 = vmatpush1.msra.mxu0 %v469
    %3007 = vmatprep.subr.mxu0 0.0
    %3008 = vmatpush1.msra.mxu0 %v470
    %3009 = vmatprep.subr.mxu0 0.0
    %3010 = vmatpush1.msra.mxu0 %v471
    %3011 = vmatprep.subr.mxu0 0.0
    %3012 = vmatpush1.msra.mxu0 %v472
    %3013 = vmatprep.subr.mxu0 0.0
    %3014 = vmatpush1.msra.mxu0 %v473
    %3015 = vmatprep.subr.mxu0 0.0
    %3016 = vmatpush1.msra.mxu0 %v474
    %3017 = vmatprep.subr.mxu0 0.0
    %3018 = vmatpush1.msra.mxu0 %v475
    %3019 = vmatprep.subr.mxu0 0.0
    %3020 = vmatpush1.msra.mxu0 %v476
    %3021 = vmatprep.subr.mxu0 0.0
    %3022 = vmatpush1.msra.mxu0 %v477
    %3023 = vmatprep.subr.mxu0 0.0
    %3024 = vmatpush1.msra.mxu0 %v478
    %3025 = vmatprep.subr.mxu0 0.0
    %3026 = vmatpush1.msra.mxu0 %v479
    %3027 = vmatprep.subr.mxu0 0.0
    %3028 = vmatpush1.msra.mxu0 %v480
    %3029 = vmatprep.subr.mxu0 0.0
    %3030 = vmatpush1.msra.mxu0 %v481
    %3031 = vmatprep.subr.mxu0 0.0
    %3032 = vmatpush1.msra.mxu0 %v482
    %3033 = vmatprep.subr.mxu0 0.0
    %3034 = vmatpush1.msra.mxu0 %v483
    %3035 = vmatprep.subr.mxu0 0.0
    %3036 = vmatpush1.msra.mxu0 %v484
    %3037 = vmatprep.subr.mxu0 0.0
    %3038 = vmatpush1.msra.mxu0 %v485
    %3039 = vmatprep.subr.mxu0 0.0
    %3040 = vmatpush1.msra.mxu0 %v486
    %3041 = vmatprep.subr.mxu0 0.0
    %3042 = vmatpush1.msra.mxu0 %v487
    %3043 = vmatprep.subr.mxu0 0.0
    %3044 = vmatpush1.msra.mxu0 %v488
    %3045 = vmatprep.subr.mxu0 0.0
    %3046 = vmatpush1.msra.mxu0 %v489
    %3047 = vmatprep.subr.mxu0 0.0
    %3048 = vmatpush1.msra.mxu0 %v490
    %3049 = vmatprep.subr.mxu0 0.0
    %3050 = vmatpush1.msra.mxu0 %v491
    %3051 = vmatprep.mubr.f32.mxu0 %v1760
    %3052 = vmatmul.mubr.f32.gmra.mrb[0].mxu0 %v1752
    %v3053 = vpop.f32.mrb[0].mxu0
    %v3054 = vadd.f32 %v2984, %v3053
    %v3055 = vpop.f32.mrb[0].mxu0
    %3056 = vdwg.mxu0
    %3057 = vmatprep.subr.mxu0 0.0
    %3058 = vmatpush1.msra.mxu0 %v492
    %3059 = vmatprep.subr.mxu0 0.0
    %3060 = vmatpush1.msra.mxu0 %v493
    %3061 = vmatprep.subr.mxu0 0.0
    %3062 = vmatpush1.msra.mxu0 %v494
    %3063 = vmatprep.subr.mxu0 0.0
    %3064 = vmatpush1.msra.mxu0 %v495
    %3065 = vmatprep.subr.mxu0 0.0
    %3066 = vmatpush1.msra.mxu0 %v496
    %3067 = vmatprep.subr.mxu0 0.0
    %3068 = vmatpush1.msra.mxu0 %v497
    %3069 = vmatprep.subr.mxu0 0.0
    %3070 = vmatpush1.msra.mxu0 %v498
    %3071 = vmatprep.subr.mxu0 0.0
    %3072 = vmatpush1.msra.mxu0 %v499
    %3073 = vmatprep.subr.mxu0 0.0
    %3074 = vmatpush1.msra.mxu0 %v500
    %3075 = vmatprep.subr.mxu0 0.0
    %3076 = vmatpush1.msra.mxu0 %v501
    %3077 = vmatprep.subr.mxu0 0.0
    %3078 = vmatpush1.msra.mxu0 %v502
    %3079 = vmatprep.subr.mxu0 0.0
    %3080 = vmatpush1.msra.mxu0 %v503
    %3081 = vmatprep.subr.mxu0 0.0
    %3082 = vmatpush1.msra.mxu0 %v504
    %3083 = vmatprep.subr.mxu0 0.0
    %3084 = vmatpush1.msra.mxu0 %v505
    %3085 = vmatprep.subr.mxu0 0.0
    %3086 = vmatpush1.msra.mxu0 %v506
    %3087 = vmatprep.subr.mxu0 0.0
    %3088 = vmatpush1.msra.mxu0 %v507
    %3089 = vmatprep.subr.mxu0 0.0
    %3090 = vmatpush1.msra.mxu0 %v508
    %3091 = vmatprep.subr.mxu0 0.0
    %3092 = vmatpush1.msra.mxu0 %v509
    %3093 = vmatprep.subr.mxu0 0.0
    %3094 = vmatpush1.msra.mxu0 %v510
    %3095 = vmatprep.subr.mxu0 0.0
    %3096 = vmatpush1.msra.mxu0 %v511
    %3097 = vmatprep.subr.mxu0 0.0
    %3098 = vmatpush1.msra.mxu0 %v512
    %3099 = vmatprep.subr.mxu0 0.0
    %3100 = vmatpush1.msra.mxu0 %v513
    %3101 = vmatprep.subr.mxu0 0.0
    %3102 = vmatpush1.msra.mxu0 %v514
    %3103 = vmatprep.subr.mxu0 0.0
    %3104 = vmatpush1.msra.mxu0 %v515
    %3105 = vmatprep.subr.mxu0 0.0
    %3106 = vmatpush1.msra.mxu0 %v516
    %3107 = vmatprep.subr.mxu0 0.0
    %3108 = vmatpush1.msra.mxu0 %v517
    %3109 = vmatprep.subr.mxu0 0.0
    %3110 = vmatpush1.msra.mxu0 %v518
    %3111 = vmatprep.subr.mxu0 0.0
    %3112 = vmatpush1.msra.mxu0 %v519
    %3113 = vmatprep.subr.mxu0 0.0
    %3114 = vmatpush1.msra.mxu0 %v520
    %3115 = vmatprep.subr.mxu0 0.0
    %3116 = vmatpush1.msra.mxu0 %v521
    %3117 = vmatprep.subr.mxu0 0.0
    %3118 = vmatpush1.msra.mxu0 %v522
    %3119 = vmatprep.subr.mxu0 0.0
    %3120 = vmatpush1.msra.mxu0 %v523
    %3121 = vmatprep.mubr.f32.mxu0 %v1761
    %3122 = vmatmul.mubr.f32.gmra.mrb[0].mxu0 %v1759
    %v3123 = vpop.f32.mrb[0].mxu0
    %v3124 = vadd.f32 %v3054, %v3123
    %v3125 = vpop.f32.mrb[0].mxu0
    %3126 = vdwg.mxu0
    %3127 = vmatprep.subr.mxu0 0.0
    %3128 = vmatpush1.msra.mxu0 %v524
    %3129 = vmatprep.subr.mxu0 0.0
    %3130 = vmatpush1.msra.mxu0 %v525
    %3131 = vmatprep.subr.mxu0 0.0
    %3132 = vmatpush1.msra.mxu0 %v526
    %3133 = vmatprep.subr.mxu0 0.0
    %3134 = vmatpush1.msra.mxu0 %v527
    %3135 = vmatprep.subr.mxu0 0.0
    %3136 = vmatpush1.msra.mxu0 %v528
    %3137 = vmatprep.subr.mxu0 0.0
    %3138 = vmatpush1.msra.mxu0 %v529
    %3139 = vmatprep.subr.mxu0 0.0
    %3140 = vmatpush1.msra.mxu0 %v530
    %3141 = vmatprep.subr.mxu0 0.0
    %3142 = vmatpush1.msra.mxu0 %v531
    %3143 = vmatprep.subr.mxu0 0.0
    %3144 = vmatpush1.msra.mxu0 %v532
    %3145 = vmatprep.subr.mxu0 0.0
    %3146 = vmatpush1.msra.mxu0 %v533
    %3147 = vmatprep.subr.mxu0 0.0
    %3148 = vmatpush1.msra.mxu0 %v534
    %3149 = vmatprep.subr.mxu0 0.0
    %3150 = vmatpush1.msra.mxu0 %v535
    %3151 = vmatprep.subr.mxu0 0.0
    %3152 = vmatpush1.msra.mxu0 %v536
    %3153 = vmatprep.subr.mxu0 0.0
    %3154 = vmatpush1.msra.mxu0 %v537
    %3155 = vmatprep.subr.mxu0 0.0
    %3156 = vmatpush1.msra.mxu0 %v538
    %3157 = vmatprep.subr.mxu0 0.0
    %3158 = vmatpush1.msra.mxu0 %v539
    %3159 = vmatprep.subr.mxu0 0.0
    %3160 = vmatpush1.msra.mxu0 %v540
    %3161 = vmatprep.subr.mxu0 0.0
    %3162 = vmatpush1.msra.mxu0 %v541
    %3163 = vmatprep.subr.mxu0 0.0
    %3164 = vmatpush1.msra.mxu0 %v542
    %3165 = vmatprep.subr.mxu0 0.0
    %3166 = vmatpush1.msra.mxu0 %v543
    %3167 = vmatprep.subr.mxu0 0.0
    %3168 = vmatpush1.msra.mxu0 %v544
    %3169 = vmatprep.subr.mxu0 0.0
    %3170 = vmatpush1.msra.mxu0 %v545
    %3171 = vmatprep.subr.mxu0 0.0
    %3172 = vmatpush1.msra.mxu0 %v546
    %3173 = vmatprep.subr.mxu0 0.0
    %3174 = vmatpush1.msra.mxu0 %v547
    %3175 = vmatprep.subr.mxu0 0.0
    %3176 = vmatpush1.msra.mxu0 %v548
    %3177 = vmatprep.subr.mxu0 0.0
    %3178 = vmatpush1.msra.mxu0 %v549
    %3179 = vmatprep.subr.mxu0 0.0
    %3180 = vmatpush1.msra.mxu0 %v550
    %3181 = vmatprep.subr.mxu0 0.0
    %3182 = vmatpush1.msra.mxu0 %v551
    %3183 = vmatprep.subr.mxu0 0.0
    %3184 = vmatpush1.msra.mxu0 %v552
    %3185 = vmatprep.subr.mxu0 0.0
    %3186 = vmatpush1.msra.mxu0 %v553
    %3187 = vmatprep.subr.mxu0 0.0
    %3188 = vmatpush1.msra.mxu0 %v554
    %3189 = vmatprep.subr.mxu0 0.0
    %3190 = vmatpush1.msra.mxu0 %v555
    %3191 = vmatprep.mubr.f32.mxu0 %v1777
    %3192 = vmatmul.mubr.f32.gmra.mrb[0].mxu0 %v1769
    %v3193 = vpop.f32.mrb[0].mxu0
    %v3194 = vadd.f32 %v3124, %v3193
    %v3195 = vpop.f32.mrb[0].mxu0
    %3196 = vdwg.mxu0
    %3197 = vmatprep.subr.mxu0 0.0
    %3198 = vmatpush1.msra.mxu0 %v556
    %3199 = vmatprep.subr.mxu0 0.0
    %3200 = vmatpush1.msra.mxu0 %v557
    %3201 = vmatprep.subr.mxu0 0.0
    %3202 = vmatpush1.msra.mxu0 %v558
    %3203 = vmatprep.subr.mxu0 0.0
    %3204 = vmatpush1.msra.mxu0 %v559
    %3205 = vmatprep.subr.mxu0 0.0
    %3206 = vmatpush1.msra.mxu0 %v560
    %3207 = vmatprep.subr.mxu0 0.0
    %3208 = vmatpush1.msra.mxu0 %v561
    %3209 = vmatprep.subr.mxu0 0.0
    %3210 = vmatpush1.msra.mxu0 %v562
    %3211 = vmatprep.subr.mxu0 0.0
    %3212 = vmatpush1.msra.mxu0 %v563
    %3213 = vmatprep.subr.mxu0 0.0
    %3214 = vmatpush1.msra.mxu0 %v564
    %3215 = vmatprep.subr.mxu0 0.0
    %3216 = vmatpush1.msra.mxu0 %v565
    %3217 = vmatprep.subr.mxu0 0.0
    %3218 = vmatpush1.msra.mxu0 %v566
    %3219 = vmatprep.subr.mxu0 0.0
    %3220 = vmatpush1.msra.mxu0 %v567
    %3221 = vmatprep.subr.mxu0 0.0
    %3222 = vmatpush1.msra.mxu0 %v568
    %3223 = vmatprep.subr.mxu0 0.0
    %3224 = vmatpush1.msra.mxu0 %v569
    %3225 = vmatprep.subr.mxu0 0.0
    %3226 = vmatpush1.msra.mxu0 %v570
    %3227 = vmatprep.subr.mxu0 0.0
    %3228 = vmatpush1.msra.mxu0 %v571
    %3229 = vmatprep.subr.mxu0 0.0
    %3230 = vmatpush1.msra.mxu0 %v572
    %3231 = vmatprep.subr.mxu0 0.0
    %3232 = vmatpush1.msra.mxu0 %v573
    %3233 = vmatprep.subr.mxu0 0.0
    %3234 = vmatpush1.msra.mxu0 %v574
    %3235 = vmatprep.subr.mxu0 0.0
    %3236 = vmatpush1.msra.mxu0 %v575
    %3237 = vmatprep.subr.mxu0 0.0
    %3238 = vmatpush1.msra.mxu0 %v576
    %3239 = vmatprep.subr.mxu0 0.0
    %3240 = vmatpush1.msra.mxu0 %v577
    %3241 = vmatprep.subr.mxu0 0.0
    %3242 = vmatpush1.msra.mxu0 %v578
    %3243 = vmatprep.subr.mxu0 0.0
    %3244 = vmatpush1.msra.mxu0 %v579
    %3245 = vmatprep.subr.mxu0 0.0
    %3246 = vmatpush1.msra.mxu0 %v580
    %3247 = vmatprep.subr.mxu0 0.0
    %3248 = vmatpush1.msra.mxu0 %v581
    %3249 = vmatprep.subr.mxu0 0.0
    %3250 = vmatpush1.msra.mxu0 %v582
    %3251 = vmatprep.subr.mxu0 0.0
    %3252 = vmatpush1.msra.mxu0 %v583
    %3253 = vmatprep.subr.mxu0 0.0
    %3254 = vmatpush1.msra.mxu0 %v584
    %3255 = vmatprep.subr.mxu0 0.0
    %3256 = vmatpush1.msra.mxu0 %v585
    %3257 = vmatprep.subr.mxu0 0.0
    %3258 = vmatpush1.msra.mxu0 %v586
    %3259 = vmatprep.subr.mxu0 0.0
    %3260 = vmatpush1.msra.mxu0 %v587
    %3261 = vmatprep.mubr.f32.mxu0 %v1778
    %3262 = vmatmul.mubr.f32.gmra.mrb[0].mxu0 %v1776
    %v3263 = vpop.f32.mrb[0].mxu0
    %v3264 = vadd.f32 %v3194, %v3263
    %v3265 = vpop.f32.mrb[0].mxu0
    %3266 = vdwg.mxu0
    %3267 = vmatprep.subr.mxu0 0.0
    %3268 = vmatpush1.msra.mxu0 %v588
    %3269 = vmatprep.subr.mxu0 0.0
    %3270 = vmatpush1.msra.mxu0 %v589
    %3271 = vmatprep.subr.mxu0 0.0
    %3272 = vmatpush1.msra.mxu0 %v590
    %3273 = vmatprep.subr.mxu0 0.0
    %3274 = vmatpush1.msra.mxu0 %v591
    %3275 = vmatprep.subr.mxu0 0.0
    %3276 = vmatpush1.msra.mxu0 %v592
    %3277 = vmatprep.subr.mxu0 0.0
    %3278 = vmatpush1.msra.mxu0 %v593
    %3279 = vmatprep.subr.mxu0 0.0
    %3280 = vmatpush1.msra.mxu0 %v594
    %3281 = vmatprep.subr.mxu0 0.0
    %3282 = vmatpush1.msra.mxu0 %v595
    %3283 = vmatprep.subr.mxu0 0.0
    %3284 = vmatpush1.msra.mxu0 %v596
    %3285 = vmatprep.subr.mxu0 0.0
    %3286 = vmatpush1.msra.mxu0 %v597
    %3287 = vmatprep.subr.mxu0 0.0
    %3288 = vmatpush1.msra.mxu0 %v598
    %3289 = vmatprep.subr.mxu0 0.0
    %3290 = vmatpush1.msra.mxu0 %v599
    %3291 = vmatprep.subr.mxu0 0.0
    %3292 = vmatpush1.msra.mxu0 %v600
    %3293 = vmatprep.subr.mxu0 0.0
    %3294 = vmatpush1.msra.mxu0 %v601
    %3295 = vmatprep.subr.mxu0 0.0
    %3296 = vmatpush1.msra.mxu0 %v602
    %3297 = vmatprep.subr.mxu0 0.0
    %3298 = vmatpush1.msra.mxu0 %v603
    %3299 = vmatprep.subr.mxu0 0.0
    %3300 = vmatpush1.msra.mxu0 %v604
    %3301 = vmatprep.subr.mxu0 0.0
    %3302 = vmatpush1.msra.mxu0 %v605
    %3303 = vmatprep.subr.mxu0 0.0
    %3304 = vmatpush1.msra.mxu0 %v606
    %3305 = vmatprep.subr.mxu0 0.0
    %3306 = vmatpush1.msra.mxu0 %v607
    %3307 = vmatprep.subr.mxu0 0.0
    %3308 = vmatpush1.msra.mxu0 %v608
    %3309 = vmatprep.subr.mxu0 0.0
    %3310 = vmatpush1.msra.mxu0 %v609
    %3311 = vmatprep.subr.mxu0 0.0
    %3312 = vmatpush1.msra.mxu0 %v610
    %3313 = vmatprep.subr.mxu0 0.0
    %3314 = vmatpush1.msra.mxu0 %v611
    %3315 = vmatprep.subr.mxu0 0.0
    %3316 = vmatpush1.msra.mxu0 %v612
    %3317 = vmatprep.subr.mxu0 0.0
    %3318 = vmatpush1.msra.mxu0 %v613
    %3319 = vmatprep.subr.mxu0 0.0
    %3320 = vmatpush1.msra.mxu0 %v614
    %3321 = vmatprep.subr.mxu0 0.0
    %3322 = vmatpush1.msra.mxu0 %v615
    %3323 = vmatprep.subr.mxu0 0.0
    %3324 = vmatpush1.msra.mxu0 %v616
    %3325 = vmatprep.subr.mxu0 0.0
    %3326 = vmatpush1.msra.mxu0 %v617
    %3327 = vmatprep.subr.mxu0 0.0
    %3328 = vmatpush1.msra.mxu0 %v618
    %3329 = vmatprep.subr.mxu0 0.0
    %3330 = vmatpush1.msra.mxu0 %v619
    %3331 = vmatprep.mubr.f32.mxu0 %v1794
    %3332 = vmatmul.mubr.f32.gmra.mrb[0].mxu0 %v1786
    %v3333 = vpop.f32.mrb[0].mxu0
    %v3334 = vadd.f32 %v3264, %v3333
    %v3335 = vpop.f32.mrb[0].mxu0
    %3336 = vdwg.mxu0
    %3337 = vmatprep.subr.mxu0 0.0
    %3338 = vmatpush1.msra.mxu0 %v620
    %3339 = vmatprep.subr.mxu0 0.0
    %3340 = vmatpush1.msra.mxu0 %v621
    %3341 = vmatprep.subr.mxu0 0.0
    %3342 = vmatpush1.msra.mxu0 %v622
    %3343 = vmatprep.subr.mxu0 0.0
    %3344 = vmatpush1.msra.mxu0 %v623
    %3345 = vmatprep.subr.mxu0 0.0
    %3346 = vmatpush1.msra.mxu0 %v624
    %3347 = vmatprep.subr.mxu0 0.0
    %3348 = vmatpush1.msra.mxu0 %v625
    %3349 = vmatprep.subr.mxu0 0.0
    %3350 = vmatpush1.msra.mxu0 %v626
    %3351 = vmatprep.subr.mxu0 0.0
    %3352 = vmatpush1.msra.mxu0 %v627
    %3353 = vmatprep.subr.mxu0 0.0
    %3354 = vmatpush1.msra.mxu0 %v628
    %3355 = vmatprep.subr.mxu0 0.0
    %3356 = vmatpush1.msra.mxu0 %v629
    %3357 = vmatprep.subr.mxu0 0.0
    %3358 = vmatpush1.msra.mxu0 %v630
    %3359 = vmatprep.subr.mxu0 0.0
    %3360 = vmatpush1.msra.mxu0 %v631
    %3361 = vmatprep.subr.mxu0 0.0
    %3362 = vmatpush1.msra.mxu0 %v632
    %3363 = vmatprep.subr.mxu0 0.0
    %3364 = vmatpush1.msra.mxu0 %v633
    %3365 = vmatprep.subr.mxu0 0.0
    %3366 = vmatpush1.msra.mxu0 %v634
    %3367 = vmatprep.subr.mxu0 0.0
    %3368 = vmatpush1.msra.mxu0 %v635
    %3369 = vmatprep.subr.mxu0 0.0
    %3370 = vmatpush1.msra.mxu0 %v636
    %3371 = vmatprep.subr.mxu0 0.0
    %3372 = vmatpush1.msra.mxu0 %v637
    %3373 = vmatprep.subr.mxu0 0.0
    %3374 = vmatpush1.msra.mxu0 %v638
    %3375 = vmatprep.subr.mxu0 0.0
    %3376 = vmatpush1.msra.mxu0 %v639
    %3377 = vmatprep.subr.mxu0 0.0
    %3378 = vmatpush1.msra.mxu0 %v640
    %3379 = vmatprep.subr.mxu0 0.0
    %3380 = vmatpush1.msra.mxu0 %v641
    %3381 = vmatprep.subr.mxu0 0.0
    %3382 = vmatpush1.msra.mxu0 %v642
    %3383 = vmatprep.subr.mxu0 0.0
    %3384 = vmatpush1.msra.mxu0 %v643
    %3385 = vmatprep.subr.mxu0 0.0
    %3386 = vmatpush1.msra.mxu0 %v644
    %3387 = vmatprep.subr.mxu0 0.0
    %3388 = vmatpush1.msra.mxu0 %v645
    %3389 = vmatprep.subr.mxu0 0.0
    %3390 = vmatpush1.msra.mxu0 %v646
    %3391 = vmatprep.subr.mxu0 0.0
    %3392 = vmatpush1.msra.mxu0 %v647
    %3393 = vmatprep.subr.mxu0 0.0
    %3394 = vmatpush1.msra.mxu0 %v648
    %3395 = vmatprep.subr.mxu0 0.0
    %3396 = vmatpush1.msra.mxu0 %v649
    %3397 = vmatprep.subr.mxu0 0.0
    %3398 = vmatpush1.msra.mxu0 %v650
    %3399 = vmatprep.subr.mxu0 0.0
    %3400 = vmatpush1.msra.mxu0 %v651
    %3401 = vmatprep.mubr.f32.mxu0 %v1795
    %3402 = vmatmul.mubr.f32.gmra.mrb[0].mxu0 %v1793
    %v3403 = vpop.f32.mrb[0].mxu0
    %v3404 = vadd.f32 %v3334, %v3403
    %v3405 = vpop.f32.mrb[0].mxu0
    %3406 = vdwg.mxu0
    %3407 = vmatprep.subr.mxu0 0.0
    %3408 = vmatpush1.msra.mxu0 %v652
    %3409 = vmatprep.subr.mxu0 0.0
    %3410 = vmatpush1.msra.mxu0 %v653
    %3411 = vmatprep.subr.mxu0 0.0
    %3412 = vmatpush1.msra.mxu0 %v654
    %3413 = vmatprep.subr.mxu0 0.0
    %3414 = vmatpush1.msra.mxu0 %v655
    %3415 = vmatprep.subr.mxu0 0.0
    %3416 = vmatpush1.msra.mxu0 %v656
    %3417 = vmatprep.subr.mxu0 0.0
    %3418 = vmatpush1.msra.mxu0 %v657
    %3419 = vmatprep.subr.mxu0 0.0
    %3420 = vmatpush1.msra.mxu0 %v658
    %3421 = vmatprep.subr.mxu0 0.0
    %3422 = vmatpush1.msra.mxu0 %v659
    %3423 = vmatprep.subr.mxu0 0.0
    %3424 = vmatpush1.msra.mxu0 %v660
    %3425 = vmatprep.subr.mxu0 0.0
    %3426 = vmatpush1.msra.mxu0 %v661
    %3427 = vmatprep.subr.mxu0 0.0
    %3428 = vmatpush1.msra.mxu0 %v662
    %3429 = vmatprep.subr.mxu0 0.0
    %3430 = vmatpush1.msra.mxu0 %v663
    %3431 = vmatprep.subr.mxu0 0.0
    %3432 = vmatpush1.msra.mxu0 %v664
    %3433 = vmatprep.subr.mxu0 0.0
    %3434 = vmatpush1.msra.mxu0 %v665
    %3435 = vmatprep.subr.mxu0 0.0
    %3436 = vmatpush1.msra.mxu0 %v666
    %3437 = vmatprep.subr.mxu0 0.0
    %3438 = vmatpush1.msra.mxu0 %v667
    %3439 = vmatprep.subr.mxu0 0.0
    %3440 = vmatpush1.msra.mxu0 %v668
    %3441 = vmatprep.subr.mxu0 0.0
    %3442 = vmatpush1.msra.mxu0 %v669
    %3443 = vmatprep.subr.mxu0 0.0
    %3444 = vmatpush1.msra.mxu0 %v670
    %3445 = vmatprep.subr.mxu0 0.0
    %3446 = vmatpush1.msra.mxu0 %v671
    %3447 = vmatprep.subr.mxu0 0.0
    %3448 = vmatpush1.msra.mxu0 %v672
    %3449 = vmatprep.subr.mxu0 0.0
    %3450 = vmatpush1.msra.mxu0 %v673
    %3451 = vmatprep.subr.mxu0 0.0
    %3452 = vmatpush1.msra.mxu0 %v674
    %3453 = vmatprep.subr.mxu0 0.0
    %3454 = vmatpush1.msra.mxu0 %v675
    %3455 = vmatprep.subr.mxu0 0.0
    %3456 = vmatpush1.msra.mxu0 %v676
    %3457 = vmatprep.subr.mxu0 0.0
    %3458 = vmatpush1.msra.mxu0 %v677
    %3459 = vmatprep.subr.mxu0 0.0
    %3460 = vmatpush1.msra.mxu0 %v678
    %3461 = vmatprep.subr.mxu0 0.0
    %3462 = vmatpush1.msra.mxu0 %v679
    %3463 = vmatprep.subr.mxu0 0.0
    %3464 = vmatpush1.msra.mxu0 %v680
    %3465 = vmatprep.subr.mxu0 0.0
    %3466 = vmatpush1.msra.mxu0 %v681
    %3467 = vmatprep.subr.mxu0 0.0
    %3468 = vmatpush1.msra.mxu0 %v682
    %3469 = vmatprep.subr.mxu0 0.0
    %3470 = vmatpush1.msra.mxu0 %v683
    %3471 = vmatprep.mubr.f32.mxu0 %v1811
    %3472 = vmatmul.mubr.f32.gmra.mrb[0].mxu0 %v1803
    %v3473 = vpop.f32.mrb[0].mxu0
    %v3474 = vadd.f32 %v3404, %v3473
    %v3475 = vpop.f32.mrb[0].mxu0
    %3476 = vdwg.mxu0
    %3477 = vmatprep.subr.mxu0 0.0
    %3478 = vmatpush1.msra.mxu0 %v684
    %3479 = vmatprep.subr.mxu0 0.0
    %3480 = vmatpush1.msra.mxu0 %v685
    %3481 = vmatprep.subr.mxu0 0.0
    %3482 = vmatpush1.msra.mxu0 %v686
    %3483 = vmatprep.subr.mxu0 0.0
    %3484 = vmatpush1.msra.mxu0 %v687
    %3485 = vmatprep.subr.mxu0 0.0
    %3486 = vmatpush1.msra.mxu0 %v688
    %3487 = vmatprep.subr.mxu0 0.0
    %3488 = vmatpush1.msra.mxu0 %v689
    %3489 = vmatprep.subr.mxu0 0.0
    %3490 = vmatpush1.msra.mxu0 %v690
    %3491 = vmatprep.subr.mxu0 0.0
    %3492 = vmatpush1.msra.mxu0 %v691
    %3493 = vmatprep.subr.mxu0 0.0
    %3494 = vmatpush1.msra.mxu0 %v692
    %3495 = vmatprep.subr.mxu0 0.0
    %3496 = vmatpush1.msra.mxu0 %v693
    %3497 = vmatprep.subr.mxu0 0.0
    %3498 = vmatpush1.msra.mxu0 %v694
    %3499 = vmatprep.subr.mxu0 0.0
    %3500 = vmatpush1.msra.mxu0 %v695
    %3501 = vmatprep.subr.mxu0 0.0
    %3502 = vmatpush1.msra.mxu0 %v696
    %3503 = vmatprep.subr.mxu0 0.0
    %3504 = vmatpush1.msra.mxu0 %v697
    %3505 = vmatprep.subr.mxu0 0.0
    %3506 = vmatpush1.msra.mxu0 %v698
    %3507 = vmatprep.subr.mxu0 0.0
    %3508 = vmatpush1.msra.mxu0 %v699
    %3509 = vmatprep.subr.mxu0 0.0
    %3510 = vmatpush1.msra.mxu0 %v700
    %3511 = vmatprep.subr.mxu0 0.0
    %3512 = vmatpush1.msra.mxu0 %v701
    %3513 = vmatprep.subr.mxu0 0.0
    %3514 = vmatpush1.msra.mxu0 %v702
    %3515 = vmatprep.subr.mxu0 0.0
    %3516 = vmatpush1.msra.mxu0 %v703
    %3517 = vmatprep.subr.mxu0 0.0
    %3518 = vmatpush1.msra.mxu0 %v704
    %3519 = vmatprep.subr.mxu0 0.0
    %3520 = vmatpush1.msra.mxu0 %v705
    %3521 = vmatprep.subr.mxu0 0.0
    %3522 = vmatpush1.msra.mxu0 %v706
    %3523 = vmatprep.subr.mxu0 0.0
    %3524 = vmatpush1.msra.mxu0 %v707
    %3525 = vmatprep.subr.mxu0 0.0
    %3526 = vmatpush1.msra.mxu0 %v708
    %3527 = vmatprep.subr.mxu0 0.0
    %3528 = vmatpush1.msra.mxu0 %v709
    %3529 = vmatprep.subr.mxu0 0.0
    %3530 = vmatpush1.msra.mxu0 %v710
    %3531 = vmatprep.subr.mxu0 0.0
    %3532 = vmatpush1.msra.mxu0 %v711
    %3533 = vmatprep.subr.mxu0 0.0
    %3534 = vmatpush1.msra.mxu0 %v712
    %3535 = vmatprep.subr.mxu0 0.0
    %3536 = vmatpush1.msra.mxu0 %v713
    %3537 = vmatprep.subr.mxu0 0.0
    %3538 = vmatpush1.msra.mxu0 %v714
    %3539 = vmatprep.subr.mxu0 0.0
    %3540 = vmatpush1.msra.mxu0 %v715
    %3541 = vmatprep.mubr.f32.mxu0 %v1812
    %3542 = vmatmul.mubr.f32.gmra.mrb[0].mxu0 %v1810
    %v3543 = vpop.f32.mrb[0].mxu0
    %v3544 = vadd.f32 %v3474, %v3543
    %v3545 = vpop.f32.mrb[0].mxu0
    %3546 = vdwg.mxu0
    %3547 = vmatprep.subr.mxu0 0.0
    %3548 = vmatpush1.msra.mxu0 %v716
    %3549 = vmatprep.subr.mxu0 0.0
    %3550 = vmatpush1.msra.mxu0 %v717
    %3551 = vmatprep.subr.mxu0 0.0
    %3552 = vmatpush1.msra.mxu0 %v718
    %3553 = vmatprep.subr.mxu0 0.0
    %3554 = vmatpush1.msra.mxu0 %v719
    %3555 = vmatprep.subr.mxu0 0.0
    %3556 = vmatpush1.msra.mxu0 %v720
    %3557 = vmatprep.subr.mxu0 0.0
    %3558 = vmatpush1.msra.mxu0 %v721
    %3559 = vmatprep.subr.mxu0 0.0
    %3560 = vmatpush1.msra.mxu0 %v722
    %3561 = vmatprep.subr.mxu0 0.0
    %3562 = vmatpush1.msra.mxu0 %v723
    %3563 = vmatprep.subr.mxu0 0.0
    %3564 = vmatpush1.msra.mxu0 %v724
    %3565 = vmatprep.subr.mxu0 0.0
    %3566 = vmatpush1.msra.mxu0 %v725
    %3567 = vmatprep.subr.mxu0 0.0
    %3568 = vmatpush1.msra.mxu0 %v726
    %3569 = vmatprep.subr.mxu0 0.0
    %3570 = vmatpush1.msra.mxu0 %v727
    %3571 = vmatprep.subr.mxu0 0.0
    %3572 = vmatpush1.msra.mxu0 %v728
    %3573 = vmatprep.subr.mxu0 0.0
    %3574 = vmatpush1.msra.mxu0 %v729
    %3575 = vmatprep.subr.mxu0 0.0
    %3576 = vmatpush1.msra.mxu0 %v730
    %3577 = vmatprep.subr.mxu0 0.0
    %3578 = vmatpush1.msra.mxu0 %v731
    %3579 = vmatprep.subr.mxu0 0.0
    %3580 = vmatpush1.msra.mxu0 %v732
    %3581 = vmatprep.subr.mxu0 0.0
    %3582 = vmatpush1.msra.mxu0 %v733
    %3583 = vmatprep.subr.mxu0 0.0
    %3584 = vmatpush1.msra.mxu0 %v734
    %3585 = vmatprep.subr.mxu0 0.0
    %3586 = vmatpush1.msra.mxu0 %v735
    %3587 = vmatprep.subr.mxu0 0.0
    %3588 = vmatpush1.msra.mxu0 %v736
    %3589 = vmatprep.subr.mxu0 0.0
    %3590 = vmatpush1.msra.mxu0 %v737
    %3591 = vmatprep.subr.mxu0 0.0
    %3592 = vmatpush1.msra.mxu0 %v738
    %3593 = vmatprep.subr.mxu0 0.0
    %3594 = vmatpush1.msra.mxu0 %v739
    %3595 = vmatprep.subr.mxu0 0.0
    %3596 = vmatpush1.msra.mxu0 %v740
    %3597 = vmatprep.subr.mxu0 0.0
    %3598 = vmatpush1.msra.mxu0 %v741
    %3599 = vmatprep.subr.mxu0 0.0
    %3600 = vmatpush1.msra.mxu0 %v742
    %3601 = vmatprep.subr.mxu0 0.0
    %3602 = vmatpush1.msra.mxu0 %v743
    %3603 = vmatprep.subr.mxu0 0.0
    %3604 = vmatpush1.msra.mxu0 %v744
    %3605 = vmatprep.subr.mxu0 0.0
    %3606 = vmatpush1.msra.mxu0 %v745
    %3607 = vmatprep.subr.mxu0 0.0
    %3608 = vmatpush1.msra.mxu0 %v746
    %3609 = vmatprep.subr.mxu0 0.0
    %3610 = vmatpush1.msra.mxu0 %v747
    %3611 = vmatprep.mubr.f32.mxu0 %v1828
    %3612 = vmatmul.mubr.f32.gmra.mrb[0].mxu0 %v1820
    %v3613 = vpop.f32.mrb[0].mxu0
    %v3614 = vadd.f32 %v3544, %v3613
    %v3615 = vpop.f32.mrb[0].mxu0
    %3616 = vdwg.mxu0
    %3617 = vmatprep.subr.mxu0 0.0
    %3618 = vmatpush1.msra.mxu0 %v748
    %3619 = vmatprep.subr.mxu0 0.0
    %3620 = vmatpush1.msra.mxu0 %v749
    %3621 = vmatprep.subr.mxu0 0.0
    %3622 = vmatpush1.msra.mxu0 %v750
    %3623 = vmatprep.subr.mxu0 0.0
    %3624 = vmatpush1.msra.mxu0 %v751
    %3625 = vmatprep.subr.mxu0 0.0
    %3626 = vmatpush1.msra.mxu0 %v752
    %3627 = vmatprep.subr.mxu0 0.0
    %3628 = vmatpush1.msra.mxu0 %v753
    %3629 = vmatprep.subr.mxu0 0.0
    %3630 = vmatpush1.msra.mxu0 %v754
    %3631 = vmatprep.subr.mxu0 0.0
    %3632 = vmatpush1.msra.mxu0 %v755
    %3633 = vmatprep.subr.mxu0 0.0
    %3634 = vmatpush1.msra.mxu0 %v756
    %3635 = vmatprep.subr.mxu0 0.0
    %3636 = vmatpush1.msra.mxu0 %v757
    %3637 = vmatprep.subr.mxu0 0.0
    %3638 = vmatpush1.msra.mxu0 %v758
    %3639 = vmatprep.subr.mxu0 0.0
    %3640 = vmatpush1.msra.mxu0 %v759
    %3641 = vmatprep.subr.mxu0 0.0
    %3642 = vmatpush1.msra.mxu0 %v760
    %3643 = vmatprep.subr.mxu0 0.0
    %3644 = vmatpush1.msra.mxu0 %v761
    %3645 = vmatprep.subr.mxu0 0.0
    %3646 = vmatpush1.msra.mxu0 %v762
    %3647 = vmatprep.subr.mxu0 0.0
    %3648 = vmatpush1.msra.mxu0 %v763
    %3649 = vmatprep.subr.mxu0 0.0
    %3650 = vmatpush1.msra.mxu0 %v764
    %3651 = vmatprep.subr.mxu0 0.0
    %3652 = vmatpush1.msra.mxu0 %v765
    %3653 = vmatprep.subr.mxu0 0.0
    %3654 = vmatpush1.msra.mxu0 %v766
    %3655 = vmatprep.subr.mxu0 0.0
    %3656 = vmatpush1.msra.mxu0 %v767
    %3657 = vmatprep.subr.mxu0 0.0
    %3658 = vmatpush1.msra.mxu0 %v768
    %3659 = vmatprep.subr.mxu0 0.0
    %3660 = vmatpush1.msra.mxu0 %v769
    %3661 = vmatprep.subr.mxu0 0.0
    %3662 = vmatpush1.msra.mxu0 %v770
    %3663 = vmatprep.subr.mxu0 0.0
    %3664 = vmatpush1.msra.mxu0 %v771
    %3665 = vmatprep.subr.mxu0 0.0
    %3666 = vmatpush1.msra.mxu0 %v772
    %3667 = vmatprep.subr.mxu0 0.0
    %3668 = vmatpush1.msra.mxu0 %v773
    %3669 = vmatprep.subr.mxu0 0.0
    %3670 = vmatpush1.msra.mxu0 %v774
    %3671 = vmatprep.subr.mxu0 0.0
    %3672 = vmatpush1.msra.mxu0 %v775
    %3673 = vmatprep.subr.mxu0 0.0
    %3674 = vmatpush1.msra.mxu0 %v776
    %3675 = vmatprep.subr.mxu0 0.0
    %3676 = vmatpush1.msra.mxu0 %v777
    %3677 = vmatprep.subr.mxu0 0.0
    %3678 = vmatpush1.msra.mxu0 %v778
    %3679 = vmatprep.subr.mxu0 0.0
    %3680 = vmatpush1.msra.mxu0 %v779
    %3681 = vmatprep.mubr.f32.mxu0 %v1829
    %3682 = vmatmul.mubr.f32.gmra.mrb[0].mxu0 %v1827
    %v3683 = vpop.f32.mrb[0].mxu0
    %v3684 = vadd.f32 %v3614, %v3683
    %v3685 = vpop.f32.mrb[0].mxu0
    %3686 = vdwg.mxu0
    %3687 = vmatprep.subr.mxu0 0.0
    %3688 = vmatpush1.msra.mxu0 %v780
    %3689 = vmatprep.subr.mxu0 0.0
    %3690 = vmatpush1.msra.mxu0 %v781
    %3691 = vmatprep.subr.mxu0 0.0
    %3692 = vmatpush1.msra.mxu0 %v782
    %3693 = vmatprep.subr.mxu0 0.0
    %3694 = vmatpush1.msra.mxu0 %v783
    %3695 = vmatprep.subr.mxu0 0.0
    %3696 = vmatpush1.msra.mxu0 %v784
    %3697 = vmatprep.subr.mxu0 0.0
    %3698 = vmatpush1.msra.mxu0 %v785
    %3699 = vmatprep.subr.mxu0 0.0
    %3700 = vmatpush1.msra.mxu0 %v786
    %3701 = vmatprep.subr.mxu0 0.0
    %3702 = vmatpush1.msra.mxu0 %v787
    %3703 = vmatprep.subr.mxu0 0.0
    %3704 = vmatpush1.msra.mxu0 %v788
    %3705 = vmatprep.subr.mxu0 0.0
    %3706 = vmatpush1.msra.mxu0 %v789
    %3707 = vmatprep.subr.mxu0 0.0
    %3708 = vmatpush1.msra.mxu0 %v790
    %3709 = vmatprep.subr.mxu0 0.0
    %3710 = vmatpush1.msra.mxu0 %v791
    %3711 = vmatprep.subr.mxu0 0.0
    %3712 = vmatpush1.msra.mxu0 %v792
    %3713 = vmatprep.subr.mxu0 0.0
    %3714 = vmatpush1.msra.mxu0 %v793
    %3715 = vmatprep.subr.mxu0 0.0
    %3716 = vmatpush1.msra.mxu0 %v794
    %3717 = vmatprep.subr.mxu0 0.0
    %3718 = vmatpush1.msra.mxu0 %v795
    %3719 = vmatprep.subr.mxu0 0.0
    %3720 = vmatpush1.msra.mxu0 %v796
    %3721 = vmatprep.subr.mxu0 0.0
    %3722 = vmatpush1.msra.mxu0 %v797
    %3723 = vmatprep.subr.mxu0 0.0
    %3724 = vmatpush1.msra.mxu0 %v798
    %3725 = vmatprep.subr.mxu0 0.0
    %3726 = vmatpush1.msra.mxu0 %v799
    %3727 = vmatprep.subr.mxu0 0.0
    %3728 = vmatpush1.msra.mxu0 %v800
    %3729 = vmatprep.subr.mxu0 0.0
    %3730 = vmatpush1.msra.mxu0 %v801
    %3731 = vmatprep.subr.mxu0 0.0
    %3732 = vmatpush1.msra.mxu0 %v802
    %3733 = vmatprep.subr.mxu0 0.0
    %3734 = vmatpush1.msra.mxu0 %v803
    %3735 = vmatprep.subr.mxu0 0.0
    %3736 = vmatpush1.msra.mxu0 %v804
    %3737 = vmatprep.subr.mxu0 0.0
    %3738 = vmatpush1.msra.mxu0 %v805
    %3739 = vmatprep.subr.mxu0 0.0
    %3740 = vmatpush1.msra.mxu0 %v806
    %3741 = vmatprep.subr.mxu0 0.0
    %3742 = vmatpush1.msra.mxu0 %v807
    %3743 = vmatprep.subr.mxu0 0.0
    %3744 = vmatpush1.msra.mxu0 %v808
    %3745 = vmatprep.subr.mxu0 0.0
    %3746 = vmatpush1.msra.mxu0 %v809
    %3747 = vmatprep.subr.mxu0 0.0
    %3748 = vmatpush1.msra.mxu0 %v810
    %3749 = vmatprep.subr.mxu0 0.0
    %3750 = vmatpush1.msra.mxu0 %v811
    %3751 = vmatprep.mubr.f32.mxu0 %v1845
    %3752 = vmatmul.mubr.f32.gmra.mrb[0].mxu0 %v1837
    %v3753 = vpop.f32.mrb[0].mxu0
    %v3754 = vadd.f32 %v3684, %v3753
    %v3755 = vpop.f32.mrb[0].mxu0
    %3756 = vdwg.mxu0
    %3757 = vmatprep.subr.mxu0 0.0
    %3758 = vmatpush1.msra.mxu0 %v812
    %3759 = vmatprep.subr.mxu0 0.0
    %3760 = vmatpush1.msra.mxu0 %v813
    %3761 = vmatprep.subr.mxu0 0.0
    %3762 = vmatpush1.msra.mxu0 %v814
    %3763 = vmatprep.subr.mxu0 0.0
    %3764 = vmatpush1.msra.mxu0 %v815
    %3765 = vmatprep.subr.mxu0 0.0
    %3766 = vmatpush1.msra.mxu0 %v816
    %3767 = vmatprep.subr.mxu0 0.0
    %3768 = vmatpush1.msra.mxu0 %v817
    %3769 = vmatprep.subr.mxu0 0.0
    %3770 = vmatpush1.msra.mxu0 %v818
    %3771 = vmatprep.subr.mxu0 0.0
    %3772 = vmatpush1.msra.mxu0 %v819
    %3773 = vmatprep.subr.mxu0 0.0
    %3774 = vmatpush1.msra.mxu0 %v820
    %3775 = vmatprep.subr.mxu0 0.0
    %3776 = vmatpush1.msra.mxu0 %v821
    %3777 = vmatprep.subr.mxu0 0.0
    %3778 = vmatpush1.msra.mxu0 %v822
    %3779 = vmatprep.subr.mxu0 0.0
    %3780 = vmatpush1.msra.mxu0 %v823
    %3781 = vmatprep.subr.mxu0 0.0
    %3782 = vmatpush1.msra.mxu0 %v824
    %3783 = vmatprep.subr.mxu0 0.0
    %3784 = vmatpush1.msra.mxu0 %v825
    %3785 = vmatprep.subr.mxu0 0.0
    %3786 = vmatpush1.msra.mxu0 %v826
    %3787 = vmatprep.subr.mxu0 0.0
    %3788 = vmatpush1.msra.mxu0 %v827
    %3789 = vmatprep.subr.mxu0 0.0
    %3790 = vmatpush1.msra.mxu0 %v828
    %3791 = vmatprep.subr.mxu0 0.0
    %3792 = vmatpush1.msra.mxu0 %v829
    %3793 = vmatprep.subr.mxu0 0.0
    %3794 = vmatpush1.msra.mxu0 %v830
    %3795 = vmatprep.subr.mxu0 0.0
    %3796 = vmatpush1.msra.mxu0 %v831
    %3797 = vmatprep.subr.mxu0 0.0
    %3798 = vmatpush1.msra.mxu0 %v832
    %3799 = vmatprep.subr.mxu0 0.0
    %3800 = vmatpush1.msra.mxu0 %v833
    %3801 = vmatprep.subr.mxu0 0.0
    %3802 = vmatpush1.msra.mxu0 %v834
    %3803 = vmatprep.subr.mxu0 0.0
    %3804 = vmatpush1.msra.mxu0 %v835
    %3805 = vmatprep.subr.mxu0 0.0
    %3806 = vmatpush1.msra.mxu0 %v836
    %3807 = vmatprep.subr.mxu0 0.0
    %3808 = vmatpush1.msra.mxu0 %v837
    %3809 = vmatprep.subr.mxu0 0.0
    %3810 = vmatpush1.msra.mxu0 %v838
    %3811 = vmatprep.subr.mxu0 0.0
    %3812 = vmatpush1.msra.mxu0 %v839
    %3813 = vmatprep.subr.mxu0 0.0
    %3814 = vmatpush1.msra.mxu0 %v840
    %3815 = vmatprep.subr.mxu0 0.0
    %3816 = vmatpush1.msra.mxu0 %v841
    %3817 = vmatprep.subr.mxu0 0.0
    %3818 = vmatpush1.msra.mxu0 %v842
    %3819 = vmatprep.subr.mxu0 0.0
    %3820 = vmatpush1.msra.mxu0 %v843
    %3821 = vmatprep.mubr.f32.mxu0 %v1846
    %3822 = vmatmul.mubr.f32.gmra.mrb[0].mxu0 %v1844
    %v3823 = vpop.f32.mrb[0].mxu0
    %v3824 = vadd.f32 %v3754, %v3823
    %v3825 = vpop.f32.mrb[0].mxu0
    %3826 = vdwg.mxu0
    %3827 = vmatprep.subr.mxu0 0.0
    %3828 = vmatpush1.msra.mxu0 %v844
    %3829 = vmatprep.subr.mxu0 0.0
    %3830 = vmatpush1.msra.mxu0 %v845
    %3831 = vmatprep.subr.mxu0 0.0
    %3832 = vmatpush1.msra.mxu0 %v846
    %3833 = vmatprep.subr.mxu0 0.0
    %3834 = vmatpush1.msra.mxu0 %v847
    %3835 = vmatprep.subr.mxu0 0.0
    %3836 = vmatpush1.msra.mxu0 %v848
    %3837 = vmatprep.subr.mxu0 0.0
    %3838 = vmatpush1.msra.mxu0 %v849
    %3839 = vmatprep.subr.mxu0 0.0
    %3840 = vmatpush1.msra.mxu0 %v850
    %3841 = vmatprep.subr.mxu0 0.0
    %3842 = vmatpush1.msra.mxu0 %v851
    %3843 = vmatprep.subr.mxu0 0.0
    %3844 = vmatpush1.msra.mxu0 %v852
    %3845 = vmatprep.subr.mxu0 0.0
    %3846 = vmatpush1.msra.mxu0 %v853
    %3847 = vmatprep.subr.mxu0 0.0
    %3848 = vmatpush1.msra.mxu0 %v854
    %3849 = vmatprep.subr.mxu0 0.0
    %3850 = vmatpush1.msra.mxu0 %v855
    %3851 = vmatprep.subr.mxu0 0.0
    %3852 = vmatpush1.msra.mxu0 %v856
    %3853 = vmatprep.subr.mxu0 0.0
    %3854 = vmatpush1.msra.mxu0 %v857
    %3855 = vmatprep.subr.mxu0 0.0
    %3856 = vmatpush1.msra.mxu0 %v858
    %3857 = vmatprep.subr.mxu0 0.0
    %3858 = vmatpush1.msra.mxu0 %v859
    %3859 = vmatprep.subr.mxu0 0.0
    %3860 = vmatpush1.msra.mxu0 %v860
    %3861 = vmatprep.subr.mxu0 0.0
    %3862 = vmatpush1.msra.mxu0 %v861
    %3863 = vmatprep.subr.mxu0 0.0
    %3864 = vmatpush1.msra.mxu0 %v862
    %3865 = vmatprep.subr.mxu0 0.0
    %3866 = vmatpush1.msra.mxu0 %v863
    %3867 = vmatprep.subr.mxu0 0.0
    %3868 = vmatpush1.msra.mxu0 %v864
    %3869 = vmatprep.subr.mxu0 0.0
    %3870 = vmatpush1.msra.mxu0 %v865
    %3871 = vmatprep.subr.mxu0 0.0
    %3872 = vmatpush1.msra.mxu0 %v866
    %3873 = vmatprep.subr.mxu0 0.0
    %3874 = vmatpush1.msra.mxu0 %v867
    %3875 = vmatprep.subr.mxu0 0.0
    %3876 = vmatpush1.msra.mxu0 %v868
    %3877 = vmatprep.subr.mxu0 0.0
    %3878 = vmatpush1.msra.mxu0 %v869
    %3879 = vmatprep.subr.mxu0 0.0
    %3880 = vmatpush1.msra.mxu0 %v870
    %3881 = vmatprep.subr.mxu0 0.0
    %3882 = vmatpush1.msra.mxu0 %v871
    %3883 = vmatprep.subr.mxu0 0.0
    %3884 = vmatpush1.msra.mxu0 %v872
    %3885 = vmatprep.subr.mxu0 0.0
    %3886 = vmatpush1.msra.mxu0 %v873
    %3887 = vmatprep.subr.mxu0 0.0
    %3888 = vmatpush1.msra.mxu0 %v874
    %3889 = vmatprep.subr.mxu0 0.0
    %3890 = vmatpush1.msra.mxu0 %v875
    %3891 = vmatprep.mubr.f32.mxu0 %v1862
    %3892 = vmatmul.mubr.f32.gmra.mrb[0].mxu0 %v1854
    %v3893 = vpop.f32.mrb[0].mxu0
    %v3894 = vadd.f32 %v3824, %v3893
    %v3895 = vpop.f32.mrb[0].mxu0
    %3896 = vdwg.mxu0
    %3897 = vmatprep.subr.mxu0 0.0
    %3898 = vmatpush1.msra.mxu0 %v876
    %3899 = vmatprep.subr.mxu0 0.0
    %3900 = vmatpush1.msra.mxu0 %v877
    %3901 = vmatprep.subr.mxu0 0.0
    %3902 = vmatpush1.msra.mxu0 %v878
    %3903 = vmatprep.subr.mxu0 0.0
    %3904 = vmatpush1.msra.mxu0 %v879
    %3905 = vmatprep.subr.mxu0 0.0
    %3906 = vmatpush1.msra.mxu0 %v880
    %3907 = vmatprep.subr.mxu0 0.0
    %3908 = vmatpush1.msra.mxu0 %v881
    %3909 = vmatprep.subr.mxu0 0.0
    %3910 = vmatpush1.msra.mxu0 %v882
    %3911 = vmatprep.subr.mxu0 0.0
    %3912 = vmatpush1.msra.mxu0 %v883
    %3913 = vmatprep.subr.mxu0 0.0
    %3914 = vmatpush1.msra.mxu0 %v884
    %3915 = vmatprep.subr.mxu0 0.0
    %3916 = vmatpush1.msra.mxu0 %v885
    %3917 = vmatprep.subr.mxu0 0.0
    %3918 = vmatpush1.msra.mxu0 %v886
    %3919 = vmatprep.subr.mxu0 0.0
    %3920 = vmatpush1.msra.mxu0 %v887
    %3921 = vmatprep.subr.mxu0 0.0
    %3922 = vmatpush1.msra.mxu0 %v888
    %3923 = vmatprep.subr.mxu0 0.0
    %3924 = vmatpush1.msra.mxu0 %v889
    %3925 = vmatprep.subr.mxu0 0.0
    %3926 = vmatpush1.msra.mxu0 %v890
    %3927 = vmatprep.subr.mxu0 0.0
    %3928 = vmatpush1.msra.mxu0 %v891
    %3929 = vmatprep.subr.mxu0 0.0
    %3930 = vmatpush1.msra.mxu0 %v892
    %3931 = vmatprep.subr.mxu0 0.0
    %3932 = vmatpush1.msra.mxu0 %v893
    %3933 = vmatprep.subr.mxu0 0.0
    %3934 = vmatpush1.msra.mxu0 %v894
    %3935 = vmatprep.subr.mxu0 0.0
    %3936 = vmatpush1.msra.mxu0 %v895
    %3937 = vmatprep.subr.mxu0 0.0
    %3938 = vmatpush1.msra.mxu0 %v896
    %3939 = vmatprep.subr.mxu0 0.0
    %3940 = vmatpush1.msra.mxu0 %v897
    %3941 = vmatprep.subr.mxu0 0.0
    %3942 = vmatpush1.msra.mxu0 %v898
    %3943 = vmatprep.subr.mxu0 0.0
    %3944 = vmatpush1.msra.mxu0 %v899
    %3945 = vmatprep.subr.mxu0 0.0
    %3946 = vmatpush1.msra.mxu0 %v900
    %3947 = vmatprep.subr.mxu0 0.0
    %3948 = vmatpush1.msra.mxu0 %v901
    %3949 = vmatprep.subr.mxu0 0.0
    %3950 = vmatpush1.msra.mxu0 %v902
    %3951 = vmatprep.subr.mxu0 0.0
    %3952 = vmatpush1.msra.mxu0 %v903
    %3953 = vmatprep.subr.mxu0 0.0
    %3954 = vmatpush1.msra.mxu0 %v904
    %3955 = vmatprep.subr.mxu0 0.0
    %3956 = vmatpush1.msra.mxu0 %v905
    %3957 = vmatprep.subr.mxu0 0.0
    %3958 = vmatpush1.msra.mxu0 %v906
    %3959 = vmatprep.subr.mxu0 0.0
    %3960 = vmatpush1.msra.mxu0 %v907
    %3961 = vmatprep.mubr.f32.mxu0 %v1863
    %3962 = vmatmul.mubr.f32.gmra.mrb[0].mxu0 %v1861
    %v3963 = vpop.f32.mrb[0].mxu0
    %v3964 = vadd.f32 %v3894, %v3963
    %v3965 = vpop.f32.mrb[0].mxu0
    %3966 = vdwg.mxu0
    %3967 = vmatprep.subr.mxu0 0.0
    %3968 = vmatpush1.msra.mxu0 %v908
    %3969 = vmatprep.subr.mxu0 0.0
    %3970 = vmatpush1.msra.mxu0 %v909
    %3971 = vmatprep.subr.mxu0 0.0
    %3972 = vmatpush1.msra.mxu0 %v910
    %3973 = vmatprep.subr.mxu0 0.0
    %3974 = vmatpush1.msra.mxu0 %v911
    %3975 = vmatprep.subr.mxu0 0.0
    %3976 = vmatpush1.msra.mxu0 %v912
    %3977 = vmatprep.subr.mxu0 0.0
    %3978 = vmatpush1.msra.mxu0 %v913
    %3979 = vmatprep.subr.mxu0 0.0
    %3980 = vmatpush1.msra.mxu0 %v914
    %3981 = vmatprep.subr.mxu0 0.0
    %3982 = vmatpush1.msra.mxu0 %v915
    %3983 = vmatprep.subr.mxu0 0.0
    %3984 = vmatpush1.msra.mxu0 %v916
    %3985 = vmatprep.subr.mxu0 0.0
    %3986 = vmatpush1.msra.mxu0 %v917
    %3987 = vmatprep.subr.mxu0 0.0
    %3988 = vmatpush1.msra.mxu0 %v918
    %3989 = vmatprep.subr.mxu0 0.0
    %3990 = vmatpush1.msra.mxu0 %v919
    %3991 = vmatprep.subr.mxu0 0.0
    %3992 = vmatpush1.msra.mxu0 %v920
    %3993 = vmatprep.subr.mxu0 0.0
    %3994 = vmatpush1.msra.mxu0 %v921
    %3995 = vmatprep.subr.mxu0 0.0
    %3996 = vmatpush1.msra.mxu0 %v922
    %3997 = vmatprep.subr.mxu0 0.0
    %3998 = vmatpush1.msra.mxu0 %v923
    %3999 = vmatprep.subr.mxu0 0.0
    %4000 = vmatpush1.msra.mxu0 %v924
    %4001 = vmatprep.subr.mxu0 0.0
    %4002 = vmatpush1.msra.mxu0 %v925
    %4003 = vmatprep.subr.mxu0 0.0
    %4004 = vmatpush1.msra.mxu0 %v926
    %4005 = vmatprep.subr.mxu0 0.0
    %4006 = vmatpush1.msra.mxu0 %v927
    %4007 = vmatprep.subr.mxu0 0.0
    %4008 = vmatpush1.msra.mxu0 %v928
    %4009 = vmatprep.subr.mxu0 0.0
    %4010 = vmatpush1.msra.mxu0 %v929
    %4011 = vmatprep.subr.mxu0 0.0
    %4012 = vmatpush1.msra.mxu0 %v930
    %4013 = vmatprep.subr.mxu0 0.0
    %4014 = vmatpush1.msra.mxu0 %v931
    %4015 = vmatprep.subr.mxu0 0.0
    %4016 = vmatpush1.msra.mxu0 %v932
    %4017 = vmatprep.subr.mxu0 0.0
    %4018 = vmatpush1.msra.mxu0 %v933
    %4019 = vmatprep.subr.mxu0 0.0
    %4020 = vmatpush1.msra.mxu0 %v934
    %4021 = vmatprep.subr.mxu0 0.0
    %4022 = vmatpush1.msra.mxu0 %v935
    %4023 = vmatprep.subr.mxu0 0.0
    %4024 = vmatpush1.msra.mxu0 %v936
    %4025 = vmatprep.subr.mxu0 0.0
    %4026 = vmatpush1.msra.mxu0 %v937
    %4027 = vmatprep.subr.mxu0 0.0
    %4028 = vmatpush1.msra.mxu0 %v938
    %4029 = vmatprep.subr.mxu0 0.0
    %4030 = vmatpush1.msra.mxu0 %v939
    %4031 = vmatprep.mubr.f32.mxu0 %v1879
    %4032 = vmatmul.mubr.f32.gmra.mrb[0].mxu0 %v1871
    %v4033 = vpop.f32.mrb[0].mxu0
    %v4034 = vadd.f32 %v3964, %v4033
    %v4035 = vpop.f32.mrb[0].mxu0
    %4036 = vdwg.mxu0
    %4037 = vmatprep.subr.mxu0 0.0
    %4038 = vmatpush1.msra.mxu0 %v940
    %4039 = vmatprep.subr.mxu0 0.0
    %4040 = vmatpush1.msra.mxu0 %v941
    %4041 = vmatprep.subr.mxu0 0.0
    %4042 = vmatpush1.msra.mxu0 %v942
    %4043 = vmatprep.subr.mxu0 0.0
    %4044 = vmatpush1.msra.mxu0 %v943
    %4045 = vmatprep.subr.mxu0 0.0
    %4046 = vmatpush1.msra.mxu0 %v944
    %4047 = vmatprep.subr.mxu0 0.0
    %4048 = vmatpush1.msra.mxu0 %v945
    %4049 = vmatprep.subr.mxu0 0.0
    %4050 = vmatpush1.msra.mxu0 %v946
    %4051 = vmatprep.subr.mxu0 0.0
    %4052 = vmatpush1.msra.mxu0 %v947
    %4053 = vmatprep.subr.mxu0 0.0
    %4054 = vmatpush1.msra.mxu0 %v948
    %4055 = vmatprep.subr.mxu0 0.0
    %4056 = vmatpush1.msra.mxu0 %v949
    %4057 = vmatprep.subr.mxu0 0.0
    %4058 = vmatpush1.msra.mxu0 %v950
    %4059 = vmatprep.subr.mxu0 0.0
    %4060 = vmatpush1.msra.mxu0 %v951
    %4061 = vmatprep.subr.mxu0 0.0
    %4062 = vmatpush1.msra.mxu0 %v952
    %4063 = vmatprep.subr.mxu0 0.0
    %4064 = vmatpush1.msra.mxu0 %v953
    %4065 = vmatprep.subr.mxu0 0.0
    %4066 = vmatpush1.msra.mxu0 %v954
    %4067 = vmatprep.subr.mxu0 0.0
    %4068 = vmatpush1.msra.mxu0 %v955
    %4069 = vmatprep.subr.mxu0 0.0
    %4070 = vmatpush1.msra.mxu0 %v956
    %4071 = vmatprep.subr.mxu0 0.0
    %4072 = vmatpush1.msra.mxu0 %v957
    %4073 = vmatprep.subr.mxu0 0.0
    %4074 = vmatpush1.msra.mxu0 %v958
    %4075 = vmatprep.subr.mxu0 0.0
    %4076 = vmatpush1.msra.mxu0 %v959
    %4077 = vmatprep.subr.mxu0 0.0
    %4078 = vmatpush1.msra.mxu0 %v960
    %4079 = vmatprep.subr.mxu0 0.0
    %4080 = vmatpush1.msra.mxu0 %v961
    %4081 = vmatprep.subr.mxu0 0.0
    %4082 = vmatpush1.msra.mxu0 %v962
    %4083 = vmatprep.subr.mxu0 0.0
    %4084 = vmatpush1.msra.mxu0 %v963
    %4085 = vmatprep.subr.mxu0 0.0
    %4086 = vmatpush1.msra.mxu0 %v964
    %4087 = vmatprep.subr.mxu0 0.0
    %4088 = vmatpush1.msra.mxu0 %v965
    %4089 = vmatprep.subr.mxu0 0.0
    %4090 = vmatpush1.msra.mxu0 %v966
    %4091 = vmatprep.subr.mxu0 0.0
    %4092 = vmatpush1.msra.mxu0 %v967
    %4093 = vmatprep.subr.mxu0 0.0
    %4094 = vmatpush1.msra.mxu0 %v968
    %4095 = vmatprep.subr.mxu0 0.0
    %4096 = vmatpush1.msra.mxu0 %v969
    %4097 = vmatprep.subr.mxu0 0.0
    %4098 = vmatpush1.msra.mxu0 %v970
    %4099 = vmatprep.subr.mxu0 0.0
    %4100 = vmatpush1.msra.mxu0 %v971
    %4101 = vmatprep.mubr.f32.mxu0 %v1880
    %4102 = vmatmul.mubr.f32.gmra.mrb[0].mxu0 %v1878
    %v4103 = vpop.f32.mrb[0].mxu0
    %v4104 = vadd.f32 %v4034, %v4103
    %v4105 = vpop.f32.mrb[0].mxu0
    %4106 = vdwg.mxu0
    %4107 = vmatprep.subr.mxu0 0.0
    %4108 = vmatpush1.msra.mxu0 %v972
    %4109 = vmatprep.subr.mxu0 0.0
    %4110 = vmatpush1.msra.mxu0 %v973
    %4111 = vmatprep.subr.mxu0 0.0
    %4112 = vmatpush1.msra.mxu0 %v974
    %4113 = vmatprep.subr.mxu0 0.0
    %4114 = vmatpush1.msra.mxu0 %v975
    %4115 = vmatprep.subr.mxu0 0.0
    %4116 = vmatpush1.msra.mxu0 %v976
    %4117 = vmatprep.subr.mxu0 0.0
    %4118 = vmatpush1.msra.mxu0 %v977
    %4119 = vmatprep.subr.mxu0 0.0
    %4120 = vmatpush1.msra.mxu0 %v978
    %4121 = vmatprep.subr.mxu0 0.0
    %4122 = vmatpush1.msra.mxu0 %v979
    %4123 = vmatprep.subr.mxu0 0.0
    %4124 = vmatpush1.msra.mxu0 %v980
    %4125 = vmatprep.subr.mxu0 0.0
    %4126 = vmatpush1.msra.mxu0 %v981
    %4127 = vmatprep.subr.mxu0 0.0
    %4128 = vmatpush1.msra.mxu0 %v982
    %4129 = vmatprep.subr.mxu0 0.0
    %4130 = vmatpush1.msra.mxu0 %v983
    %4131 = vmatprep.subr.mxu0 0.0
    %4132 = vmatpush1.msra.mxu0 %v984
    %4133 = vmatprep.subr.mxu0 0.0
    %4134 = vmatpush1.msra.mxu0 %v985
    %4135 = vmatprep.subr.mxu0 0.0
    %4136 = vmatpush1.msra.mxu0 %v986
    %4137 = vmatprep.subr.mxu0 0.0
    %4138 = vmatpush1.msra.mxu0 %v987
    %4139 = vmatprep.subr.mxu0 0.0
    %4140 = vmatpush1.msra.mxu0 %v988
    %4141 = vmatprep.subr.mxu0 0.0
    %4142 = vmatpush1.msra.mxu0 %v989
    %4143 = vmatprep.subr.mxu0 0.0
    %4144 = vmatpush1.msra.mxu0 %v990
    %4145 = vmatprep.subr.mxu0 0.0
    %4146 = vmatpush1.msra.mxu0 %v991
    %4147 = vmatprep.subr.mxu0 0.0
    %4148 = vmatpush1.msra.mxu0 %v992
    %4149 = vmatprep.subr.mxu0 0.0
    %4150 = vmatpush1.msra.mxu0 %v993
    %4151 = vmatprep.subr.mxu0 0.0
    %4152 = vmatpush1.msra.mxu0 %v994
    %4153 = vmatprep.subr.mxu0 0.0
    %4154 = vmatpush1.msra.mxu0 %v995
    %4155 = vmatprep.subr.mxu0 0.0
    %4156 = vmatpush1.msra.mxu0 %v996
    %4157 = vmatprep.subr.mxu0 0.0
    %4158 = vmatpush1.msra.mxu0 %v997
    %4159 = vmatprep.subr.mxu0 0.0
    %4160 = vmatpush1.msra.mxu0 %v998
    %4161 = vmatprep.subr.mxu0 0.0
    %4162 = vmatpush1.msra.mxu0 %v999
    %4163 = vmatprep.subr.mxu0 0.0
    %4164 = vmatpush1.msra.mxu0 %v1000
    %4165 = vmatprep.subr.mxu0 0.0
    %4166 = vmatpush1.msra.mxu0 %v1001
    %4167 = vmatprep.subr.mxu0 0.0
    %4168 = vmatpush1.msra.mxu0 %v1002
    %4169 = vmatprep.subr.mxu0 0.0
    %4170 = vmatpush1.msra.mxu0 %v1003
    %4171 = vmatprep.mubr.f32.mxu0 %v1896
    %4172 = vmatmul.mubr.f32.gmra.mrb[0].mxu0 %v1888
    %v4173 = vpop.f32.mrb[0].mxu0
    %v4174 = vadd.f32 %v4104, %v4173
    %v4175 = vpop.f32.mrb[0].mxu0
    %4176 = vdwg.mxu0
    %4177 = vmatprep.subr.mxu0 0.0
    %4178 = vmatpush1.msra.mxu0 %v1004
    %4179 = vmatprep.subr.mxu0 0.0
    %4180 = vmatpush1.msra.mxu0 %v1005
    %4181 = vmatprep.subr.mxu0 0.0
    %4182 = vmatpush1.msra.mxu0 %v1006
    %4183 = vmatprep.subr.mxu0 0.0
    %4184 = vmatpush1.msra.mxu0 %v1007
    %4185 = vmatprep.subr.mxu0 0.0
    %4186 = vmatpush1.msra.mxu0 %v1008
    %4187 = vmatprep.subr.mxu0 0.0
    %4188 = vmatpush1.msra.mxu0 %v1009
    %4189 = vmatprep.subr.mxu0 0.0
    %4190 = vmatpush1.msra.mxu0 %v1010
    %4191 = vmatprep.subr.mxu0 0.0
    %4192 = vmatpush1.msra.mxu0 %v1011
    %4193 = vmatprep.subr.mxu0 0.0
    %4194 = vmatpush1.msra.mxu0 %v1012
    %4195 = vmatprep.subr.mxu0 0.0
    %4196 = vmatpush1.msra.mxu0 %v1013
    %4197 = vmatprep.subr.mxu0 0.0
    %4198 = vmatpush1.msra.mxu0 %v1014
    %4199 = vmatprep.subr.mxu0 0.0
    %4200 = vmatpush1.msra.mxu0 %v1015
    %4201 = vmatprep.subr.mxu0 0.0
    %4202 = vmatpush1.msra.mxu0 %v1016
    %4203 = vmatprep.subr.mxu0 0.0
    %4204 = vmatpush1.msra.mxu0 %v1017
    %4205 = vmatprep.subr.mxu0 0.0
    %4206 = vmatpush1.msra.mxu0 %v1018
    %4207 = vmatprep.subr.mxu0 0.0
    %4208 = vmatpush1.msra.mxu0 %v1019
    %4209 = vmatprep.subr.mxu0 0.0
    %4210 = vmatpush1.msra.mxu0 %v1020
    %4211 = vmatprep.subr.mxu0 0.0
    %4212 = vmatpush1.msra.mxu0 %v1021
    %4213 = vmatprep.subr.mxu0 0.0
    %4214 = vmatpush1.msra.mxu0 %v1022
    %4215 = vmatprep.subr.mxu0 0.0
    %4216 = vmatpush1.msra.mxu0 %v1023
    %4217 = vmatprep.subr.mxu0 0.0
    %4218 = vmatpush1.msra.mxu0 %v1024
    %4219 = vmatprep.subr.mxu0 0.0
    %4220 = vmatpush1.msra.mxu0 %v1025
    %4221 = vmatprep.subr.mxu0 0.0
    %4222 = vmatpush1.msra.mxu0 %v1026
    %4223 = vmatprep.subr.mxu0 0.0
    %4224 = vmatpush1.msra.mxu0 %v1027
    %4225 = vmatprep.subr.mxu0 0.0
    %4226 = vmatpush1.msra.mxu0 %v1028
    %4227 = vmatprep.subr.mxu0 0.0
    %4228 = vmatpush1.msra.mxu0 %v1029
    %4229 = vmatprep.subr.mxu0 0.0
    %4230 = vmatpush1.msra.mxu0 %v1030
    %4231 = vmatprep.subr.mxu0 0.0
    %4232 = vmatpush1.msra.mxu0 %v1031
    %4233 = vmatprep.subr.mxu0 0.0
    %4234 = vmatpush1.msra.mxu0 %v1032
    %4235 = vmatprep.subr.mxu0 0.0
    %4236 = vmatpush1.msra.mxu0 %v1033
    %4237 = vmatprep.subr.mxu0 0.0
    %4238 = vmatpush1.msra.mxu0 %v1034
    %4239 = vmatprep.subr.mxu0 0.0
    %4240 = vmatpush1.msra.mxu0 %v1035
    %4241 = vmatprep.mubr.f32.mxu0 %v1897
    %4242 = vmatmul.mubr.f32.gmra.mrb[0].mxu0 %v1895
    %v4243 = vpop.f32.mrb[0].mxu0
    %v4244 = vadd.f32 %v4174, %v4243
    %v4245 = vpop.f32.mrb[0].mxu0
    %4246 = vdwg.mxu0
    %4247 = vmatprep.subr.mxu0 0.0
    %4248 = vmatpush1.msra.mxu0 %v1036
    %4249 = vmatprep.subr.mxu0 0.0
    %4250 = vmatpush1.msra.mxu0 %v1037
    %4251 = vmatprep.subr.mxu0 0.0
    %4252 = vmatpush1.msra.mxu0 %v1038
    %4253 = vmatprep.subr.mxu0 0.0
    %4254 = vmatpush1.msra.mxu0 %v1039
    %4255 = vmatprep.subr.mxu0 0.0
    %4256 = vmatpush1.msra.mxu0 %v1040
    %4257 = vmatprep.subr.mxu0 0.0
    %4258 = vmatpush1.msra.mxu0 %v1041
    %4259 = vmatprep.subr.mxu0 0.0
    %4260 = vmatpush1.msra.mxu0 %v1042
    %4261 = vmatprep.subr.mxu0 0.0
    %4262 = vmatpush1.msra.mxu0 %v1043
    %4263 = vmatprep.subr.mxu0 0.0
    %4264 = vmatpush1.msra.mxu0 %v1044
    %4265 = vmatprep.subr.mxu0 0.0
    %4266 = vmatpush1.msra.mxu0 %v1045
    %4267 = vmatprep.subr.mxu0 0.0
    %4268 = vmatpush1.msra.mxu0 %v1046
    %4269 = vmatprep.subr.mxu0 0.0
    %4270 = vmatpush1.msra.mxu0 %v1047
    %4271 = vmatprep.subr.mxu0 0.0
    %4272 = vmatpush1.msra.mxu0 %v1048
    %4273 = vmatprep.subr.mxu0 0.0
    %4274 = vmatpush1.msra.mxu0 %v1049
    %4275 = vmatprep.subr.mxu0 0.0
    %4276 = vmatpush1.msra.mxu0 %v1050
    %4277 = vmatprep.subr.mxu0 0.0
    %4278 = vmatpush1.msra.mxu0 %v1051
    %4279 = vmatprep.subr.mxu0 0.0
    %4280 = vmatpush1.msra.mxu0 %v1052
    %4281 = vmatprep.subr.mxu0 0.0
    %4282 = vmatpush1.msra.mxu0 %v1053
    %4283 = vmatprep.subr.mxu0 0.0
    %4284 = vmatpush1.msra.mxu0 %v1054
    %4285 = vmatprep.subr.mxu0 0.0
    %4286 = vmatpush1.msra.mxu0 %v1055
    %4287 = vmatprep.subr.mxu0 0.0
    %4288 = vmatpush1.msra.mxu0 %v1056
    %4289 = vmatprep.subr.mxu0 0.0
    %4290 = vmatpush1.msra.mxu0 %v1057
    %4291 = vmatprep.subr.mxu0 0.0
    %4292 = vmatpush1.msra.mxu0 %v1058
    %4293 = vmatprep.subr.mxu0 0.0
    %4294 = vmatpush1.msra.mxu0 %v1059
    %4295 = vmatprep.subr.mxu0 0.0
    %4296 = vmatpush1.msra.mxu0 %v1060
    %4297 = vmatprep.subr.mxu0 0.0
    %4298 = vmatpush1.msra.mxu0 %v1061
    %4299 = vmatprep.subr.mxu0 0.0
    %4300 = vmatpush1.msra.mxu0 %v1062
    %4301 = vmatprep.subr.mxu0 0.0
    %4302 = vmatpush1.msra.mxu0 %v1063
    %4303 = vmatprep.subr.mxu0 0.0
    %4304 = vmatpush1.msra.mxu0 %v1064
    %4305 = vmatprep.subr.mxu0 0.0
    %4306 = vmatpush1.msra.mxu0 %v1065
    %4307 = vmatprep.subr.mxu0 0.0
    %4308 = vmatpush1.msra.mxu0 %v1066
    %4309 = vmatprep.subr.mxu0 0.0
    %4310 = vmatpush1.msra.mxu0 %v1067
    %4311 = vmatprep.mubr.f32.mxu0 %v1913
    %4312 = vmatmul.mubr.f32.gmra.mrb[0].mxu0 %v1905
    %v4313 = vpop.f32.mrb[0].mxu0
    %v4314 = vadd.f32 %v4244, %v4313
    %v4315 = vpop.f32.mrb[0].mxu0
    %4316 = vdwg.mxu0
    %4317 = vmatprep.subr.mxu0 0.0
    %4318 = vmatpush1.msra.mxu0 %v1068
    %4319 = vmatprep.subr.mxu0 0.0
    %4320 = vmatpush1.msra.mxu0 %v1069
    %4321 = vmatprep.subr.mxu0 0.0
    %4322 = vmatpush1.msra.mxu0 %v1070
    %4323 = vmatprep.subr.mxu0 0.0
    %4324 = vmatpush1.msra.mxu0 %v1071
    %4325 = vmatprep.subr.mxu0 0.0
    %4326 = vmatpush1.msra.mxu0 %v1072
    %4327 = vmatprep.subr.mxu0 0.0
    %4328 = vmatpush1.msra.mxu0 %v1073
    %4329 = vmatprep.subr.mxu0 0.0
    %4330 = vmatpush1.msra.mxu0 %v1074
    %4331 = vmatprep.subr.mxu0 0.0
    %4332 = vmatpush1.msra.mxu0 %v1075
    %4333 = vmatprep.subr.mxu0 0.0
    %4334 = vmatpush1.msra.mxu0 %v1076
    %4335 = vmatprep.subr.mxu0 0.0
    %4336 = vmatpush1.msra.mxu0 %v1077
    %4337 = vmatprep.subr.mxu0 0.0
    %4338 = vmatpush1.msra.mxu0 %v1078
    %4339 = vmatprep.subr.mxu0 0.0
    %4340 = vmatpush1.msra.mxu0 %v1079
    %4341 = vmatprep.subr.mxu0 0.0
    %4342 = vmatpush1.msra.mxu0 %v1080
    %4343 = vmatprep.subr.mxu0 0.0
    %4344 = vmatpush1.msra.mxu0 %v1081
    %4345 = vmatprep.subr.mxu0 0.0
    %4346 = vmatpush1.msra.mxu0 %v1082
    %4347 = vmatprep.subr.mxu0 0.0
    %4348 = vmatpush1.msra.mxu0 %v1083
    %4349 = vmatprep.subr.mxu0 0.0
    %4350 = vmatpush1.msra.mxu0 %v1084
    %4351 = vmatprep.subr.mxu0 0.0
    %4352 = vmatpush1.msra.mxu0 %v1085
    %4353 = vmatprep.subr.mxu0 0.0
    %4354 = vmatpush1.msra.mxu0 %v1086
    %4355 = vmatprep.subr.mxu0 0.0
    %4356 = vmatpush1.msra.mxu0 %v1087
    %4357 = vmatprep.subr.mxu0 0.0
    %4358 = vmatpush1.msra.mxu0 %v1088
    %4359 = vmatprep.subr.mxu0 0.0
    %4360 = vmatpush1.msra.mxu0 %v1089
    %4361 = vmatprep.subr.mxu0 0.0
    %4362 = vmatpush1.msra.mxu0 %v1090
    %4363 = vmatprep.subr.mxu0 0.0
    %4364 = vmatpush1.msra.mxu0 %v1091
    %4365 = vmatprep.subr.mxu0 0.0
    %4366 = vmatpush1.msra.mxu0 %v1092
    %4367 = vmatprep.subr.mxu0 0.0
    %4368 = vmatpush1.msra.mxu0 %v1093
    %4369 = vmatprep.subr.mxu0 0.0
    %4370 = vmatpush1.msra.mxu0 %v1094
    %4371 = vmatprep.subr.mxu0 0.0
    %4372 = vmatpush1.msra.mxu0 %v1095
    %4373 = vmatprep.subr.mxu0 0.0
    %4374 = vmatpush1.msra.mxu0 %v1096
    %4375 = vmatprep.subr.mxu0 0.0
    %4376 = vmatpush1.msra.mxu0 %v1097
    %4377 = vmatprep.subr.mxu0 0.0
    %4378 = vmatpush1.msra.mxu0 %v1098
    %4379 = vmatprep.subr.mxu0 0.0
    %4380 = vmatpush1.msra.mxu0 %v1099
    %4381 = vmatprep.mubr.f32.mxu0 %v1914
    %4382 = vmatmul.mubr.f32.gmra.mrb[0].mxu0 %v1912
    %v4383 = vpop.f32.mrb[0].mxu0
    %v4384 = vadd.f32 %v4314, %v4383
    %v4385 = vpop.f32.mrb[0].mxu0
    %4386 = vdwg.mxu0
    %4387 = vmatprep.subr.mxu0 0.0
    %4388 = vmatpush1.msra.mxu0 %v1100
    %4389 = vmatprep.subr.mxu0 0.0
    %4390 = vmatpush1.msra.mxu0 %v1101
    %4391 = vmatprep.subr.mxu0 0.0
    %4392 = vmatpush1.msra.mxu0 %v1102
    %4393 = vmatprep.subr.mxu0 0.0
    %4394 = vmatpush1.msra.mxu0 %v1103
    %4395 = vmatprep.subr.mxu0 0.0
    %4396 = vmatpush1.msra.mxu0 %v1104
    %4397 = vmatprep.subr.mxu0 0.0
    %4398 = vmatpush1.msra.mxu0 %v1105
    %4399 = vmatprep.subr.mxu0 0.0
    %4400 = vmatpush1.msra.mxu0 %v1106
    %4401 = vmatprep.subr.mxu0 0.0
    %4402 = vmatpush1.msra.mxu0 %v1107
    %4403 = vmatprep.subr.mxu0 0.0
    %4404 = vmatpush1.msra.mxu0 %v1108
    %4405 = vmatprep.subr.mxu0 0.0
    %4406 = vmatpush1.msra.mxu0 %v1109
    %4407 = vmatprep.subr.mxu0 0.0
    %4408 = vmatpush1.msra.mxu0 %v1110
    %4409 = vmatprep.subr.mxu0 0.0
    %4410 = vmatpush1.msra.mxu0 %v1111
    %4411 = vmatprep.subr.mxu0 0.0
    %4412 = vmatpush1.msra.mxu0 %v1112
    %4413 = vmatprep.subr.mxu0 0.0
    %4414 = vmatpush1.msra.mxu0 %v1113
    %4415 = vmatprep.subr.mxu0 0.0
    %4416 = vmatpush1.msra.mxu0 %v1114
    %4417 = vmatprep.subr.mxu0 0.0
    %4418 = vmatpush1.msra.mxu0 %v1115
    %4419 = vmatprep.subr.mxu0 0.0
    %4420 = vmatpush1.msra.mxu0 %v1116
    %4421 = vmatprep.subr.mxu0 0.0
    %4422 = vmatpush1.msra.mxu0 %v1117
    %4423 = vmatprep.subr.mxu0 0.0
    %4424 = vmatpush1.msra.mxu0 %v1118
    %4425 = vmatprep.subr.mxu0 0.0
    %4426 = vmatpush1.msra.mxu0 %v1119
    %4427 = vmatprep.subr.mxu0 0.0
    %4428 = vmatpush1.msra.mxu0 %v1120
    %4429 = vmatprep.subr.mxu0 0.0
    %4430 = vmatpush1.msra.mxu0 %v1121
    %4431 = vmatprep.subr.mxu0 0.0
    %4432 = vmatpush1.msra.mxu0 %v1122
    %4433 = vmatprep.subr.mxu0 0.0
    %4434 = vmatpush1.msra.mxu0 %v1123
    %4435 = vmatprep.subr.mxu0 0.0
    %4436 = vmatpush1.msra.mxu0 %v1124
    %4437 = vmatprep.subr.mxu0 0.0
    %4438 = vmatpush1.msra.mxu0 %v1125
    %4439 = vmatprep.subr.mxu0 0.0
    %4440 = vmatpush1.msra.mxu0 %v1126
    %4441 = vmatprep.subr.mxu0 0.0
    %4442 = vmatpush1.msra.mxu0 %v1127
    %4443 = vmatprep.subr.mxu0 0.0
    %4444 = vmatpush1.msra.mxu0 %v1128
    %4445 = vmatprep.subr.mxu0 0.0
    %4446 = vmatpush1.msra.mxu0 %v1129
    %4447 = vmatprep.subr.mxu0 0.0
    %4448 = vmatpush1.msra.mxu0 %v1130
    %4449 = vmatprep.subr.mxu0 0.0
    %4450 = vmatpush1.msra.mxu0 %v1131
    %4451 = vmatprep.mubr.f32.mxu0 %v1930
    %4452 = vmatmul.mubr.f32.gmra.mrb[0].mxu0 %v1922
    %v4453 = vpop.f32.mrb[0].mxu0
    %v4454 = vadd.f32 %v4384, %v4453
    %v4455 = vpop.f32.mrb[0].mxu0
    %4456 = vdwg.mxu0
    %4457 = vmatprep.subr.mxu0 0.0
    %4458 = vmatpush1.msra.mxu0 %v1132
    %4459 = vmatprep.subr.mxu0 0.0
    %4460 = vmatpush1.msra.mxu0 %v1133
    %4461 = vmatprep.subr.mxu0 0.0
    %4462 = vmatpush1.msra.mxu0 %v1134
    %4463 = vmatprep.subr.mxu0 0.0
    %4464 = vmatpush1.msra.mxu0 %v1135
    %4465 = vmatprep.subr.mxu0 0.0
    %4466 = vmatpush1.msra.mxu0 %v1136
    %4467 = vmatprep.subr.mxu0 0.0
    %4468 = vmatpush1.msra.mxu0 %v1137
    %4469 = vmatprep.subr.mxu0 0.0
    %4470 = vmatpush1.msra.mxu0 %v1138
    %4471 = vmatprep.subr.mxu0 0.0
    %4472 = vmatpush1.msra.mxu0 %v1139
    %4473 = vmatprep.subr.mxu0 0.0
    %4474 = vmatpush1.msra.mxu0 %v1140
    %4475 = vmatprep.subr.mxu0 0.0
    %4476 = vmatpush1.msra.mxu0 %v1141
    %4477 = vmatprep.subr.mxu0 0.0
    %4478 = vmatpush1.msra.mxu0 %v1142
    %4479 = vmatprep.subr.mxu0 0.0
    %4480 = vmatpush1.msra.mxu0 %v1143
    %4481 = vmatprep.subr.mxu0 0.0
    %4482 = vmatpush1.msra.mxu0 %v1144
    %4483 = vmatprep.subr.mxu0 0.0
    %4484 = vmatpush1.msra.mxu0 %v1145
    %4485 = vmatprep.subr.mxu0 0.0
    %4486 = vmatpush1.msra.mxu0 %v1146
    %4487 = vmatprep.subr.mxu0 0.0
    %4488 = vmatpush1.msra.mxu0 %v1147
    %4489 = vmatprep.subr.mxu0 0.0
    %4490 = vmatpush1.msra.mxu0 %v1148
    %4491 = vmatprep.subr.mxu0 0.0
    %4492 = vmatpush1.msra.mxu0 %v1149
    %4493 = vmatprep.subr.mxu0 0.0
    %4494 = vmatpush1.msra.mxu0 %v1150
    %4495 = vmatprep.subr.mxu0 0.0
    %4496 = vmatpush1.msra.mxu0 %v1151
    %4497 = vmatprep.subr.mxu0 0.0
    %4498 = vmatpush1.msra.mxu0 %v1152
    %4499 = vmatprep.subr.mxu0 0.0
    %4500 = vmatpush1.msra.mxu0 %v1153
    %4501 = vmatprep.subr.mxu0 0.0
    %4502 = vmatpush1.msra.mxu0 %v1154
    %4503 = vmatprep.subr.mxu0 0.0
    %4504 = vmatpush1.msra.mxu0 %v1155
    %4505 = vmatprep.subr.mxu0 0.0
    %4506 = vmatpush1.msra.mxu0 %v1156
    %4507 = vmatprep.subr.mxu0 0.0
    %4508 = vmatpush1.msra.mxu0 %v1157
    %4509 = vmatprep.subr.mxu0 0.0
    %4510 = vmatpush1.msra.mxu0 %v1158
    %4511 = vmatprep.subr.mxu0 0.0
    %4512 = vmatpush1.msra.mxu0 %v1159
    %4513 = vmatprep.subr.mxu0 0.0
    %4514 = vmatpush1.msra.mxu0 %v1160
    %4515 = vmatprep.subr.mxu0 0.0
    %4516 = vmatpush1.msra.mxu0 %v1161
    %4517 = vmatprep.subr.mxu0 0.0
    %4518 = vmatpush1.msra.mxu0 %v1162
    %4519 = vmatprep.subr.mxu0 0.0
    %4520 = vmatpush1.msra.mxu0 %v1163
    %4521 = vmatprep.mubr.f32.mxu0 %v1931
    %4522 = vmatmul.mubr.f32.gmra.mrb[0].mxu0 %v1929
    %v4523 = vpop.f32.mrb[0].mxu0
    %v4524 = vadd.f32 %v4454, %v4523
    %v4525 = vpop.f32.mrb[0].mxu0
    %4526 = vdwg.mxu0
    %4527 = vmatprep.subr.mxu0 0.0
    %4528 = vmatpush1.msra.mxu0 %v1164
    %4529 = vmatprep.subr.mxu0 0.0
    %4530 = vmatpush1.msra.mxu0 %v1165
    %4531 = vmatprep.subr.mxu0 0.0
    %4532 = vmatpush1.msra.mxu0 %v1166
    %4533 = vmatprep.subr.mxu0 0.0
    %4534 = vmatpush1.msra.mxu0 %v1167
    %4535 = vmatprep.subr.mxu0 0.0
    %4536 = vmatpush1.msra.mxu0 %v1168
    %4537 = vmatprep.subr.mxu0 0.0
    %4538 = vmatpush1.msra.mxu0 %v1169
    %4539 = vmatprep.subr.mxu0 0.0
    %4540 = vmatpush1.msra.mxu0 %v1170
    %4541 = vmatprep.subr.mxu0 0.0
    %4542 = vmatpush1.msra.mxu0 %v1171
    %4543 = vmatprep.subr.mxu0 0.0
    %4544 = vmatpush1.msra.mxu0 %v1172
    %4545 = vmatprep.subr.mxu0 0.0
    %4546 = vmatpush1.msra.mxu0 %v1173
    %4547 = vmatprep.subr.mxu0 0.0
    %4548 = vmatpush1.msra.mxu0 %v1174
    %4549 = vmatprep.subr.mxu0 0.0
    %4550 = vmatpush1.msra.mxu0 %v1175
    %4551 = vmatprep.subr.mxu0 0.0
    %4552 = vmatpush1.msra.mxu0 %v1176
    %4553 = vmatprep.subr.mxu0 0.0
    %4554 = vmatpush1.msra.mxu0 %v1177
    %4555 = vmatprep.subr.mxu0 0.0
    %4556 = vmatpush1.msra.mxu0 %v1178
    %4557 = vmatprep.subr.mxu0 0.0
    %4558 = vmatpush1.msra.mxu0 %v1179
    %4559 = vmatprep.subr.mxu0 0.0
    %4560 = vmatpush1.msra.mxu0 %v1180
    %4561 = vmatprep.subr.mxu0 0.0
    %4562 = vmatpush1.msra.mxu0 %v1181
    %4563 = vmatprep.subr.mxu0 0.0
    %4564 = vmatpush1.msra.mxu0 %v1182
    %4565 = vmatprep.subr.mxu0 0.0
    %4566 = vmatpush1.msra.mxu0 %v1183
    %4567 = vmatprep.subr.mxu0 0.0
    %4568 = vmatpush1.msra.mxu0 %v1184
    %4569 = vmatprep.subr.mxu0 0.0
    %4570 = vmatpush1.msra.mxu0 %v1185
    %4571 = vmatprep.subr.mxu0 0.0
    %4572 = vmatpush1.msra.mxu0 %v1186
    %4573 = vmatprep.subr.mxu0 0.0
    %4574 = vmatpush1.msra.mxu0 %v1187
    %4575 = vmatprep.subr.mxu0 0.0
    %4576 = vmatpush1.msra.mxu0 %v1188
    %4577 = vmatprep.subr.mxu0 0.0
    %4578 = vmatpush1.msra.mxu0 %v1189
    %4579 = vmatprep.subr.mxu0 0.0
    %4580 = vmatpush1.msra.mxu0 %v1190
    %4581 = vmatprep.subr.mxu0 0.0
    %4582 = vmatpush1.msra.mxu0 %v1191
    %4583 = vmatprep.subr.mxu0 0.0
    %4584 = vmatpush1.msra.mxu0 %v1192
    %4585 = vmatprep.subr.mxu0 0.0
    %4586 = vmatpush1.msra.mxu0 %v1193
    %4587 = vmatprep.subr.mxu0 0.0
    %4588 = vmatpush1.msra.mxu0 %v1194
    %4589 = vmatprep.subr.mxu0 0.0
    %4590 = vmatpush1.msra.mxu0 %v1195
    %4591 = vmatprep.mubr.f32.mxu0 %v1947
    %4592 = vmatmul.mubr.f32.gmra.mrb[0].mxu0 %v1939
    %v4593 = vpop.f32.mrb[0].mxu0
    %v4594 = vadd.f32 %v4524, %v4593
    %v4595 = vpop.f32.mrb[0].mxu0
    %4596 = vdwg.mxu0
    %4597 = vmatprep.subr.mxu0 0.0
    %4598 = vmatpush1.msra.mxu0 %v1196
    %4599 = vmatprep.subr.mxu0 0.0
    %4600 = vmatpush1.msra.mxu0 %v1197
    %4601 = vmatprep.subr.mxu0 0.0
    %4602 = vmatpush1.msra.mxu0 %v1198
    %4603 = vmatprep.subr.mxu0 0.0
    %4604 = vmatpush1.msra.mxu0 %v1199
    %4605 = vmatprep.subr.mxu0 0.0
    %4606 = vmatpush1.msra.mxu0 %v1200
    %4607 = vmatprep.subr.mxu0 0.0
    %4608 = vmatpush1.msra.mxu0 %v1201
    %4609 = vmatprep.subr.mxu0 0.0
    %4610 = vmatpush1.msra.mxu0 %v1202
    %4611 = vmatprep.subr.mxu0 0.0
    %4612 = vmatpush1.msra.mxu0 %v1203
    %4613 = vmatprep.subr.mxu0 0.0
    %4614 = vmatpush1.msra.mxu0 %v1204
    %4615 = vmatprep.subr.mxu0 0.0
    %4616 = vmatpush1.msra.mxu0 %v1205
    %4617 = vmatprep.subr.mxu0 0.0
    %4618 = vmatpush1.msra.mxu0 %v1206
    %4619 = vmatprep.subr.mxu0 0.0
    %4620 = vmatpush1.msra.mxu0 %v1207
    %4621 = vmatprep.subr.mxu0 0.0
    %4622 = vmatpush1.msra.mxu0 %v1208
    %4623 = vmatprep.subr.mxu0 0.0
    %4624 = vmatpush1.msra.mxu0 %v1209
    %4625 = vmatprep.subr.mxu0 0.0
    %4626 = vmatpush1.msra.mxu0 %v1210
    %4627 = vmatprep.subr.mxu0 0.0
    %4628 = vmatpush1.msra.mxu0 %v1211
    %4629 = vmatprep.subr.mxu0 0.0
    %4630 = vmatpush1.msra.mxu0 %v1212
    %4631 = vmatprep.subr.mxu0 0.0
    %4632 = vmatpush1.msra.mxu0 %v1213
    %4633 = vmatprep.subr.mxu0 0.0
    %4634 = vmatpush1.msra.mxu0 %v1214
    %4635 = vmatprep.subr.mxu0 0.0
    %4636 = vmatpush1.msra.mxu0 %v1215
    %4637 = vmatprep.subr.mxu0 0.0
    %4638 = vmatpush1.msra.mxu0 %v1216
    %4639 = vmatprep.subr.mxu0 0.0
    %4640 = vmatpush1.msra.mxu0 %v1217
    %4641 = vmatprep.subr.mxu0 0.0
    %4642 = vmatpush1.msra.mxu0 %v1218
    %4643 = vmatprep.subr.mxu0 0.0
    %4644 = vmatpush1.msra.mxu0 %v1219
    %4645 = vmatprep.subr.mxu0 0.0
    %4646 = vmatpush1.msra.mxu0 %v1220
    %4647 = vmatprep.subr.mxu0 0.0
    %4648 = vmatpush1.msra.mxu0 %v1221
    %4649 = vmatprep.subr.mxu0 0.0
    %4650 = vmatpush1.msra.mxu0 %v1222
    %4651 = vmatprep.subr.mxu0 0.0
    %4652 = vmatpush1.msra.mxu0 %v1223
    %4653 = vmatprep.subr.mxu0 0.0
    %4654 = vmatpush1.msra.mxu0 %v1224
    %4655 = vmatprep.subr.mxu0 0.0
    %4656 = vmatpush1.msra.mxu0 %v1225
    %4657 = vmatprep.subr.mxu0 0.0
    %4658 = vmatpush1.msra.mxu0 %v1226
    %4659 = vmatprep.subr.mxu0 0.0
    %4660 = vmatpush1.msra.mxu0 %v1227
    %4661 = vmatprep.mubr.f32.mxu0 %v1948
    %4662 = vmatmul.mubr.f32.gmra.mrb[0].mxu0 %v1946
    %v4663 = vpop.f32.mrb[0].mxu0
    %v4664 = vadd.f32 %v4594, %v4663
    %v4665 = vpop.f32.mrb[0].mxu0
    %4666 = vdwg.mxu0
    %4667 = vmatprep.subr.mxu0 0.0
    %4668 = vmatpush1.msra.mxu0 %v1228
    %4669 = vmatprep.subr.mxu0 0.0
    %4670 = vmatpush1.msra.mxu0 %v1229
    %4671 = vmatprep.subr.mxu0 0.0
    %4672 = vmatpush1.msra.mxu0 %v1230
    %4673 = vmatprep.subr.mxu0 0.0
    %4674 = vmatpush1.msra.mxu0 %v1231
    %4675 = vmatprep.subr.mxu0 0.0
    %4676 = vmatpush1.msra.mxu0 %v1232
    %4677 = vmatprep.subr.mxu0 0.0
    %4678 = vmatpush1.msra.mxu0 %v1233
    %4679 = vmatprep.subr.mxu0 0.0
    %4680 = vmatpush1.msra.mxu0 %v1234
    %4681 = vmatprep.subr.mxu0 0.0
    %4682 = vmatpush1.msra.mxu0 %v1235
    %4683 = vmatprep.subr.mxu0 0.0
    %4684 = vmatpush1.msra.mxu0 %v1236
    %4685 = vmatprep.subr.mxu0 0.0
    %4686 = vmatpush1.msra.mxu0 %v1237
    %4687 = vmatprep.subr.mxu0 0.0
    %4688 = vmatpush1.msra.mxu0 %v1238
    %4689 = vmatprep.subr.mxu0 0.0
    %4690 = vmatpush1.msra.mxu0 %v1239
    %4691 = vmatprep.subr.mxu0 0.0
    %4692 = vmatpush1.msra.mxu0 %v1240
    %4693 = vmatprep.subr.mxu0 0.0
    %4694 = vmatpush1.msra.mxu0 %v1241
    %4695 = vmatprep.subr.mxu0 0.0
    %4696 = vmatpush1.msra.mxu0 %v1242
    %4697 = vmatprep.subr.mxu0 0.0
    %4698 = vmatpush1.msra.mxu0 %v1243
    %4699 = vmatprep.subr.mxu0 0.0
    %4700 = vmatpush1.msra.mxu0 %v1244
    %4701 = vmatprep.subr.mxu0 0.0
    %4702 = vmatpush1.msra.mxu0 %v1245
    %4703 = vmatprep.subr.mxu0 0.0
    %4704 = vmatpush1.msra.mxu0 %v1246
    %4705 = vmatprep.subr.mxu0 0.0
    %4706 = vmatpush1.msra.mxu0 %v1247
    %4707 = vmatprep.subr.mxu0 0.0
    %4708 = vmatpush1.msra.mxu0 %v1248
    %4709 = vmatprep.subr.mxu0 0.0
    %4710 = vmatpush1.msra.mxu0 %v1249
    %4711 = vmatprep.subr.mxu0 0.0
    %4712 = vmatpush1.msra.mxu0 %v1250
    %4713 = vmatprep.subr.mxu0 0.0
    %4714 = vmatpush1.msra.mxu0 %v1251
    %4715 = vmatprep.subr.mxu0 0.0
    %4716 = vmatpush1.msra.mxu0 %v1252
    %4717 = vmatprep.subr.mxu0 0.0
    %4718 = vmatpush1.msra.mxu0 %v1253
    %4719 = vmatprep.subr.mxu0 0.0
    %4720 = vmatpush1.msra.mxu0 %v1254
    %4721 = vmatprep.subr.mxu0 0.0
    %4722 = vmatpush1.msra.mxu0 %v1255
    %4723 = vmatprep.subr.mxu0 0.0
    %4724 = vmatpush1.msra.mxu0 %v1256
    %4725 = vmatprep.subr.mxu0 0.0
    %4726 = vmatpush1.msra.mxu0 %v1257
    %4727 = vmatprep.subr.mxu0 0.0
    %4728 = vmatpush1.msra.mxu0 %v1258
    %4729 = vmatprep.subr.mxu0 0.0
    %4730 = vmatpush1.msra.mxu0 %v1259
    %4731 = vmatprep.mubr.f32.mxu0 %v1964
    %4732 = vmatmul.mubr.f32.gmra.mrb[0].mxu0 %v1956
    %v4733 = vpop.f32.mrb[0].mxu0
    %v4734 = vadd.f32 %v4664, %v4733
    %v4735 = vpop.f32.mrb[0].mxu0
    %4736 = vdwg.mxu0
    %4737 = vmatprep.subr.mxu0 0.0
    %4738 = vmatpush1.msra.mxu0 %v1260
    %4739 = vmatprep.subr.mxu0 0.0
    %4740 = vmatpush1.msra.mxu0 %v1261
    %4741 = vmatprep.subr.mxu0 0.0
    %4742 = vmatpush1.msra.mxu0 %v1262
    %4743 = vmatprep.subr.mxu0 0.0
    %4744 = vmatpush1.msra.mxu0 %v1263
    %4745 = vmatprep.subr.mxu0 0.0
    %4746 = vmatpush1.msra.mxu0 %v1264
    %4747 = vmatprep.subr.mxu0 0.0
    %4748 = vmatpush1.msra.mxu0 %v1265
    %4749 = vmatprep.subr.mxu0 0.0
    %4750 = vmatpush1.msra.mxu0 %v1266
    %4751 = vmatprep.subr.mxu0 0.0
    %4752 = vmatpush1.msra.mxu0 %v1267
    %4753 = vmatprep.subr.mxu0 0.0
    %4754 = vmatpush1.msra.mxu0 %v1268
    %4755 = vmatprep.subr.mxu0 0.0
    %4756 = vmatpush1.msra.mxu0 %v1269
    %4757 = vmatprep.subr.mxu0 0.0
    %4758 = vmatpush1.msra.mxu0 %v1270
    %4759 = vmatprep.subr.mxu0 0.0
    %4760 = vmatpush1.msra.mxu0 %v1271
    %4761 = vmatprep.subr.mxu0 0.0
    %4762 = vmatpush1.msra.mxu0 %v1272
    %4763 = vmatprep.subr.mxu0 0.0
    %4764 = vmatpush1.msra.mxu0 %v1273
    %4765 = vmatprep.subr.mxu0 0.0
    %4766 = vmatpush1.msra.mxu0 %v1274
    %4767 = vmatprep.subr.mxu0 0.0
    %4768 = vmatpush1.msra.mxu0 %v1275
    %4769 = vmatprep.subr.mxu0 0.0
    %4770 = vmatpush1.msra.mxu0 %v1276
    %4771 = vmatprep.subr.mxu0 0.0
    %4772 = vmatpush1.msra.mxu0 %v1277
    %4773 = vmatprep.subr.mxu0 0.0
    %4774 = vmatpush1.msra.mxu0 %v1278
    %4775 = vmatprep.subr.mxu0 0.0
    %4776 = vmatpush1.msra.mxu0 %v1279
    %4777 = vmatprep.subr.mxu0 0.0
    %4778 = vmatpush1.msra.mxu0 %v1280
    %4779 = vmatprep.subr.mxu0 0.0
    %4780 = vmatpush1.msra.mxu0 %v1281
    %4781 = vmatprep.subr.mxu0 0.0
    %4782 = vmatpush1.msra.mxu0 %v1282
    %4783 = vmatprep.subr.mxu0 0.0
    %4784 = vmatpush1.msra.mxu0 %v1283
    %4785 = vmatprep.subr.mxu0 0.0
    %4786 = vmatpush1.msra.mxu0 %v1284
    %4787 = vmatprep.subr.mxu0 0.0
    %4788 = vmatpush1.msra.mxu0 %v1285
    %4789 = vmatprep.subr.mxu0 0.0
    %4790 = vmatpush1.msra.mxu0 %v1286
    %4791 = vmatprep.subr.mxu0 0.0
    %4792 = vmatpush1.msra.mxu0 %v1287
    %4793 = vmatprep.subr.mxu0 0.0
    %4794 = vmatpush1.msra.mxu0 %v1288
    %4795 = vmatprep.subr.mxu0 0.0
    %4796 = vmatpush1.msra.mxu0 %v1289
    %4797 = vmatprep.subr.mxu0 0.0
    %4798 = vmatpush1.msra.mxu0 %v1290
    %4799 = vmatprep.subr.mxu0 0.0
    %4800 = vmatpush1.msra.mxu0 %v1291
    %4801 = vmatprep.mubr.f32.mxu0 %v1965
    %4802 = vmatmul.mubr.f32.gmra.mrb[0].mxu0 %v1963
    %v4803 = vpop.f32.mrb[0].mxu0
    %v4804 = vadd.f32 %v4734, %v4803
    %v4805 = vpop.f32.mrb[0].mxu0
    %4806 = vdwg.mxu0
    %4807 = vmatprep.subr.mxu0 0.0
    %4808 = vmatpush1.msra.mxu0 %v1292
    %4809 = vmatprep.subr.mxu0 0.0
    %4810 = vmatpush1.msra.mxu0 %v1293
    %4811 = vmatprep.subr.mxu0 0.0
    %4812 = vmatpush1.msra.mxu0 %v1294
    %4813 = vmatprep.subr.mxu0 0.0
    %4814 = vmatpush1.msra.mxu0 %v1295
    %4815 = vmatprep.subr.mxu0 0.0
    %4816 = vmatpush1.msra.mxu0 %v1296
    %4817 = vmatprep.subr.mxu0 0.0
    %4818 = vmatpush1.msra.mxu0 %v1297
    %4819 = vmatprep.subr.mxu0 0.0
    %4820 = vmatpush1.msra.mxu0 %v1298
    %4821 = vmatprep.subr.mxu0 0.0
    %4822 = vmatpush1.msra.mxu0 %v1299
    %4823 = vmatprep.subr.mxu0 0.0
    %4824 = vmatpush1.msra.mxu0 %v1300
    %4825 = vmatprep.subr.mxu0 0.0
    %4826 = vmatpush1.msra.mxu0 %v1301
    %4827 = vmatprep.subr.mxu0 0.0
    %4828 = vmatpush1.msra.mxu0 %v1302
    %4829 = vmatprep.subr.mxu0 0.0
    %4830 = vmatpush1.msra.mxu0 %v1303
    %4831 = vmatprep.subr.mxu0 0.0
    %4832 = vmatpush1.msra.mxu0 %v1304
    %4833 = vmatprep.subr.mxu0 0.0
    %4834 = vmatpush1.msra.mxu0 %v1305
    %4835 = vmatprep.subr.mxu0 0.0
    %4836 = vmatpush1.msra.mxu0 %v1306
    %4837 = vmatprep.subr.mxu0 0.0
    %4838 = vmatpush1.msra.mxu0 %v1307
    %4839 = vmatprep.subr.mxu0 0.0
    %4840 = vmatpush1.msra.mxu0 %v1308
    %4841 = vmatprep.subr.mxu0 0.0
    %4842 = vmatpush1.msra.mxu0 %v1309
    %4843 = vmatprep.subr.mxu0 0.0
    %4844 = vmatpush1.msra.mxu0 %v1310
    %4845 = vmatprep.subr.mxu0 0.0
    %4846 = vmatpush1.msra.mxu0 %v1311
    %4847 = vmatprep.subr.mxu0 0.0
    %4848 = vmatpush1.msra.mxu0 %v1312
    %4849 = vmatprep.subr.mxu0 0.0
    %4850 = vmatpush1.msra.mxu0 %v1313
    %4851 = vmatprep.subr.mxu0 0.0
    %4852 = vmatpush1.msra.mxu0 %v1314
    %4853 = vmatprep.subr.mxu0 0.0
    %4854 = vmatpush1.msra.mxu0 %v1315
    %4855 = vmatprep.subr.mxu0 0.0
    %4856 = vmatpush1.msra.mxu0 %v1316
    %4857 = vmatprep.subr.mxu0 0.0
    %4858 = vmatpush1.msra.mxu0 %v1317
    %4859 = vmatprep.subr.mxu0 0.0
    %4860 = vmatpush1.msra.mxu0 %v1318
    %4861 = vmatprep.subr.mxu0 0.0
    %4862 = vmatpush1.msra.mxu0 %v1319
    %4863 = vmatprep.subr.mxu0 0.0
    %4864 = vmatpush1.msra.mxu0 %v1320
    %4865 = vmatprep.subr.mxu0 0.0
    %4866 = vmatpush1.msra.mxu0 %v1321
    %4867 = vmatprep.subr.mxu0 0.0
    %4868 = vmatpush1.msra.mxu0 %v1322
    %4869 = vmatprep.subr.mxu0 0.0
    %4870 = vmatpush1.msra.mxu0 %v1323
    %4871 = vmatprep.mubr.f32.mxu0 %v1981
    %4872 = vmatmul.mubr.f32.gmra.mrb[0].mxu0 %v1973
    %v4873 = vpop.f32.mrb[0].mxu0
    %v4874 = vadd.f32 %v4804, %v4873
    %v4875 = vpop.f32.mrb[0].mxu0
    %4876 = vdwg.mxu0
    %4877 = vmatprep.subr.mxu0 0.0
    %4878 = vmatpush1.msra.mxu0 %v1324
    %4879 = vmatprep.subr.mxu0 0.0
    %4880 = vmatpush1.msra.mxu0 %v1325
    %4881 = vmatprep.subr.mxu0 0.0
    %4882 = vmatpush1.msra.mxu0 %v1326
    %4883 = vmatprep.subr.mxu0 0.0
    %4884 = vmatpush1.msra.mxu0 %v1327
    %4885 = vmatprep.subr.mxu0 0.0
    %4886 = vmatpush1.msra.mxu0 %v1328
    %4887 = vmatprep.subr.mxu0 0.0
    %4888 = vmatpush1.msra.mxu0 %v1329
    %4889 = vmatprep.subr.mxu0 0.0
    %4890 = vmatpush1.msra.mxu0 %v1330
    %4891 = vmatprep.subr.mxu0 0.0
    %4892 = vmatpush1.msra.mxu0 %v1331
    %4893 = vmatprep.subr.mxu0 0.0
    %4894 = vmatpush1.msra.mxu0 %v1332
    %4895 = vmatprep.subr.mxu0 0.0
    %4896 = vmatpush1.msra.mxu0 %v1333
    %4897 = vmatprep.subr.mxu0 0.0
    %4898 = vmatpush1.msra.mxu0 %v1334
    %4899 = vmatprep.subr.mxu0 0.0
    %4900 = vmatpush1.msra.mxu0 %v1335
    %4901 = vmatprep.subr.mxu0 0.0
    %4902 = vmatpush1.msra.mxu0 %v1336
    %4903 = vmatprep.subr.mxu0 0.0
    %4904 = vmatpush1.msra.mxu0 %v1337
    %4905 = vmatprep.subr.mxu0 0.0
    %4906 = vmatpush1.msra.mxu0 %v1338
    %4907 = vmatprep.subr.mxu0 0.0
    %4908 = vmatpush1.msra.mxu0 %v1339
    %4909 = vmatprep.subr.mxu0 0.0
    %4910 = vmatpush1.msra.mxu0 %v1340
    %4911 = vmatprep.subr.mxu0 0.0
    %4912 = vmatpush1.msra.mxu0 %v1341
    %4913 = vmatprep.subr.mxu0 0.0
    %4914 = vmatpush1.msra.mxu0 %v1342
    %4915 = vmatprep.subr.mxu0 0.0
    %4916 = vmatpush1.msra.mxu0 %v1343
    %4917 = vmatprep.subr.mxu0 0.0
    %4918 = vmatpush1.msra.mxu0 %v1344
    %4919 = vmatprep.subr.mxu0 0.0
    %4920 = vmatpush1.msra.mxu0 %v1345
    %4921 = vmatprep.subr.mxu0 0.0
    %4922 = vmatpush1.msra.mxu0 %v1346
    %4923 = vmatprep.subr.mxu0 0.0
    %4924 = vmatpush1.msra.mxu0 %v1347
    %4925 = vmatprep.subr.mxu0 0.0
    %4926 = vmatpush1.msra.mxu0 %v1348
    %4927 = vmatprep.subr.mxu0 0.0
    %4928 = vmatpush1.msra.mxu0 %v1349
    %4929 = vmatprep.subr.mxu0 0.0
    %4930 = vmatpush1.msra.mxu0 %v1350
    %4931 = vmatprep.subr.mxu0 0.0
    %4932 = vmatpush1.msra.mxu0 %v1351
    %4933 = vmatprep.subr.mxu0 0.0
    %4934 = vmatpush1.msra.mxu0 %v1352
    %4935 = vmatprep.subr.mxu0 0.0
    %4936 = vmatpush1.msra.mxu0 %v1353
    %4937 = vmatprep.subr.mxu0 0.0
    %4938 = vmatpush1.msra.mxu0 %v1354
    %4939 = vmatprep.subr.mxu0 0.0
    %4940 = vmatpush1.msra.mxu0 %v1355
    %4941 = vmatprep.mubr.f32.mxu0 %v1982
    %4942 = vmatmul.mubr.f32.gmra.mrb[0].mxu0 %v1980
    %v4943 = vpop.f32.mrb[0].mxu0
    %v4944 = vadd.f32 %v4874, %v4943
    %v4945 = vpop.f32.mrb[0].mxu0
    %4946 = vdwg.mxu0
    %4947 = vmatprep.subr.mxu0 0.0
    %4948 = vmatpush1.msra.mxu0 %v1356
    %4949 = vmatprep.subr.mxu0 0.0
    %4950 = vmatpush1.msra.mxu0 %v1357
    %4951 = vmatprep.subr.mxu0 0.0
    %4952 = vmatpush1.msra.mxu0 %v1358
    %4953 = vmatprep.subr.mxu0 0.0
    %4954 = vmatpush1.msra.mxu0 %v1359
    %4955 = vmatprep.subr.mxu0 0.0
    %4956 = vmatpush1.msra.mxu0 %v1360
    %4957 = vmatprep.subr.mxu0 0.0
    %4958 = vmatpush1.msra.mxu0 %v1361
    %4959 = vmatprep.subr.mxu0 0.0
    %4960 = vmatpush1.msra.mxu0 %v1362
    %4961 = vmatprep.subr.mxu0 0.0
    %4962 = vmatpush1.msra.mxu0 %v1363
    %4963 = vmatprep.subr.mxu0 0.0
    %4964 = vmatpush1.msra.mxu0 %v1364
    %4965 = vmatprep.subr.mxu0 0.0
    %4966 = vmatpush1.msra.mxu0 %v1365
    %4967 = vmatprep.subr.mxu0 0.0
    %4968 = vmatpush1.msra.mxu0 %v1366
    %4969 = vmatprep.subr.mxu0 0.0
    %4970 = vmatpush1.msra.mxu0 %v1367
    %4971 = vmatprep.subr.mxu0 0.0
    %4972 = vmatpush1.msra.mxu0 %v1368
    %4973 = vmatprep.subr.mxu0 0.0
    %4974 = vmatpush1.msra.mxu0 %v1369
    %4975 = vmatprep.subr.mxu0 0.0
    %4976 = vmatpush1.msra.mxu0 %v1370
    %4977 = vmatprep.subr.mxu0 0.0
    %4978 = vmatpush1.msra.mxu0 %v1371
    %4979 = vmatprep.subr.mxu0 0.0
    %4980 = vmatpush1.msra.mxu0 %v1372
    %4981 = vmatprep.subr.mxu0 0.0
    %4982 = vmatpush1.msra.mxu0 %v1373
    %4983 = vmatprep.subr.mxu0 0.0
    %4984 = vmatpush1.msra.mxu0 %v1374
    %4985 = vmatprep.subr.mxu0 0.0
    %4986 = vmatpush1.msra.mxu0 %v1375
    %4987 = vmatprep.subr.mxu0 0.0
    %4988 = vmatpush1.msra.mxu0 %v1376
    %4989 = vmatprep.subr.mxu0 0.0
    %4990 = vmatpush1.msra.mxu0 %v1377
    %4991 = vmatprep.subr.mxu0 0.0
    %4992 = vmatpush1.msra.mxu0 %v1378
    %4993 = vmatprep.subr.mxu0 0.0
    %4994 = vmatpush1.msra.mxu0 %v1379
    %4995 = vmatprep.subr.mxu0 0.0
    %4996 = vmatpush1.msra.mxu0 %v1380
    %4997 = vmatprep.subr.mxu0 0.0
    %4998 = vmatpush1.msra.mxu0 %v1381
    %4999 = vmatprep.subr.mxu0 0.0
    %5000 = vmatpush1.msra.mxu0 %v1382
    %5001 = vmatprep.subr.mxu0 0.0
    %5002 = vmatpush1.msra.mxu0 %v1383
    %5003 = vmatprep.subr.mxu0 0.0
    %5004 = vmatpush1.msra.mxu0 %v1384
    %5005 = vmatprep.subr.mxu0 0.0
    %5006 = vmatpush1.msra.mxu0 %v1385
    %5007 = vmatprep.subr.mxu0 0.0
    %5008 = vmatpush1.msra.mxu0 %v1386
    %5009 = vmatprep.subr.mxu0 0.0
    %5010 = vmatpush1.msra.mxu0 %v1387
    %5011 = vmatprep.mubr.f32.mxu0 %v1998
    %5012 = vmatmul.mubr.f32.gmra.mrb[0].mxu0 %v1990
    %v5013 = vpop.f32.mrb[0].mxu0
    %v5014 = vadd.f32 %v4944, %v5013
    %v5015 = vpop.f32.mrb[0].mxu0
    %5016 = vdwg.mxu0
    %5017 = vmatprep.subr.mxu0 0.0
    %5018 = vmatpush1.msra.mxu0 %v1388
    %5019 = vmatprep.subr.mxu0 0.0
    %5020 = vmatpush1.msra.mxu0 %v1389
    %5021 = vmatprep.subr.mxu0 0.0
    %5022 = vmatpush1.msra.mxu0 %v1390
    %5023 = vmatprep.subr.mxu0 0.0
    %5024 = vmatpush1.msra.mxu0 %v1391
    %5025 = vmatprep.subr.mxu0 0.0
    %5026 = vmatpush1.msra.mxu0 %v1392
    %5027 = vmatprep.subr.mxu0 0.0
    %5028 = vmatpush1.msra.mxu0 %v1393
    %5029 = vmatprep.subr.mxu0 0.0
    %5030 = vmatpush1.msra.mxu0 %v1394
    %5031 = vmatprep.subr.mxu0 0.0
    %5032 = vmatpush1.msra.mxu0 %v1395
    %5033 = vmatprep.subr.mxu0 0.0
    %5034 = vmatpush1.msra.mxu0 %v1396
    %5035 = vmatprep.subr.mxu0 0.0
    %5036 = vmatpush1.msra.mxu0 %v1397
    %5037 = vmatprep.subr.mxu0 0.0
    %5038 = vmatpush1.msra.mxu0 %v1398
    %5039 = vmatprep.subr.mxu0 0.0
    %5040 = vmatpush1.msra.mxu0 %v1399
    %5041 = vmatprep.subr.mxu0 0.0
    %5042 = vmatpush1.msra.mxu0 %v1400
    %5043 = vmatprep.subr.mxu0 0.0
    %5044 = vmatpush1.msra.mxu0 %v1401
    %5045 = vmatprep.subr.mxu0 0.0
    %5046 = vmatpush1.msra.mxu0 %v1402
    %5047 = vmatprep.subr.mxu0 0.0
    %5048 = vmatpush1.msra.mxu0 %v1403
    %5049 = vmatprep.subr.mxu0 0.0
    %5050 = vmatpush1.msra.mxu0 %v1404
    %5051 = vmatprep.subr.mxu0 0.0
    %5052 = vmatpush1.msra.mxu0 %v1405
    %5053 = vmatprep.subr.mxu0 0.0
    %5054 = vmatpush1.msra.mxu0 %v1406
    %5055 = vmatprep.subr.mxu0 0.0
    %5056 = vmatpush1.msra.mxu0 %v1407
    %5057 = vmatprep.subr.mxu0 0.0
    %5058 = vmatpush1.msra.mxu0 %v1408
    %5059 = vmatprep.subr.mxu0 0.0
    %5060 = vmatpush1.msra.mxu0 %v1409
    %5061 = vmatprep.subr.mxu0 0.0
    %5062 = vmatpush1.msra.mxu0 %v1410
    %5063 = vmatprep.subr.mxu0 0.0
    %5064 = vmatpush1.msra.mxu0 %v1411
    %5065 = vmatprep.subr.mxu0 0.0
    %5066 = vmatpush1.msra.mxu0 %v1412
    %5067 = vmatprep.subr.mxu0 0.0
    %5068 = vmatpush1.msra.mxu0 %v1413
    %5069 = vmatprep.subr.mxu0 0.0
    %5070 = vmatpush1.msra.mxu0 %v1414
    %5071 = vmatprep.subr.mxu0 0.0
    %5072 = vmatpush1.msra.mxu0 %v1415
    %5073 = vmatprep.subr.mxu0 0.0
    %5074 = vmatpush1.msra.mxu0 %v1416
    %5075 = vmatprep.subr.mxu0 0.0
    %5076 = vmatpush1.msra.mxu0 %v1417
    %5077 = vmatprep.subr.mxu0 0.0
    %5078 = vmatpush1.msra.mxu0 %v1418
    %5079 = vmatprep.subr.mxu0 0.0
    %5080 = vmatpush1.msra.mxu0 %v1419
    %5081 = vmatprep.mubr.f32.mxu0 %v1999
    %5082 = vmatmul.mubr.f32.gmra.mrb[0].mxu0 %v1997
    %v5083 = vpop.f32.mrb[0].mxu0
    %v5084 = vadd.f32 %v5014, %v5083
    %v5085 = vpop.f32.mrb[0].mxu0
    %5086 = vdwg.mxu0
    %5087 = vmatprep.subr.mxu0 0.0
    %5088 = vmatpush1.msra.mxu0 %v1420
    %5089 = vmatprep.subr.mxu0 0.0
    %5090 = vmatpush1.msra.mxu0 %v1421
    %5091 = vmatprep.subr.mxu0 0.0
    %5092 = vmatpush1.msra.mxu0 %v1422
    %5093 = vmatprep.subr.mxu0 0.0
    %5094 = vmatpush1.msra.mxu0 %v1423
    %5095 = vmatprep.subr.mxu0 0.0
    %5096 = vmatpush1.msra.mxu0 %v1424
    %5097 = vmatprep.subr.mxu0 0.0
    %5098 = vmatpush1.msra.mxu0 %v1425
    %5099 = vmatprep.subr.mxu0 0.0
    %5100 = vmatpush1.msra.mxu0 %v1426
    %5101 = vmatprep.subr.mxu0 0.0
    %5102 = vmatpush1.msra.mxu0 %v1427
    %5103 = vmatprep.subr.mxu0 0.0
    %5104 = vmatpush1.msra.mxu0 %v1428
    %5105 = vmatprep.subr.mxu0 0.0
    %5106 = vmatpush1.msra.mxu0 %v1429
    %5107 = vmatprep.subr.mxu0 0.0
    %5108 = vmatpush1.msra.mxu0 %v1430
    %5109 = vmatprep.subr.mxu0 0.0
    %5110 = vmatpush1.msra.mxu0 %v1431
    %5111 = vmatprep.subr.mxu0 0.0
    %5112 = vmatpush1.msra.mxu0 %v1432
    %5113 = vmatprep.subr.mxu0 0.0
    %5114 = vmatpush1.msra.mxu0 %v1433
    %5115 = vmatprep.subr.mxu0 0.0
    %5116 = vmatpush1.msra.mxu0 %v1434
    %5117 = vmatprep.subr.mxu0 0.0
    %5118 = vmatpush1.msra.mxu0 %v1435
    %5119 = vmatprep.subr.mxu0 0.0
    %5120 = vmatpush1.msra.mxu0 %v1436
    %5121 = vmatprep.subr.mxu0 0.0
    %5122 = vmatpush1.msra.mxu0 %v1437
    %5123 = vmatprep.subr.mxu0 0.0
    %5124 = vmatpush1.msra.mxu0 %v1438
    %5125 = vmatprep.subr.mxu0 0.0
    %5126 = vmatpush1.msra.mxu0 %v1439
    %5127 = vmatprep.subr.mxu0 0.0
    %5128 = vmatpush1.msra.mxu0 %v1440
    %5129 = vmatprep.subr.mxu0 0.0
    %5130 = vmatpush1.msra.mxu0 %v1441
    %5131 = vmatprep.subr.mxu0 0.0
    %5132 = vmatpush1.msra.mxu0 %v1442
    %5133 = vmatprep.subr.mxu0 0.0
    %5134 = vmatpush1.msra.mxu0 %v1443
    %5135 = vmatprep.subr.mxu0 0.0
    %5136 = vmatpush1.msra.mxu0 %v1444
    %5137 = vmatprep.subr.mxu0 0.0
    %5138 = vmatpush1.msra.mxu0 %v1445
    %5139 = vmatprep.subr.mxu0 0.0
    %5140 = vmatpush1.msra.mxu0 %v1446
    %5141 = vmatprep.subr.mxu0 0.0
    %5142 = vmatpush1.msra.mxu0 %v1447
    %5143 = vmatprep.subr.mxu0 0.0
    %5144 = vmatpush1.msra.mxu0 %v1448
    %5145 = vmatprep.subr.mxu0 0.0
    %5146 = vmatpush1.msra.mxu0 %v1449
    %5147 = vmatprep.subr.mxu0 0.0
    %5148 = vmatpush1.msra.mxu0 %v1450
    %5149 = vmatprep.subr.mxu0 0.0
    %5150 = vmatpush1.msra.mxu0 %v1451
    %5151 = vmatprep.mubr.f32.mxu0 %v2015
    %5152 = vmatmul.mubr.f32.gmra.mrb[0].mxu0 %v2007
    %v5153 = vpop.f32.mrb[0].mxu0
    %v5154 = vadd.f32 %v5084, %v5153
    %v5155 = vpop.f32.mrb[0].mxu0
    %5156 = vdwg.mxu0
    %5157 = vmatprep.subr.mxu0 0.0
    %5158 = vmatpush1.msra.mxu0 %v1452
    %5159 = vmatprep.subr.mxu0 0.0
    %5160 = vmatpush1.msra.mxu0 %v1453
    %5161 = vmatprep.subr.mxu0 0.0
    %5162 = vmatpush1.msra.mxu0 %v1454
    %5163 = vmatprep.subr.mxu0 0.0
    %5164 = vmatpush1.msra.mxu0 %v1455
    %5165 = vmatprep.subr.mxu0 0.0
    %5166 = vmatpush1.msra.mxu0 %v1456
    %5167 = vmatprep.subr.mxu0 0.0
    %5168 = vmatpush1.msra.mxu0 %v1457
    %5169 = vmatprep.subr.mxu0 0.0
    %5170 = vmatpush1.msra.mxu0 %v1458
    %5171 = vmatprep.subr.mxu0 0.0
    %5172 = vmatpush1.msra.mxu0 %v1459
    %5173 = vmatprep.subr.mxu0 0.0
    %5174 = vmatpush1.msra.mxu0 %v1460
    %5175 = vmatprep.subr.mxu0 0.0
    %5176 = vmatpush1.msra.mxu0 %v1461
    %5177 = vmatprep.subr.mxu0 0.0
    %5178 = vmatpush1.msra.mxu0 %v1462
    %5179 = vmatprep.subr.mxu0 0.0
    %5180 = vmatpush1.msra.mxu0 %v1463
    %5181 = vmatprep.subr.mxu0 0.0
    %5182 = vmatpush1.msra.mxu0 %v1464
    %5183 = vmatprep.subr.mxu0 0.0
    %5184 = vmatpush1.msra.mxu0 %v1465
    %5185 = vmatprep.subr.mxu0 0.0
    %5186 = vmatpush1.msra.mxu0 %v1466
    %5187 = vmatprep.subr.mxu0 0.0
    %5188 = vmatpush1.msra.mxu0 %v1467
    %5189 = vmatprep.subr.mxu0 0.0
    %5190 = vmatpush1.msra.mxu0 %v1468
    %5191 = vmatprep.subr.mxu0 0.0
    %5192 = vmatpush1.msra.mxu0 %v1469
    %5193 = vmatprep.subr.mxu0 0.0
    %5194 = vmatpush1.msra.mxu0 %v1470
    %5195 = vmatprep.subr.mxu0 0.0
    %5196 = vmatpush1.msra.mxu0 %v1471
    %5197 = vmatprep.subr.mxu0 0.0
    %5198 = vmatpush1.msra.mxu0 %v1472
    %5199 = vmatprep.subr.mxu0 0.0
    %5200 = vmatpush1.msra.mxu0 %v1473
    %5201 = vmatprep.subr.mxu0 0.0
    %5202 = vmatpush1.msra.mxu0 %v1474
    %5203 = vmatprep.subr.mxu0 0.0
    %5204 = vmatpush1.msra.mxu0 %v1475
    %5205 = vmatprep.subr.mxu0 0.0
    %5206 = vmatpush1.msra.mxu0 %v1476
    %5207 = vmatprep.subr.mxu0 0.0
    %5208 = vmatpush1.msra.mxu0 %v1477
    %5209 = vmatprep.subr.mxu0 0.0
    %5210 = vmatpush1.msra.mxu0 %v1478
    %5211 = vmatprep.subr.mxu0 0.0
    %5212 = vmatpush1.msra.mxu0 %v1479
    %5213 = vmatprep.subr.mxu0 0.0
    %5214 = vmatpush1.msra.mxu0 %v1480
    %5215 = vmatprep.subr.mxu0 0.0
    %5216 = vmatpush1.msra.mxu0 %v1481
    %5217 = vmatprep.subr.mxu0 0.0
    %5218 = vmatpush1.msra.mxu0 %v1482
    %5219 = vmatprep.subr.mxu0 0.0
    %5220 = vmatpush1.msra.mxu0 %v1483
    %5221 = vmatprep.mubr.f32.mxu0 %v2016
    %5222 = vmatmul.mubr.f32.gmra.mrb[0].mxu0 %v2014
    %v5223 = vpop.f32.mrb[0].mxu0
    %v5224 = vadd.f32 %v5154, %v5223
    %v5225 = vpop.f32.mrb[0].mxu0
    %5226 = vdwg.mxu0
    %5227 = vmatprep.subr.mxu0 0.0
    %5228 = vmatpush1.msra.mxu0 %v1484
    %5229 = vmatprep.subr.mxu0 0.0
    %5230 = vmatpush1.msra.mxu0 %v1485
    %5231 = vmatprep.subr.mxu0 0.0
    %5232 = vmatpush1.msra.mxu0 %v1486
    %5233 = vmatprep.subr.mxu0 0.0
    %5234 = vmatpush1.msra.mxu0 %v1487
    %5235 = vmatprep.subr.mxu0 0.0
    %5236 = vmatpush1.msra.mxu0 %v1488
    %5237 = vmatprep.subr.mxu0 0.0
    %5238 = vmatpush1.msra.mxu0 %v1489
    %5239 = vmatprep.subr.mxu0 0.0
    %5240 = vmatpush1.msra.mxu0 %v1490
    %5241 = vmatprep.subr.mxu0 0.0
    %5242 = vmatpush1.msra.mxu0 %v1491
    %5243 = vmatprep.subr.mxu0 0.0
    %5244 = vmatpush1.msra.mxu0 %v1492
    %5245 = vmatprep.subr.mxu0 0.0
    %5246 = vmatpush1.msra.mxu0 %v1493
    %5247 = vmatprep.subr.mxu0 0.0
    %5248 = vmatpush1.msra.mxu0 %v1494
    %5249 = vmatprep.subr.mxu0 0.0
    %5250 = vmatpush1.msra.mxu0 %v1495
    %5251 = vmatprep.subr.mxu0 0.0
    %5252 = vmatpush1.msra.mxu0 %v1496
    %5253 = vmatprep.subr.mxu0 0.0
    %5254 = vmatpush1.msra.mxu0 %v1497
    %5255 = vmatprep.subr.mxu0 0.0
    %5256 = vmatpush1.msra.mxu0 %v1498
    %5257 = vmatprep.subr.mxu0 0.0
    %5258 = vmatpush1.msra.mxu0 %v1499
    %5259 = vmatprep.subr.mxu0 0.0
    %5260 = vmatpush1.msra.mxu0 %v1500
    %5261 = vmatprep.subr.mxu0 0.0
    %5262 = vmatpush1.msra.mxu0 %v1501
    %5263 = vmatprep.subr.mxu0 0.0
    %5264 = vmatpush1.msra.mxu0 %v1502
    %5265 = vmatprep.subr.mxu0 0.0
    %5266 = vmatpush1.msra.mxu0 %v1503
    %5267 = vmatprep.subr.mxu0 0.0
    %5268 = vmatpush1.msra.mxu0 %v1504
    %5269 = vmatprep.subr.mxu0 0.0
    %5270 = vmatpush1.msra.mxu0 %v1505
    %5271 = vmatprep.subr.mxu0 0.0
    %5272 = vmatpush1.msra.mxu0 %v1506
    %5273 = vmatprep.subr.mxu0 0.0
    %5274 = vmatpush1.msra.mxu0 %v1507
    %5275 = vmatprep.subr.mxu0 0.0
    %5276 = vmatpush1.msra.mxu0 %v1508
    %5277 = vmatprep.subr.mxu0 0.0
    %5278 = vmatpush1.msra.mxu0 %v1509
    %5279 = vmatprep.subr.mxu0 0.0
    %5280 = vmatpush1.msra.mxu0 %v1510
    %5281 = vmatprep.subr.mxu0 0.0
    %5282 = vmatpush1.msra.mxu0 %v1511
    %5283 = vmatprep.subr.mxu0 0.0
    %5284 = vmatpush1.msra.mxu0 %v1512
    %5285 = vmatprep.subr.mxu0 0.0
    %5286 = vmatpush1.msra.mxu0 %v1513
    %5287 = vmatprep.subr.mxu0 0.0
    %5288 = vmatpush1.msra.mxu0 %v1514
    %5289 = vmatprep.subr.mxu0 0.0
    %5290 = vmatpush1.msra.mxu0 %v1515
    %5291 = vmatprep.mubr.f32.mxu0 %v2032
    %5292 = vmatmul.mubr.f32.gmra.mrb[0].mxu0 %v2024
    %v5293 = vpop.f32.mrb[0].mxu0
    %v5294 = vadd.f32 %v5224, %v5293
    %v5295 = vpop.f32.mrb[0].mxu0
    %5296 = vdwg.mxu0
    %5297 = vmatprep.subr.mxu0 0.0
    %5298 = vmatpush1.msra.mxu0 %v1516
    %5299 = vmatprep.subr.mxu0 0.0
    %5300 = vmatpush1.msra.mxu0 %v1517
    %5301 = vmatprep.subr.mxu0 0.0
    %5302 = vmatpush1.msra.mxu0 %v1518
    %5303 = vmatprep.subr.mxu0 0.0
    %5304 = vmatpush1.msra.mxu0 %v1519
    %5305 = vmatprep.subr.mxu0 0.0
    %5306 = vmatpush1.msra.mxu0 %v1520
    %5307 = vmatprep.subr.mxu0 0.0
    %5308 = vmatpush1.msra.mxu0 %v1521
    %5309 = vmatprep.subr.mxu0 0.0
    %5310 = vmatpush1.msra.mxu0 %v1522
    %5311 = vmatprep.subr.mxu0 0.0
    %5312 = vmatpush1.msra.mxu0 %v1523
    %5313 = vmatprep.subr.mxu0 0.0
    %5314 = vmatpush1.msra.mxu0 %v1524
    %5315 = vmatprep.subr.mxu0 0.0
    %5316 = vmatpush1.msra.mxu0 %v1525
    %5317 = vmatprep.subr.mxu0 0.0
    %5318 = vmatpush1.msra.mxu0 %v1526
    %5319 = vmatprep.subr.mxu0 0.0
    %5320 = vmatpush1.msra.mxu0 %v1527
    %5321 = vmatprep.subr.mxu0 0.0
    %5322 = vmatpush1.msra.mxu0 %v1528
    %5323 = vmatprep.subr.mxu0 0.0
    %5324 = vmatpush1.msra.mxu0 %v1529
    %5325 = vmatprep.subr.mxu0 0.0
    %5326 = vmatpush1.msra.mxu0 %v1530
    %5327 = vmatprep.subr.mxu0 0.0
    %5328 = vmatpush1.msra.mxu0 %v1531
    %5329 = vmatprep.subr.mxu0 0.0
    %5330 = vmatpush1.msra.mxu0 %v1532
    %5331 = vmatprep.subr.mxu0 0.0
    %5332 = vmatpush1.msra.mxu0 %v1533
    %5333 = vmatprep.subr.mxu0 0.0
    %5334 = vmatpush1.msra.mxu0 %v1534
    %5335 = vmatprep.subr.mxu0 0.0
    %5336 = vmatpush1.msra.mxu0 %v1535
    %5337 = vmatprep.subr.mxu0 0.0
    %5338 = vmatpush1.msra.mxu0 %v1536
    %5339 = vmatprep.subr.mxu0 0.0
    %5340 = vmatpush1.msra.mxu0 %v1537
    %5341 = vmatprep.subr.mxu0 0.0
    %5342 = vmatpush1.msra.mxu0 %v1538
    %5343 = vmatprep.subr.mxu0 0.0
    %5344 = vmatpush1.msra.mxu0 %v1539
    %5345 = vmatprep.subr.mxu0 0.0
    %5346 = vmatpush1.msra.mxu0 %v1540
    %5347 = vmatprep.subr.mxu0 0.0
    %5348 = vmatpush1.msra.mxu0 %v1541
    %5349 = vmatprep.subr.mxu0 0.0
    %5350 = vmatpush1.msra.mxu0 %v1542
    %5351 = vmatprep.subr.mxu0 0.0
    %5352 = vmatpush1.msra.mxu0 %v1543
    %5353 = vmatprep.subr.mxu0 0.0
    %5354 = vmatpush1.msra.mxu0 %v1544
    %5355 = vmatprep.subr.mxu0 0.0
    %5356 = vmatpush1.msra.mxu0 %v1545
    %5357 = vmatprep.subr.mxu0 0.0
    %5358 = vmatpush1.msra.mxu0 %v1546
    %5359 = vmatprep.subr.mxu0 0.0
    %5360 = vmatpush1.msra.mxu0 %v1547
    %5361 = vmatprep.mubr.f32.mxu0 %v2033
    %5362 = vmatmul.mubr.f32.gmra.mrb[0].mxu0 %v2031
    %v5363 = vpop.f32.mrb[0].mxu0
    %v5364 = vadd.f32 %v5294, %v5363
    %v5365 = vpop.f32.mrb[0].mxu0
    %5366 = vdwg.mxu0
    %5367 = vmatprep.subr.mxu0 0.0
    %5368 = vmatpush1.msra.mxu0 %v1548
    %5369 = vmatprep.subr.mxu0 0.0
    %5370 = vmatpush1.msra.mxu0 %v1549
    %5371 = vmatprep.subr.mxu0 0.0
    %5372 = vmatpush1.msra.mxu0 %v1550
    %5373 = vmatprep.subr.mxu0 0.0
    %5374 = vmatpush1.msra.mxu0 %v1551
    %5375 = vmatprep.subr.mxu0 0.0
    %5376 = vmatpush1.msra.mxu0 %v1552
    %5377 = vmatprep.subr.mxu0 0.0
    %5378 = vmatpush1.msra.mxu0 %v1553
    %5379 = vmatprep.subr.mxu0 0.0
    %5380 = vmatpush1.msra.mxu0 %v1554
    %5381 = vmatprep.subr.mxu0 0.0
    %5382 = vmatpush1.msra.mxu0 %v1555
    %5383 = vmatprep.subr.mxu0 0.0
    %5384 = vmatpush1.msra.mxu0 %v1556
    %5385 = vmatprep.subr.mxu0 0.0
    %5386 = vmatpush1.msra.mxu0 %v1557
    %5387 = vmatprep.subr.mxu0 0.0
    %5388 = vmatpush1.msra.mxu0 %v1558
    %5389 = vmatprep.subr.mxu0 0.0
    %5390 = vmatpush1.msra.mxu0 %v1559
    %5391 = vmatprep.subr.mxu0 0.0
    %5392 = vmatpush1.msra.mxu0 %v1560
    %5393 = vmatprep.subr.mxu0 0.0
    %5394 = vmatpush1.msra.mxu0 %v1561
    %5395 = vmatprep.subr.mxu0 0.0
    %5396 = vmatpush1.msra.mxu0 %v1562
    %5397 = vmatprep.subr.mxu0 0.0
    %5398 = vmatpush1.msra.mxu0 %v1563
    %5399 = vmatprep.subr.mxu0 0.0
    %5400 = vmatpush1.msra.mxu0 %v1564
    %5401 = vmatprep.subr.mxu0 0.0
    %5402 = vmatpush1.msra.mxu0 %v1565
    %5403 = vmatprep.subr.mxu0 0.0
    %5404 = vmatpush1.msra.mxu0 %v1566
    %5405 = vmatprep.subr.mxu0 0.0
    %5406 = vmatpush1.msra.mxu0 %v1567
    %5407 = vmatprep.subr.mxu0 0.0
    %5408 = vmatpush1.msra.mxu0 %v1568
    %5409 = vmatprep.subr.mxu0 0.0
    %5410 = vmatpush1.msra.mxu0 %v1569
    %5411 = vmatprep.subr.mxu0 0.0
    %5412 = vmatpush1.msra.mxu0 %v1570
    %5413 = vmatprep.subr.mxu0 0.0
    %5414 = vmatpush1.msra.mxu0 %v1571
    %5415 = vmatprep.subr.mxu0 0.0
    %5416 = vmatpush1.msra.mxu0 %v1572
    %5417 = vmatprep.subr.mxu0 0.0
    %5418 = vmatpush1.msra.mxu0 %v1573
    %5419 = vmatprep.subr.mxu0 0.0
    %5420 = vmatpush1.msra.mxu0 %v1574
    %5421 = vmatprep.subr.mxu0 0.0
    %5422 = vmatpush1.msra.mxu0 %v1575
    %5423 = vmatprep.subr.mxu0 0.0
    %5424 = vmatpush1.msra.mxu0 %v1576
    %5425 = vmatprep.subr.mxu0 0.0
    %5426 = vmatpush1.msra.mxu0 %v1577
    %5427 = vmatprep.subr.mxu0 0.0
    %5428 = vmatpush1.msra.mxu0 %v1578
    %5429 = vmatprep.subr.mxu0 0.0
    %5430 = vmatpush1.msra.mxu0 %v1579
    %5431 = vmatprep.mubr.f32.mxu0 %v2049
    %5432 = vmatmul.mubr.f32.gmra.mrb[0].mxu0 %v2041
    %v5433 = vpop.f32.mrb[0].mxu0
    %v5434 = vadd.f32 %v5364, %v5433
    %v5435 = vpop.f32.mrb[0].mxu0
    %5436 = vdwg.mxu0
    %5437 = vmatprep.subr.mxu0 0.0
    %5438 = vmatpush1.msra.mxu0 %v1580
    %5439 = vmatprep.subr.mxu0 0.0
    %5440 = vmatpush1.msra.mxu0 %v1581
    %5441 = vmatprep.subr.mxu0 0.0
    %5442 = vmatpush1.msra.mxu0 %v1582
    %5443 = vmatprep.subr.mxu0 0.0
    %5444 = vmatpush1.msra.mxu0 %v1583
    %5445 = vmatprep.subr.mxu0 0.0
    %5446 = vmatpush1.msra.mxu0 %v1584
    %5447 = vmatprep.subr.mxu0 0.0
    %5448 = vmatpush1.msra.mxu0 %v1585
    %5449 = vmatprep.subr.mxu0 0.0
    %5450 = vmatpush1.msra.mxu0 %v1586
    %5451 = vmatprep.subr.mxu0 0.0
    %5452 = vmatpush1.msra.mxu0 %v1587
    %5453 = vmatprep.subr.mxu0 0.0
    %5454 = vmatpush1.msra.mxu0 %v1588
    %5455 = vmatprep.subr.mxu0 0.0
    %5456 = vmatpush1.msra.mxu0 %v1589
    %5457 = vmatprep.subr.mxu0 0.0
    %5458 = vmatpush1.msra.mxu0 %v1590
    %5459 = vmatprep.subr.mxu0 0.0
    %5460 = vmatpush1.msra.mxu0 %v1591
    %5461 = vmatprep.subr.mxu0 0.0
    %5462 = vmatpush1.msra.mxu0 %v1592
    %5463 = vmatprep.subr.mxu0 0.0
    %5464 = vmatpush1.msra.mxu0 %v1593
    %5465 = vmatprep.subr.mxu0 0.0
    %5466 = vmatpush1.msra.mxu0 %v1594
    %5467 = vmatprep.subr.mxu0 0.0
    %5468 = vmatpush1.msra.mxu0 %v1595
    %5469 = vmatprep.subr.mxu0 0.0
    %5470 = vmatpush1.msra.mxu0 %v1596
    %5471 = vmatprep.subr.mxu0 0.0
    %5472 = vmatpush1.msra.mxu0 %v1597
    %5473 = vmatprep.subr.mxu0 0.0
    %5474 = vmatpush1.msra.mxu0 %v1598
    %5475 = vmatprep.subr.mxu0 0.0
    %5476 = vmatpush1.msra.mxu0 %v1599
    %5477 = vmatprep.subr.mxu0 0.0
    %5478 = vmatpush1.msra.mxu0 %v1600
    %5479 = vmatprep.subr.mxu0 0.0
    %5480 = vmatpush1.msra.mxu0 %v1601
    %5481 = vmatprep.subr.mxu0 0.0
    %5482 = vmatpush1.msra.mxu0 %v1602
    %5483 = vmatprep.subr.mxu0 0.0
    %5484 = vmatpush1.msra.mxu0 %v1603
    %5485 = vmatprep.subr.mxu0 0.0
    %5486 = vmatpush1.msra.mxu0 %v1604
    %5487 = vmatprep.subr.mxu0 0.0
    %5488 = vmatpush1.msra.mxu0 %v1605
    %5489 = vmatprep.subr.mxu0 0.0
    %5490 = vmatpush1.msra.mxu0 %v1606
    %5491 = vmatprep.subr.mxu0 0.0
    %5492 = vmatpush1.msra.mxu0 %v1607
    %5493 = vmatprep.subr.mxu0 0.0
    %5494 = vmatpush1.msra.mxu0 %v1608
    %5495 = vmatprep.subr.mxu0 0.0
    %5496 = vmatpush1.msra.mxu0 %v1609
    %5497 = vmatprep.subr.mxu0 0.0
    %5498 = vmatpush1.msra.mxu0 %v1610
    %5499 = vmatprep.subr.mxu0 0.0
    %5500 = vmatpush1.msra.mxu0 %v1611
    %5501 = vmatprep.mubr.f32.mxu0 %v2050
    %5502 = vmatmul.mubr.f32.gmra.mrb[0].mxu0 %v2048
    %v5503 = vpop.f32.mrb[0].mxu0
    %v5504 = vadd.f32 %v5434, %v5503
    %v5505 = vpop.f32.mrb[0].mxu0
    %5506 = vdwg.mxu0
    %5507 = vst [vmem:[#allocation8] sm:$0x3] %v5504
    // Predicated region
    $region26: #{tpu_custom_call.1} parent=1 // pred_check
      _
    $region27: #{tpu_custom_call.1} parent=1 // pred_check_branch
      %5509 = sbr.rel (0) target = $region29
    $region28: #{tpu_custom_call.1} parent=1 // pred_region
      %s5511 = ssub.s32 32, 32
      %5512 = vsyncadd [#allocation4], %s5511
      %s5514 = sshll.u32 [#allocation8], 4
      %s5515 = int_to_ptr.vmem [resolvable:$true] %s5514
      %5517 = dma.vmem_to_hbm [thread:$0]  %s5515, 32, %s3, [#allocation4]
    $region29: #{tpu_custom_call.1} parent=1 // pred_fallthru
      _
    // Predicated region
    $region30: #{tpu_custom_call.1} parent=1 // pred_check
      _
    $region31: #{tpu_custom_call.1} parent=1 // pred_check_branch
      %5519 = sbr.rel (0) target = $region33
    $region32: #{tpu_custom_call.1} parent=1 // pred_region
      %5520 = dma.done [#allocation4], 32
    $region33: #{tpu_custom_call.1} parent=1 // pred_fallthru
      _
    %5521 = vsyncpa [#allocation3], 1
    %5522 = vsyncpa [#allocation6], 1
    %5523 = vsyncpa [#allocation4], 1

</llo_original>
